<compile_context>
chip_gen: v5e
topology: v5e:2x2
jax: 0.10.0
libtpu: 0.0.40
codegen_flags: <defaults>
</compile_context>

<pallas_src>
import functools

import jax
import jax.numpy as jnp
from jax.experimental import pallas as pl
from jax.experimental.pallas import tpu as pltpu

EPS = 1e-3       # matches nn.BatchNorm2d(eps=0.001)
LANES = 128
SUBLANES = 8


def _round_up(x, m):
    return (x + m - 1) // m * m


def _sl(start, size, stride):
    # static stride; only the stride==1 path is exercised in this script
    return pl.ds(start, size) if stride == 1 else pl.ds(start, size, stride)


def _conv_tile(x_ref, w_ref, t, *, TOH, OW, CP, OCP, KH, KW, stride):
    """In-kernel im2col-free conv for one (batch, OH-tile) block.

    x_ref : (1, HP, WP, CP)  padded NHWC activations (compute dtype)
    w_ref : (KH*KW, CP, OCP) weights (compute dtype)
    returns y : (TOH*OW, OCP) float32 accumulator
    """
    TM = TOH * OW
    acc = jnp.zeros((TM, OCP), jnp.float32)
    h_base = t * (TOH * stride)
    for kh in range(KH):
        for kw in range(KW):
            xs = x_ref[0, _sl(h_base + kh, TOH, stride), _sl(kw, OW, stride), :]
            xs = xs.reshape(TM, CP)
            acc = acc + jnp.dot(xs, w_ref[kh * KW + kw],
                                preferred_element_type=jnp.float32)
    return acc


def _conv_stats_kernel(x_ref, w_ref, stats_ref, *, TOH, OW, CP, OCP, KH, KW, stride):
    # pass 1: conv + per-tile channel sum / sum-of-squares (MXU reduction, not XLU)
    t = pl.program_id(1)
    y = _conv_tile(x_ref, w_ref, t, TOH=TOH, OW=OW, CP=CP, OCP=OCP,
                   KH=KH, KW=KW, stride=stride)                      # (TM, OCP) f32
    ones_row = jnp.ones((1, y.shape[0]), jnp.float32)
    s1 = jnp.dot(ones_row, y, preferred_element_type=jnp.float32)     # (1, OCP)
    s2 = jnp.dot(ones_row, y * y, preferred_element_type=jnp.float32)  # (1, OCP)
    stats_ref[...] = jnp.concatenate([s1, s2], axis=0)[None, None]    # (1,1,2,OCP)


def _conv_bn_relu_kernel(x_ref, w_ref, scale_ref, shift_ref, o_ref, *,
                         TOH, OW, CP, OCP, KH, KW, stride):
    # pass 2: conv + fused BN (precomputed scale/shift) + ReLU, lane-dense store
    t = pl.program_id(1)
    y = _conv_tile(x_ref, w_ref, t, TOH=TOH, OW=OW, CP=CP, OCP=OCP,
                   KH=KH, KW=KW, stride=stride)                      # (TM, OCP) f32
    out = jnp.maximum(y * scale_ref[...] + shift_ref[...], 0.0)
    o_ref[...] = out[None]


@functools.partial(jax.jit,
                   static_argnames=("stride", "padding", "compute_dtype", "block_rows"))
def basic_conv(x_nchw, weight, gamma, beta, *, stride=1, padding=1,
               compute_dtype=jnp.float32, block_rows=1024):
    """Fused Conv2d(bias=False) + BatchNorm2d(training batch stats) + ReLU.

    x is NCHW, weight is OIHW (PyTorch layout); returns NCHW.
    """
    N, C, H, W = x_nchw.shape
    OC, IC, KH, KW = weight.shape
    assert IC == C
    OH = (H + 2 * padding - KH) // stride + 1
    OW = (W + 2 * padding - KW) // stride + 1

    CP = _round_up(C, SUBLANES)    # contraction (sublane) alignment
    OCP = _round_up(OC, LANES)     # lane-dense output channels
    HP = H + 2 * padding
    WP = W + 2 * padding

    # pick an OH tile (TOH output rows per grid step), TOH | OH, TOH*OW <= block_rows
    TOH = 1
    for d in range(1, OH + 1):
        if OH % d == 0 and d * OW <= max(block_rows, OW):
            TOH = d
    if (TOH * OW) % SUBLANES != 0 and TOH != OH:
        TOH = OH                    # full-dim block is always layout-legal
    n_t = OH // TOH
    TM = TOH * OW

    # --- glue (layout only): NCHW->NHWC, spatial + channel zero pad, OIHW->(KH*KW,CP,OCP)
    x = jnp.transpose(x_nchw, (0, 2, 3, 1))
    x_pad = jnp.pad(x, ((0, 0), (padding, padding), (padding, padding), (0, CP - C)))
    x_pad = x_pad.astype(compute_dtype)
    w = jnp.transpose(weight, (2, 3, 1, 0)).reshape(KH * KW, C, OC)
    w_pad = jnp.zeros((KH * KW, CP, OCP), compute_dtype).at[:, :C, :OC].set(
        w.astype(compute_dtype))

    statics = dict(TOH=TOH, OW=OW, CP=CP, OCP=OCP, KH=KH, KW=KW, stride=stride)
    kstat = functools.partial(_conv_stats_kernel, **statics)
    kbn = functools.partial(_conv_bn_relu_kernel, **statics)

    x_spec = pl.BlockSpec((1, HP, WP, CP), lambda n, t: (n, 0, 0, 0))
    w_spec = pl.BlockSpec((KH * KW, CP, OCP), lambda n, t: (0, 0, 0))
    vec_spec = pl.BlockSpec((1, OCP), lambda n, t: (0, 0))

    cparams = pltpu.CompilerParams(
        dimension_semantics=("parallel", "parallel"),   # v7x: shard over both TCs
        vmem_limit_bytes=32 * 1024 * 1024)              # safe on v5e/v6e/v7x (64 MiB/TC)

    conv_flops = 2 * N * OH * OW * (KH * KW * CP) * OCP
    in_bytes = (x_pad.size * x_pad.dtype.itemsize + w_pad.size * w_pad.dtype.itemsize)

    # ---- pass 1: conv + per-tile channel sum / sum-of-squares ---------------------------
    stats = pl.pallas_call(
        kstat,
        grid=(N, n_t),
        in_specs=[x_spec, w_spec],
        out_specs=pl.BlockSpec((1, 1, 2, OCP), lambda n, t: (n, t, 0, 0)),
        out_shape=jax.ShapeDtypeStruct((N, n_t, 2, OCP), jnp.float32),
        compiler_params=cparams,
        cost_estimate=pl.CostEstimate(flops=conv_flops, transcendentals=0,
                                      bytes_accessed=in_bytes + N * n_t * 2 * OCP * 4),
    )(x_pad, w_pad)

    # finish BN statistics (tiny, f32): biased batch variance = PyTorch training semantics
    cnt = float(N * OH * OW)
    tot = jnp.sum(stats, axis=(0, 1))                        # (2, OCP)
    mean = tot[0] / cnt
    var = jnp.maximum(tot[1] / cnt - mean * mean, 0.0)
    gamma_p = jnp.zeros((OCP,), jnp.float32).at[:OC].set(gamma.astype(jnp.float32))
    beta_p = jnp.zeros((OCP,), jnp.float32).at[:OC].set(beta.astype(jnp.float32))
    scale_v = gamma_p * jax.lax.rsqrt(var + EPS)
    shift_v = beta_p - mean * scale_v
    scale = scale_v.reshape(1, OCP)
    shift = shift_v.reshape(1, OCP)

    # ---- pass 2: conv (recomputed, avoids HBM round-trip of padded y) + BN + ReLU -------
    out = pl.pallas_call(
        kbn,
        grid=(N, n_t),
        in_specs=[x_spec, w_spec, vec_spec, vec_spec],
        out_specs=pl.BlockSpec((1, TM, OCP), lambda n, t: (n, t, 0)),
        out_shape=jax.ShapeDtypeStruct((N, OH * OW, OCP), jnp.float32),
        compiler_params=cparams,
        cost_estimate=pl.CostEstimate(flops=conv_flops, transcendentals=0,
                                      bytes_accessed=in_bytes + N * OH * OW * OCP * 4),
    )(x_pad, w_pad, scale, shift)

    out = out.reshape(N, OH, OW, OCP)[..., :OC]              # drop lane-padding channels
    return jnp.transpose(out, (0, 3, 1, 2)).astype(x_nchw.dtype)   # back to NCHW
    # TODO(synk): BatchNorm2d running_mean/running_var buffer updates (training side
    # effect) are not returned; only the forward output is produced.


def reference(x_nchw, weight, gamma, beta, *, stride=1, padding=1):
    y = jax.lax.conv_general_dilated(
        x_nchw.astype(jnp.float32), weight.astype(jnp.float32),
        window_strides=(stride, stride),
        padding=[(padding, padding), (padding, padding)],
        dimension_numbers=("NCHW", "OIHW", "NCHW"))
    mean = jnp.mean(y, axis=(0, 2, 3), keepdims=True)
    var = jnp.mean((y - mean) ** 2, axis=(0, 2, 3), keepdims=True)
    y_hat = (y - mean) * jax.lax.rsqrt(var + EPS)
    out = y_hat * gamma.reshape(1, -1, 1, 1) + beta.reshape(1, -1, 1, 1)
    return jnp.maximum(out, 0.0)


if __name__ == "__main__":
    # BasicConv(inchannel=4, outchannel=8, kernel_size=3, stride=1, padding=1)
    N, C, H, W = 2, 4, 16, 16
    OC, KH, KW = 8, 3, 3
    stride, padding = 1, 1

    key = jax.random.PRNGKey(0)
    kx, kw_, kg, kb = jax.random.split(key, 4)
    x = jax.random.normal(kx, (N, C, H, W), dtype=jnp.float32)
    weight = jax.random.normal(kw_, (OC, C, KH, KW), dtype=jnp.float32) * 0.1
    gamma = 1.0 + 0.1 * jax.random.normal(kg, (OC,), dtype=jnp.float32)
    beta = 0.1 * jax.random.normal(kb, (OC,), dtype=jnp.float32)

    # block_rows=128 so even this toy shape exercises the tiled (N, OH-tile) grid
    out = basic_conv(x, weight, gamma, beta, stride=stride, padding=padding,
                     block_rows=128)
    out = jax.block_until_ready(out)

    ref = reference(x, weight, gamma, beta, stride=stride, padding=padding)
    assert out.shape == (N, OC, H, W)
    err = float(jnp.max(jnp.abs(out - ref)))
    assert err < 1e-3, f"mismatch vs. reference: {err}"

    print("KERNEL_OK")
</pallas_src>

<mosaic_0001>
module attributes {stable_mosaic.version = 11 : i64} {
  func.func @_conv_stats_kernel(%arg0: i32, %arg1: i32, %arg2: memref<1x18x18x8xf32, #tpu.memory_space<vmem>>, %arg3: memref<9x8x128xf32, #tpu.memory_space<vmem>>, %arg4: memref<1x1x2x128xf32, #tpu.memory_space<vmem>>) attributes {dimension_semantics = [#tpu.dimension_semantics<parallel>, #tpu.dimension_semantics<parallel>], iteration_bounds = array<i64: 2, 2>, scalar_prefetch = 0 : i64, scratch_operands = 0 : i64, tpu.core_type = #tpu.core_type<tc>, window_params = [{transform_indices = @transform_0, window_bounds = array<i64: 1, 18, 18, 8>}, {pipeline_mode = #tpu.pipeline_mode<synchronous>, transform_indices = @transform_1, window_bounds = array<i64: 9, 8, 128>}, {transform_indices = @transform_2, window_bounds = array<i64: 1, 1, 2, 128>}]} {
    %cst = arith.constant 0.000000e+00 : f32
    %0 = vector.broadcast %cst : f32 to vector<128x128xf32>
    %c8_i32 = arith.constant 8 : i32
    %1 = arith.muli %arg1, %c8_i32 : i32
    %c0_i32 = arith.constant 0 : i32
    %2 = arith.addi %1, %c0_i32 : i32
    %c0 = arith.constant 0 : index
    %3 = arith.index_cast %2 : i32 to index
    %c0_0 = arith.constant 0 : index
    %c0_1 = arith.constant 0 : index
    %4 = vector.load %arg2[%c0, %3, %c0_0, %c0_1] : memref<1x18x18x8xf32, #tpu.memory_space<vmem>>, vector<1x8x16x8xf32>
    %5 = vector.shape_cast %4 : vector<1x8x16x8xf32> to vector<8x16x8xf32>
    %6 = vector.shape_cast %5 : vector<8x16x8xf32> to vector<128x8xf32>
    %c0_2 = arith.constant 0 : index
    %c0_3 = arith.constant 0 : index
    %c0_4 = arith.constant 0 : index
    %7 = vector.load %arg3[%c0_2, %c0_3, %c0_4] : memref<9x8x128xf32, #tpu.memory_space<vmem>>, vector<1x8x128xf32>
    %8 = vector.shape_cast %7 : vector<1x8x128xf32> to vector<8x128xf32>
    %cst_5 = arith.constant dense<0.000000e+00> : vector<128x128xf32>
    %9 = tpu.matmul %6, %8, %cst_5 {dimension_numbers = #tpu.dot_dimension_numbers<[1], [0], [0], [1], [0, 0, 1, 1], [], []>} : vector<128x8xf32>, vector<8x128xf32>, vector<128x128xf32> -> vector<128x128xf32>
    %10 = arith.addf %0, %9 : vector<128x128xf32>
    %c0_i32_6 = arith.constant 0 : i32
    %11 = arith.addi %1, %c0_i32_6 : i32
    %c0_7 = arith.constant 0 : index
    %12 = arith.index_cast %11 : i32 to index
    %c1 = arith.constant 1 : index
    %c0_8 = arith.constant 0 : index
    %13 = vector.load %arg2[%c0_7, %12, %c1, %c0_8] : memref<1x18x18x8xf32, #tpu.memory_space<vmem>>, vector<1x8x16x8xf32>
    %14 = vector.shape_cast %13 : vector<1x8x16x8xf32> to vector<8x16x8xf32>
    %15 = vector.shape_cast %14 : vector<8x16x8xf32> to vector<128x8xf32>
    %c1_9 = arith.constant 1 : index
    %c0_10 = arith.constant 0 : index
    %c0_11 = arith.constant 0 : index
    %16 = vector.load %arg3[%c1_9, %c0_10, %c0_11] : memref<9x8x128xf32, #tpu.memory_space<vmem>>, vector<1x8x128xf32>
    %17 = vector.shape_cast %16 : vector<1x8x128xf32> to vector<8x128xf32>
    %cst_12 = arith.constant dense<0.000000e+00> : vector<128x128xf32>
    %18 = tpu.matmul %15, %17, %cst_12 {dimension_numbers = #tpu.dot_dimension_numbers<[1], [0], [0], [1], [0, 0, 1, 1], [], []>} : vector<128x8xf32>, vector<8x128xf32>, vector<128x128xf32> -> vector<128x128xf32>
    %19 = arith.addf %10, %18 : vector<128x128xf32>
    %c0_i32_13 = arith.constant 0 : i32
    %20 = arith.addi %1, %c0_i32_13 : i32
    %c0_14 = arith.constant 0 : index
    %21 = arith.index_cast %20 : i32 to index
    %c2 = arith.constant 2 : index
    %c0_15 = arith.constant 0 : index
    %22 = vector.load %arg2[%c0_14, %21, %c2, %c0_15] : memref<1x18x18x8xf32, #tpu.memory_space<vmem>>, vector<1x8x16x8xf32>
    %23 = vector.shape_cast %22 : vector<1x8x16x8xf32> to vector<8x16x8xf32>
    %24 = vector.shape_cast %23 : vector<8x16x8xf32> to vector<128x8xf32>
    %c2_16 = arith.constant 2 : index
    %c0_17 = arith.constant 0 : index
    %c0_18 = arith.constant 0 : index
    %25 = vector.load %arg3[%c2_16, %c0_17, %c0_18] : memref<9x8x128xf32, #tpu.memory_space<vmem>>, vector<1x8x128xf32>
    %26 = vector.shape_cast %25 : vector<1x8x128xf32> to vector<8x128xf32>
    %cst_19 = arith.constant dense<0.000000e+00> : vector<128x128xf32>
    %27 = tpu.matmul %24, %26, %cst_19 {dimension_numbers = #tpu.dot_dimension_numbers<[1], [0], [0], [1], [0, 0, 1, 1], [], []>} : vector<128x8xf32>, vector<8x128xf32>, vector<128x128xf32> -> vector<128x128xf32>
    %28 = arith.addf %19, %27 : vector<128x128xf32>
    %c1_i32 = arith.constant 1 : i32
    %29 = arith.addi %1, %c1_i32 : i32
    %c0_20 = arith.constant 0 : index
    %30 = arith.index_cast %29 : i32 to index
    %c0_21 = arith.constant 0 : index
    %c0_22 = arith.constant 0 : index
    %31 = vector.load %arg2[%c0_20, %30, %c0_21, %c0_22] : memref<1x18x18x8xf32, #tpu.memory_space<vmem>>, vector<1x8x16x8xf32>
    %32 = vector.shape_cast %31 : vector<1x8x16x8xf32> to vector<8x16x8xf32>
    %33 = vector.shape_cast %32 : vector<8x16x8xf32> to vector<128x8xf32>
    %c3 = arith.constant 3 : index
    %c0_23 = arith.constant 0 : index
    %c0_24 = arith.constant 0 : index
    %34 = vector.load %arg3[%c3, %c0_23, %c0_24] : memref<9x8x128xf32, #tpu.memory_space<vmem>>, vector<1x8x128xf32>
    %35 = vector.shape_cast %34 : vector<1x8x128xf32> to vector<8x128xf32>
    %cst_25 = arith.constant dense<0.000000e+00> : vector<128x128xf32>
    %36 = tpu.matmul %33, %35, %cst_25 {dimension_numbers = #tpu.dot_dimension_numbers<[1], [0], [0], [1], [0, 0, 1, 1], [], []>} : vector<128x8xf32>, vector<8x128xf32>, vector<128x128xf32> -> vector<128x128xf32>
    %37 = arith.addf %28, %36 : vector<128x128xf32>
    %c1_i32_26 = arith.constant 1 : i32
    %38 = arith.addi %1, %c1_i32_26 : i32
    %c0_27 = arith.constant 0 : index
    %39 = arith.index_cast %38 : i32 to index
    %c1_28 = arith.constant 1 : index
    %c0_29 = arith.constant 0 : index
    %40 = vector.load %arg2[%c0_27, %39, %c1_28, %c0_29] : memref<1x18x18x8xf32, #tpu.memory_space<vmem>>, vector<1x8x16x8xf32>
    %41 = vector.shape_cast %40 : vector<1x8x16x8xf32> to vector<8x16x8xf32>
    %42 = vector.shape_cast %41 : vector<8x16x8xf32> to vector<128x8xf32>
    %c4 = arith.constant 4 : index
    %c0_30 = arith.constant 0 : index
    %c0_31 = arith.constant 0 : index
    %43 = vector.load %arg3[%c4, %c0_30, %c0_31] : memref<9x8x128xf32, #tpu.memory_space<vmem>>, vector<1x8x128xf32>
    %44 = vector.shape_cast %43 : vector<1x8x128xf32> to vector<8x128xf32>
    %cst_32 = arith.constant dense<0.000000e+00> : vector<128x128xf32>
    %45 = tpu.matmul %42, %44, %cst_32 {dimension_numbers = #tpu.dot_dimension_numbers<[1], [0], [0], [1], [0, 0, 1, 1], [], []>} : vector<128x8xf32>, vector<8x128xf32>, vector<128x128xf32> -> vector<128x128xf32>
    %46 = arith.addf %37, %45 : vector<128x128xf32>
    %c1_i32_33 = arith.constant 1 : i32
    %47 = arith.addi %1, %c1_i32_33 : i32
    %c0_34 = arith.constant 0 : index
    %48 = arith.index_cast %47 : i32 to index
    %c2_35 = arith.constant 2 : index
    %c0_36 = arith.constant 0 : index
    %49 = vector.load %arg2[%c0_34, %48, %c2_35, %c0_36] : memref<1x18x18x8xf32, #tpu.memory_space<vmem>>, vector<1x8x16x8xf32>
    %50 = vector.shape_cast %49 : vector<1x8x16x8xf32> to vector<8x16x8xf32>
    %51 = vector.shape_cast %50 : vector<8x16x8xf32> to vector<128x8xf32>
    %c5 = arith.constant 5 : index
    %c0_37 = arith.constant 0 : index
    %c0_38 = arith.constant 0 : index
    %52 = vector.load %arg3[%c5, %c0_37, %c0_38] : memref<9x8x128xf32, #tpu.memory_space<vmem>>, vector<1x8x128xf32>
    %53 = vector.shape_cast %52 : vector<1x8x128xf32> to vector<8x128xf32>
    %cst_39 = arith.constant dense<0.000000e+00> : vector<128x128xf32>
    %54 = tpu.matmul %51, %53, %cst_39 {dimension_numbers = #tpu.dot_dimension_numbers<[1], [0], [0], [1], [0, 0, 1, 1], [], []>} : vector<128x8xf32>, vector<8x128xf32>, vector<128x128xf32> -> vector<128x128xf32>
    %55 = arith.addf %46, %54 : vector<128x128xf32>
    %c2_i32 = arith.constant 2 : i32
    %56 = arith.addi %1, %c2_i32 : i32
    %c0_40 = arith.constant 0 : index
    %57 = arith.index_cast %56 : i32 to index
    %c0_41 = arith.constant 0 : index
    %c0_42 = arith.constant 0 : index
    %58 = vector.load %arg2[%c0_40, %57, %c0_41, %c0_42] : memref<1x18x18x8xf32, #tpu.memory_space<vmem>>, vector<1x8x16x8xf32>
    %59 = vector.shape_cast %58 : vector<1x8x16x8xf32> to vector<8x16x8xf32>
    %60 = vector.shape_cast %59 : vector<8x16x8xf32> to vector<128x8xf32>
    %c6 = arith.constant 6 : index
    %c0_43 = arith.constant 0 : index
    %c0_44 = arith.constant 0 : index
    %61 = vector.load %arg3[%c6, %c0_43, %c0_44] : memref<9x8x128xf32, #tpu.memory_space<vmem>>, vector<1x8x128xf32>
    %62 = vector.shape_cast %61 : vector<1x8x128xf32> to vector<8x128xf32>
    %cst_45 = arith.constant dense<0.000000e+00> : vector<128x128xf32>
    %63 = tpu.matmul %60, %62, %cst_45 {dimension_numbers = #tpu.dot_dimension_numbers<[1], [0], [0], [1], [0, 0, 1, 1], [], []>} : vector<128x8xf32>, vector<8x128xf32>, vector<128x128xf32> -> vector<128x128xf32>
    %64 = arith.addf %55, %63 : vector<128x128xf32>
    %c2_i32_46 = arith.constant 2 : i32
    %65 = arith.addi %1, %c2_i32_46 : i32
    %c0_47 = arith.constant 0 : index
    %66 = arith.index_cast %65 : i32 to index
    %c1_48 = arith.constant 1 : index
    %c0_49 = arith.constant 0 : index
    %67 = vector.load %arg2[%c0_47, %66, %c1_48, %c0_49] : memref<1x18x18x8xf32, #tpu.memory_space<vmem>>, vector<1x8x16x8xf32>
    %68 = vector.shape_cast %67 : vector<1x8x16x8xf32> to vector<8x16x8xf32>
    %69 = vector.shape_cast %68 : vector<8x16x8xf32> to vector<128x8xf32>
    %c7 = arith.constant 7 : index
    %c0_50 = arith.constant 0 : index
    %c0_51 = arith.constant 0 : index
    %70 = vector.load %arg3[%c7, %c0_50, %c0_51] : memref<9x8x128xf32, #tpu.memory_space<vmem>>, vector<1x8x128xf32>
    %71 = vector.shape_cast %70 : vector<1x8x128xf32> to vector<8x128xf32>
    %cst_52 = arith.constant dense<0.000000e+00> : vector<128x128xf32>
    %72 = tpu.matmul %69, %71, %cst_52 {dimension_numbers = #tpu.dot_dimension_numbers<[1], [0], [0], [1], [0, 0, 1, 1], [], []>} : vector<128x8xf32>, vector<8x128xf32>, vector<128x128xf32> -> vector<128x128xf32>
    %73 = arith.addf %64, %72 : vector<128x128xf32>
    %c2_i32_53 = arith.constant 2 : i32
    %74 = arith.addi %1, %c2_i32_53 : i32
    %c0_54 = arith.constant 0 : index
    %75 = arith.index_cast %74 : i32 to index
    %c2_55 = arith.constant 2 : index
    %c0_56 = arith.constant 0 : index
    %76 = vector.load %arg2[%c0_54, %75, %c2_55, %c0_56] : memref<1x18x18x8xf32, #tpu.memory_space<vmem>>, vector<1x8x16x8xf32>
    %77 = vector.shape_cast %76 : vector<1x8x16x8xf32> to vector<8x16x8xf32>
    %78 = vector.shape_cast %77 : vector<8x16x8xf32> to vector<128x8xf32>
    %c8 = arith.constant 8 : index
    %c0_57 = arith.constant 0 : index
    %c0_58 = arith.constant 0 : index
    %79 = vector.load %arg3[%c8, %c0_57, %c0_58] : memref<9x8x128xf32, #tpu.memory_space<vmem>>, vector<1x8x128xf32>
    %80 = vector.shape_cast %79 : vector<1x8x128xf32> to vector<8x128xf32>
    %cst_59 = arith.constant dense<0.000000e+00> : vector<128x128xf32>
    %81 = tpu.matmul %78, %80, %cst_59 {dimension_numbers = #tpu.dot_dimension_numbers<[1], [0], [0], [1], [0, 0, 1, 1], [], []>} : vector<128x8xf32>, vector<8x128xf32>, vector<128x128xf32> -> vector<128x128xf32>
    %82 = arith.addf %73, %81 : vector<128x128xf32>
    %cst_60 = arith.constant 1.000000e+00 : f32
    %83 = vector.broadcast %cst_60 : f32 to vector<1x128xf32>
    %cst_61 = arith.constant dense<0.000000e+00> : vector<1x128xf32>
    %84 = tpu.matmul %83, %82, %cst_61 {dimension_numbers = #tpu.dot_dimension_numbers<[1], [0], [0], [1], [0, 0, 1, 1], [], []>} : vector<1x128xf32>, vector<128x128xf32>, vector<1x128xf32> -> vector<1x128xf32>
    %85 = arith.mulf %82, %82 : vector<128x128xf32>
    %cst_62 = arith.constant dense<0.000000e+00> : vector<1x128xf32>
    %86 = tpu.matmul %83, %85, %cst_62 {dimension_numbers = #tpu.dot_dimension_numbers<[1], [0], [0], [1], [0, 0, 1, 1], [], []>} : vector<1x128xf32>, vector<128x128xf32>, vector<1x128xf32> -> vector<1x128xf32>
    %87 = tpu.concatenate %84, %86 in 0 : vector<1x128xf32>, vector<1x128xf32> -> vector<2x128xf32>
    %88 = vector.shape_cast %87 : vector<2x128xf32> to vector<1x1x2x128xf32>
    %c0_63 = arith.constant 0 : index
    %c0_64 = arith.constant 0 : index
    %c0_65 = arith.constant 0 : index
    %c0_66 = arith.constant 0 : index
    %89 = vector.load %arg4[%c0_63, %c0_64, %c0_65, %c0_66] : memref<1x1x2x128xf32, #tpu.memory_space<vmem>>, vector<1x1x2x128xf32>
    tpu.vector_store %arg4[%c0_63, %c0_64, %c0_65, %c0_66], %88 {strides = array<i32>} : memref<1x1x2x128xf32, #tpu.memory_space<vmem>>, vector<1x1x2x128xf32>,
    return
  }
  func.func @transform_0(%arg0: i32, %arg1: i32) -> (i32, i32, i32, i32) {
    %c0_i32 = arith.constant 0 : i32
    %c0_i32_0 = arith.constant 0 : i32
    %c0_i32_1 = arith.constant 0 : i32
    %c0_i32_2 = arith.constant 0 : i32
    return %arg0, %c0_i32, %c0_i32_0, %c0_i32_1 : i32, i32, i32, i32
  }
  func.func @transform_1(%arg0: i32, %arg1: i32) -> (i32, i32, i32) {
    %c0_i32 = arith.constant 0 : i32
    %c0_i32_0 = arith.constant 0 : i32
    %c0_i32_1 = arith.constant 0 : i32
    %c0_i32_2 = arith.constant 0 : i32
    return %c0_i32, %c0_i32_0, %c0_i32_1 : i32, i32, i32
  }
  func.func @transform_2(%arg0: i32, %arg1: i32) -> (i32, i32, i32, i32) {
    %c0_i32 = arith.constant 0 : i32
    %c0_i32_0 = arith.constant 0 : i32
    %c0_i32_1 = arith.constant 0 : i32
    return %arg0, %arg1, %c0_i32, %c0_i32_0 : i32, i32, i32, i32
  }
}

module attributes {stable_mosaic.version = 11 : i64} {
  func.func @_conv_bn_relu_kernel(%arg0: i32, %arg1: i32, %arg2: memref<1x18x18x8xf32, #tpu.memory_space<vmem>>, %arg3: memref<9x8x128xf32, #tpu.memory_space<vmem>>, %arg4: memref<1x128xf32, #tpu.memory_space<vmem>>, %arg5: memref<1x128xf32, #tpu.memory_space<vmem>>, %arg6: memref<1x128x128xf32, #tpu.memory_space<vmem>>) attributes {dimension_semantics = [#tpu.dimension_semantics<parallel>, #tpu.dimension_semantics<parallel>], iteration_bounds = array<i64: 2, 2>, scalar_prefetch = 0 : i64, scratch_operands = 0 : i64, tpu.core_type = #tpu.core_type<tc>, window_params = [{transform_indices = @transform_0, window_bounds = array<i64: 1, 18, 18, 8>}, {pipeline_mode = #tpu.pipeline_mode<synchronous>, transform_indices = @transform_1, window_bounds = array<i64: 9, 8, 128>}, {pipeline_mode = #tpu.pipeline_mode<synchronous>, transform_indices = @transform_2, window_bounds = array<i64: 1, 128>}, {pipeline_mode = #tpu.pipeline_mode<synchronous>, transform_indices = @transform_3, window_bounds = array<i64: 1, 128>}, {transform_indices = @transform_4, window_bounds = array<i64: 1, 128, 128>}]} {
    %cst = arith.constant 0.000000e+00 : f32
    %0 = vector.broadcast %cst : f32 to vector<128x128xf32>
    %c8_i32 = arith.constant 8 : i32
    %1 = arith.muli %arg1, %c8_i32 : i32
    %c0_i32 = arith.constant 0 : i32
    %2 = arith.addi %1, %c0_i32 : i32
    %c0 = arith.constant 0 : index
    %3 = arith.index_cast %2 : i32 to index
    %c0_0 = arith.constant 0 : index
    %c0_1 = arith.constant 0 : index
    %4 = vector.load %arg2[%c0, %3, %c0_0, %c0_1] : memref<1x18x18x8xf32, #tpu.memory_space<vmem>>, vector<1x8x16x8xf32>
    %5 = vector.shape_cast %4 : vector<1x8x16x8xf32> to vector<8x16x8xf32>
    %6 = vector.shape_cast %5 : vector<8x16x8xf32> to vector<128x8xf32>
    %c0_2 = arith.constant 0 : index
    %c0_3 = arith.constant 0 : index
    %c0_4 = arith.constant 0 : index
    %7 = vector.load %arg3[%c0_2, %c0_3, %c0_4] : memref<9x8x128xf32, #tpu.memory_space<vmem>>, vector<1x8x128xf32>
    %8 = vector.shape_cast %7 : vector<1x8x128xf32> to vector<8x128xf32>
    %cst_5 = arith.constant dense<0.000000e+00> : vector<128x128xf32>
    %9 = tpu.matmul %6, %8, %cst_5 {dimension_numbers = #tpu.dot_dimension_numbers<[1], [0], [0], [1], [0, 0, 1, 1], [], []>} : vector<128x8xf32>, vector<8x128xf32>, vector<128x128xf32> -> vector<128x128xf32>
    %10 = arith.addf %0, %9 : vector<128x128xf32>
    %c0_i32_6 = arith.constant 0 : i32
    %11 = arith.addi %1, %c0_i32_6 : i32
    %c0_7 = arith.constant 0 : index
    %12 = arith.index_cast %11 : i32 to index
    %c1 = arith.constant 1 : index
    %c0_8 = arith.constant 0 : index
    %13 = vector.load %arg2[%c0_7, %12, %c1, %c0_8] : memref<1x18x18x8xf32, #tpu.memory_space<vmem>>, vector<1x8x16x8xf32>
    %14 = vector.shape_cast %13 : vector<1x8x16x8xf32> to vector<8x16x8xf32>
    %15 = vector.shape_cast %14 : vector<8x16x8xf32> to vector<128x8xf32>
    %c1_9 = arith.constant 1 : index
    %c0_10 = arith.constant 0 : index
    %c0_11 = arith.constant 0 : index
    %16 = vector.load %arg3[%c1_9, %c0_10, %c0_11] : memref<9x8x128xf32, #tpu.memory_space<vmem>>, vector<1x8x128xf32>
    %17 = vector.shape_cast %16 : vector<1x8x128xf32> to vector<8x128xf32>
    %cst_12 = arith.constant dense<0.000000e+00> : vector<128x128xf32>
    %18 = tpu.matmul %15, %17, %cst_12 {dimension_numbers = #tpu.dot_dimension_numbers<[1], [0], [0], [1], [0, 0, 1, 1], [], []>} : vector<128x8xf32>, vector<8x128xf32>, vector<128x128xf32> -> vector<128x128xf32>
    %19 = arith.addf %10, %18 : vector<128x128xf32>
    %c0_i32_13 = arith.constant 0 : i32
    %20 = arith.addi %1, %c0_i32_13 : i32
    %c0_14 = arith.constant 0 : index
    %21 = arith.index_cast %20 : i32 to index
    %c2 = arith.constant 2 : index
    %c0_15 = arith.constant 0 : index
    %22 = vector.load %arg2[%c0_14, %21, %c2, %c0_15] : memref<1x18x18x8xf32, #tpu.memory_space<vmem>>, vector<1x8x16x8xf32>
    %23 = vector.shape_cast %22 : vector<1x8x16x8xf32> to vector<8x16x8xf32>
    %24 = vector.shape_cast %23 : vector<8x16x8xf32> to vector<128x8xf32>
    %c2_16 = arith.constant 2 : index
    %c0_17 = arith.constant 0 : index
    %c0_18 = arith.constant 0 : index
    %25 = vector.load %arg3[%c2_16, %c0_17, %c0_18] : memref<9x8x128xf32, #tpu.memory_space<vmem>>, vector<1x8x128xf32>
    %26 = vector.shape_cast %25 : vector<1x8x128xf32> to vector<8x128xf32>
    %cst_19 = arith.constant dense<0.000000e+00> : vector<128x128xf32>
    %27 = tpu.matmul %24, %26, %cst_19 {dimension_numbers = #tpu.dot_dimension_numbers<[1], [0], [0], [1], [0, 0, 1, 1], [], []>} : vector<128x8xf32>, vector<8x128xf32>, vector<128x128xf32> -> vector<128x128xf32>
    %28 = arith.addf %19, %27 : vector<128x128xf32>
    %c1_i32 = arith.constant 1 : i32
    %29 = arith.addi %1, %c1_i32 : i32
    %c0_20 = arith.constant 0 : index
    %30 = arith.index_cast %29 : i32 to index
    %c0_21 = arith.constant 0 : index
    %c0_22 = arith.constant 0 : index
    %31 = vector.load %arg2[%c0_20, %30, %c0_21, %c0_22] : memref<1x18x18x8xf32, #tpu.memory_space<vmem>>, vector<1x8x16x8xf32>
    %32 = vector.shape_cast %31 : vector<1x8x16x8xf32> to vector<8x16x8xf32>
    %33 = vector.shape_cast %32 : vector<8x16x8xf32> to vector<128x8xf32>
    %c3 = arith.constant 3 : index
    %c0_23 = arith.constant 0 : index
    %c0_24 = arith.constant 0 : index
    %34 = vector.load %arg3[%c3, %c0_23, %c0_24] : memref<9x8x128xf32, #tpu.memory_space<vmem>>, vector<1x8x128xf32>
    %35 = vector.shape_cast %34 : vector<1x8x128xf32> to vector<8x128xf32>
    %cst_25 = arith.constant dense<0.000000e+00> : vector<128x128xf32>
    %36 = tpu.matmul %33, %35, %cst_25 {dimension_numbers = #tpu.dot_dimension_numbers<[1], [0], [0], [1], [0, 0, 1, 1], [], []>} : vector<128x8xf32>, vector<8x128xf32>, vector<128x128xf32> -> vector<128x128xf32>
    %37 = arith.addf %28, %36 : vector<128x128xf32>
    %c1_i32_26 = arith.constant 1 : i32
    %38 = arith.addi %1, %c1_i32_26 : i32
    %c0_27 = arith.constant 0 : index
    %39 = arith.index_cast %38 : i32 to index
    %c1_28 = arith.constant 1 : index
    %c0_29 = arith.constant 0 : index
    %40 = vector.load %arg2[%c0_27, %39, %c1_28, %c0_29] : memref<1x18x18x8xf32, #tpu.memory_space<vmem>>, vector<1x8x16x8xf32>
    %41 = vector.shape_cast %40 : vector<1x8x16x8xf32> to vector<8x16x8xf32>
    %42 = vector.shape_cast %41 : vector<8x16x8xf32> to vector<128x8xf32>
    %c4 = arith.constant 4 : index
    %c0_30 = arith.constant 0 : index
    %c0_31 = arith.constant 0 : index
    %43 = vector.load %arg3[%c4, %c0_30, %c0_31] : memref<9x8x128xf32, #tpu.memory_space<vmem>>, vector<1x8x128xf32>
    %44 = vector.shape_cast %43 : vector<1x8x128xf32> to vector<8x128xf32>
    %cst_32 = arith.constant dense<0.000000e+00> : vector<128x128xf32>
    %45 = tpu.matmul %42, %44, %cst_32 {dimension_numbers = #tpu.dot_dimension_numbers<[1], [0], [0], [1], [0, 0, 1, 1], [], []>} : vector<128x8xf32>, vector<8x128xf32>, vector<128x128xf32> -> vector<128x128xf32>
    %46 = arith.addf %37, %45 : vector<128x128xf32>
    %c1_i32_33 = arith.constant 1 : i32
    %47 = arith.addi %1, %c1_i32_33 : i32
    %c0_34 = arith.constant 0 : index
    %48 = arith.index_cast %47 : i32 to index
    %c2_35 = arith.constant 2 : index
    %c0_36 = arith.constant 0 : index
    %49 = vector.load %arg2[%c0_34, %48, %c2_35, %c0_36] : memref<1x18x18x8xf32, #tpu.memory_space<vmem>>, vector<1x8x16x8xf32>
    %50 = vector.shape_cast %49 : vector<1x8x16x8xf32> to vector<8x16x8xf32>
    %51 = vector.shape_cast %50 : vector<8x16x8xf32> to vector<128x8xf32>
    %c5 = arith.constant 5 : index
    %c0_37 = arith.constant 0 : index
    %c0_38 = arith.constant 0 : index
    %52 = vector.load %arg3[%c5, %c0_37, %c0_38] : memref<9x8x128xf32, #tpu.memory_space<vmem>>, vector<1x8x128xf32>
    %53 = vector.shape_cast %52 : vector<1x8x128xf32> to vector<8x128xf32>
    %cst_39 = arith.constant dense<0.000000e+00> : vector<128x128xf32>
    %54 = tpu.matmul %51, %53, %cst_39 {dimension_numbers = #tpu.dot_dimension_numbers<[1], [0], [0], [1], [0, 0, 1, 1], [], []>} : vector<128x8xf32>, vector<8x128xf32>, vector<128x128xf32> -> vector<128x128xf32>
    %55 = arith.addf %46, %54 : vector<128x128xf32>
    %c2_i32 = arith.constant 2 : i32
    %56 = arith.addi %1, %c2_i32 : i32
    %c0_40 = arith.constant 0 : index
    %57 = arith.index_cast %56 : i32 to index
    %c0_41 = arith.constant 0 : index
    %c0_42 = arith.constant 0 : index
    %58 = vector.load %arg2[%c0_40, %57, %c0_41, %c0_42] : memref<1x18x18x8xf32, #tpu.memory_space<vmem>>, vector<1x8x16x8xf32>
    %59 = vector.shape_cast %58 : vector<1x8x16x8xf32> to vector<8x16x8xf32>
    %60 = vector.shape_cast %59 : vector<8x16x8xf32> to vector<128x8xf32>
    %c6 = arith.constant 6 : index
    %c0_43 = arith.constant 0 : index
    %c0_44 = arith.constant 0 : index
    %61 = vector.load %arg3[%c6, %c0_43, %c0_44] : memref<9x8x128xf32, #tpu.memory_space<vmem>>, vector<1x8x128xf32>
    %62 = vector.shape_cast %61 : vector<1x8x128xf32> to vector<8x128xf32>
    %cst_45 = arith.constant dense<0.000000e+00> : vector<128x128xf32>
    %63 = tpu.matmul %60, %62, %cst_45 {dimension_numbers = #tpu.dot_dimension_numbers<[1], [0], [0], [1], [0, 0, 1, 1], [], []>} : vector<128x8xf32>, vector<8x128xf32>, vector<128x128xf32> -> vector<128x128xf32>
    %64 = arith.addf %55, %63 : vector<128x128xf32>
    %c2_i32_46 = arith.constant 2 : i32
    %65 = arith.addi %1, %c2_i32_46 : i32
    %c0_47 = arith.constant 0 : index
    %66 = arith.index_cast %65 : i32 to index
    %c1_48 = arith.constant 1 : index
    %c0_49 = arith.constant 0 : index
    %67 = vector.load %arg2[%c0_47, %66, %c1_48, %c0_49] : memref<1x18x18x8xf32, #tpu.memory_space<vmem>>, vector<1x8x16x8xf32>
    %68 = vector.shape_cast %67 : vector<1x8x16x8xf32> to vector<8x16x8xf32>
    %69 = vector.shape_cast %68 : vector<8x16x8xf32> to vector<128x8xf32>
    %c7 = arith.constant 7 : index
    %c0_50 = arith.constant 0 : index
    %c0_51 = arith.constant 0 : index
    %70 = vector.load %arg3[%c7, %c0_50, %c0_51] : memref<9x8x128xf32, #tpu.memory_space<vmem>>, vector<1x8x128xf32>
    %71 = vector.shape_cast %70 : vector<1x8x128xf32> to vector<8x128xf32>
    %cst_52 = arith.constant dense<0.000000e+00> : vector<128x128xf32>
    %72 = tpu.matmul %69, %71, %cst_52 {dimension_numbers = #tpu.dot_dimension_numbers<[1], [0], [0], [1], [0, 0, 1, 1], [], []>} : vector<128x8xf32>, vector<8x128xf32>, vector<128x128xf32> -> vector<128x128xf32>
    %73 = arith.addf %64, %72 : vector<128x128xf32>
    %c2_i32_53 = arith.constant 2 : i32
    %74 = arith.addi %1, %c2_i32_53 : i32
    %c0_54 = arith.constant 0 : index
    %75 = arith.index_cast %74 : i32 to index
    %c2_55 = arith.constant 2 : index
    %c0_56 = arith.constant 0 : index
    %76 = vector.load %arg2[%c0_54, %75, %c2_55, %c0_56] : memref<1x18x18x8xf32, #tpu.memory_space<vmem>>, vector<1x8x16x8xf32>
    %77 = vector.shape_cast %76 : vector<1x8x16x8xf32> to vector<8x16x8xf32>
    %78 = vector.shape_cast %77 : vector<8x16x8xf32> to vector<128x8xf32>
    %c8 = arith.constant 8 : index
    %c0_57 = arith.constant 0 : index
    %c0_58 = arith.constant 0 : index
    %79 = vector.load %arg3[%c8, %c0_57, %c0_58] : memref<9x8x128xf32, #tpu.memory_space<vmem>>, vector<1x8x128xf32>
    %80 = vector.shape_cast %79 : vector<1x8x128xf32> to vector<8x128xf32>
    %cst_59 = arith.constant dense<0.000000e+00> : vector<128x128xf32>
    %81 = tpu.matmul %78, %80, %cst_59 {dimension_numbers = #tpu.dot_dimension_numbers<[1], [0], [0], [1], [0, 0, 1, 1], [], []>} : vector<128x8xf32>, vector<8x128xf32>, vector<128x128xf32> -> vector<128x128xf32>
    %82 = arith.addf %73, %81 : vector<128x128xf32>
    %c0_60 = arith.constant 0 : index
    %c0_61 = arith.constant 0 : index
    %83 = vector.load %arg4[%c0_60, %c0_61] : memref<1x128xf32, #tpu.memory_space<vmem>>, vector<1x128xf32>
    %84 = vector.broadcast %83 : vector<1x128xf32> to vector<128x128xf32>
    %85 = arith.mulf %82, %84 : vector<128x128xf32>
    %c0_62 = arith.constant 0 : index
    %c0_63 = arith.constant 0 : index
    %86 = vector.load %arg5[%c0_62, %c0_63] : memref<1x128xf32, #tpu.memory_space<vmem>>, vector<1x128xf32>
    %87 = vector.broadcast %86 : vector<1x128xf32> to vector<128x128xf32>
    %88 = arith.addf %85, %87 : vector<128x128xf32>
    %cst_64 = arith.constant 0.000000e+00 : f32
    %89 = vector.broadcast %cst_64 : f32 to vector<128x128xf32>
    %90 = arith.maximumf %88, %89 : vector<128x128xf32>
    %91 = vector.shape_cast %90 : vector<128x128xf32> to vector<1x128x128xf32>
    %c0_65 = arith.constant 0 : index
    %c0_66 = arith.constant 0 : index
    %c0_67 = arith.constant 0 : index
    %92 = vector.load %arg6[%c0_65, %c0_66, %c0_67] : memref<1x128x128xf32, #tpu.memory_space<vmem>>, vector<1x128x128xf32>
    tpu.vector_store %arg6[%c0_65, %c0_66, %c0_67], %91 {strides = array<i32>} : memref<1x128x128xf32, #tpu.memory_space<vmem>>, vector<1x128x128xf32>,
    return
  }
  func.func @transform_0(%arg0: i32, %arg1: i32) -> (i32, i32, i32, i32) {
    %c0_i32 = arith.constant 0 : i32
    %c0_i32_0 = arith.constant 0 : i32
    %c0_i32_1 = arith.constant 0 : i32
    %c0_i32_2 = arith.constant 0 : i32
    return %arg0, %c0_i32, %c0_i32_0, %c0_i32_1 : i32, i32, i32, i32
  }
  func.func @transform_1(%arg0: i32, %arg1: i32) -> (i32, i32, i32) {
    %c0_i32 = arith.constant 0 : i32
    %c0_i32_0 = arith.constant 0 : i32
    %c0_i32_1 = arith.constant 0 : i32
    %c0_i32_2 = arith.constant 0 : i32
    return %c0_i32, %c0_i32_0, %c0_i32_1 : i32, i32, i32
  }
  func.func @transform_2(%arg0: i32, %arg1: i32) -> (i32, i32) {
    %c0_i32 = arith.constant 0 : i32
    %c0_i32_0 = arith.constant 0 : i32
    %c0_i32_1 = arith.constant 0 : i32
    return %c0_i32, %c0_i32_0 : i32, i32
  }
  func.func @transform_3(%arg0: i32, %arg1: i32) -> (i32, i32) {
    %c0_i32 = arith.constant 0 : i32
    %c0_i32_0 = arith.constant 0 : i32
    %c0_i32_1 = arith.constant 0 : i32
    return %c0_i32, %c0_i32_0 : i32, i32
  }
  func.func @transform_4(%arg0: i32, %arg1: i32) -> (i32, i32, i32) {
    %c0_i32 = arith.constant 0 : i32
    %c0_i32_0 = arith.constant 0 : i32
    return %arg0, %arg1, %c0_i32 : i32, i32, i32
  }
}

</mosaic_0001>

<llo_original>
// kernel: basic_conv.2
$region0: #{basic_conv.2}
  #allocation0 [shape = 'u32[]', space=smem, size = 0x4, offset = 0x4, fixed_abs, tag = 'smem constant byte address 0x4 - core index']
  #allocation1 [shape = 'u32[72,128]{1,0:T(1,128)}', space=vmem, size = 0x9000, scoped, tag = 'internal scratch']
  %s0 = inlined_call_operand.vmem [shape: f32[2,18,18,8], index: 0, kind: input, shape index: {}]
  %s1 = inlined_call_operand.vmem [shape: f32[9,8,128], index: 1, kind: input, shape index: {}]
  %s2 = inlined_call_operand.vmem [shape: f32[2,2,2,128], index: 2, kind: output, shape index: {}]
  %s3 = sld [smem:[#allocation0]]
  $region41: #{basic_conv.2} parent=0
    _
  %s5 = ssub.s32 1, %s3
  %s6 = scalar_select 0, %s5, %s3
  loop: start=0, step=1, limit=6
  $region2: #{basic_conv.2} parent=0 // loop_pre_header
    _
  $region3: #{basic_conv.2} parent=0 // loop_header
    %s8 = sphi 0, %s12
    %p9 = scmp.ge.s32.totalorder %s8, 6
    %s15 = sphi 0, %s27
    %s16 = sphi 0, %s23
    %s17 = sphi 0, %s15
    %s18 = sphi 0, %s16
    %s19 = sphi 0, %s17
    %s20 = sphi 0, %s18
    %s30 = sphi 0, %s32
    %s33 = sphi 0, %s30
    %s34 = sphi 0, %s33
    %s50 = sphi 0, %s34
    %s54 = sphi 0, %s54
    %s56 = sphi 0, %s54
    %s57 = sphi 0, %s56
    %s71 = sphi 0, %s57
    %s79 = sphi 0, %s81
    %s82 = sphi 0, %s79
    %s83 = sphi 0, %s82
    %s99 = sphi 0, %s83
  $region4: #{basic_conv.2} parent=0 // loop_header_branch
    %11 = sbr.rel (%p9) target = $region8
  $region5: #{basic_conv.2} parent=0 // loop_body
    %s13 = ssub.s32 %s8, 1
    %s14 = ssub.s32 %s8, 2
    %s21 = sadd.s32 1, %s16
    %p22 = scmp.ge.s32.totalorder %s21, 2
    %s23 = scalar_select %p22, 0, %s21
    %s24 = sadd.s32 1, %s15
    %s25 = scalar_select %p22, %s24, %s15
    %p26 = scmp.ge.s32.totalorder %s25, 2
    %s27 = scalar_select %p26, 0, %s25
    %s28 = ssub.s32 %s15, %s27
    %p29 = scmp.eq.s32.totalorder %s28, 0
    %s31 = sadd.s32 %s30, 1
    %s32 = scalar_select %p29, %s30, %s31
    %p35 = pneg %p29
    %p36 = scmp.eq.s32.totalorder %s8, 3
    %p37 = por %p35, %p36
    %p38 = scmp.ne.s32.totalorder %s30, %s33
    %p39 = scmp.eq.s32.totalorder %s8, 0
    %p40 = por %p38, %p39
    %p41 = scmp.ne.s32.totalorder %s30, %s33
    %p42 = scmp.eq.s32.totalorder %s13, 3
    %p43 = por %p41, %p42
    %p44 = scmp.ne.s32.totalorder %s33, %s34
    %p45 = scmp.eq.s32.totalorder %s13, 0
    %p46 = por %p44, %p45
    %p47 = scmp.ne.s32.totalorder %s33, %s34
    %p48 = scmp.eq.s32.totalorder %s14, 3
    %p49 = por %p47, %p48
    %p51 = scmp.ne.s32.totalorder %s34, %s50
    %p52 = scmp.eq.s32.totalorder %s14, 0
    %p53 = por %p51, %p52
    %s55 = sadd.s32 %s54, 1
    %p58 = scmp.eq.s32.totalorder %s8, 3
    %p59 = scmp.ne.s32.totalorder %s54, %s56
    %p60 = scmp.eq.s32.totalorder %s8, 0
    %p61 = por %p59, %p60
    %p62 = scmp.ne.s32.totalorder %s54, %s56
    %p63 = scmp.eq.s32.totalorder %s13, 3
    %p64 = por %p62, %p63
    %p65 = scmp.ne.s32.totalorder %s56, %s57
    %p66 = scmp.eq.s32.totalorder %s13, 0
    %p67 = por %p65, %p66
    %p68 = scmp.ne.s32.totalorder %s56, %s57
    %p69 = scmp.eq.s32.totalorder %s14, 3
    %p70 = por %p68, %p69
    %p72 = scmp.ne.s32.totalorder %s57, %s71
    %p73 = scmp.eq.s32.totalorder %s14, 0
    %p74 = por %p72, %p73
    %s75 = ssub.s32 %s15, %s27
    %s76 = ssub.s32 %s16, %s23
    %s77 = sor.u32 %s75, %s76
    %p78 = scmp.eq.s32.totalorder %s77, 0
    %s80 = sadd.s32 %s79, 1
    %s81 = scalar_select %p78, %s79, %s80
    %p84 = pneg %p78
    %p85 = scmp.eq.s32.totalorder %s8, 3
    %p86 = por %p84, %p85
    %p87 = scmp.ne.s32.totalorder %s79, %s82
    %p88 = scmp.eq.s32.totalorder %s8, 0
    %p89 = por %p87, %p88
    %p90 = scmp.ne.s32.totalorder %s79, %s82
    %p91 = scmp.eq.s32.totalorder %s13, 3
    %p92 = por %p90, %p91
    %p93 = scmp.ne.s32.totalorder %s82, %s83
    %p94 = scmp.eq.s32.totalorder %s13, 0
    %p95 = por %p93, %p94
    %p96 = scmp.ne.s32.totalorder %s82, %s83
    %p97 = scmp.eq.s32.totalorder %s14, 3
    %p98 = por %p96, %p97
    %p100 = scmp.ne.s32.totalorder %s83, %s99
    %p101 = scmp.eq.s32.totalorder %s14, 0
    %p102 = por %p100, %p101
    %p103 = scmp.le.s32.totalorder 1, %s8
    %p104 = scmp.lt.s32.totalorder %s8, 5
    %p105 = pnand %p103, %p104
    %p106 = pneg %p105
    // Predicated region
    $region9: #{basic_conv.2} parent=5 // pred_check
      _
    $region10: #{basic_conv.2} parent=5 // pred_check_branch
      %108 = sbr.rel (%p105) target = $region12
    $region11: #{basic_conv.2} parent=5 // pred_region
      %s109 = ssub.s32 %s8, 1
      // Predicated region
      $region13: #{basic_conv.2} parent=11 // pred_check
        %p110 = pneg %p67
      $region14: #{basic_conv.2} parent=11 // pred_check_branch
        %112 = sbr.rel (%p110) target = $region16
      $region15: #{basic_conv.2} parent=11 // pred_region
        _
      $region16: #{basic_conv.2} parent=11 // pred_fallthru
        _
    $region12: #{basic_conv.2} parent=5 // pred_fallthru
      _
    %p113 = scmp.lt.s32.totalorder %s8, 4
    // Predicated region
    $region17: #{basic_conv.2} parent=5 // pred_check
      %p114 = pneg %p113
    $region18: #{basic_conv.2} parent=5 // pred_check_branch
      %116 = sbr.rel (%p114) target = $region20
    $region19: #{basic_conv.2} parent=5 // pred_region
      // Predicated region
      $region21: #{basic_conv.2} parent=19 // pred_check
        %p117 = pneg %p40
      $region22: #{basic_conv.2} parent=19 // pred_check_branch
        %119 = sbr.rel (%p117) target = $region24
      $region23: #{basic_conv.2} parent=19 // pred_region
        %p120 = scmp.lt.s32.totalorder %s15, 1
        %s121 = scalar_select %p120, %s15, 1
        %s122 = smul.addr %s121, 54
        %s123 = smul.addr %s122, 8
        %s124 = scalar_lea.vmem %s0, %s123
      $region24: #{basic_conv.2} parent=19 // pred_fallthru
        _
    $region20: #{basic_conv.2} parent=5 // pred_fallthru
      _
    %p125 = scmp.le.s32.totalorder 1, %s8
    %p126 = scmp.lt.s32.totalorder %s8, 5
    %p127 = pnand %p125, %p126
    %p128 = pneg %p127
    // Predicated region
    $region25: #{basic_conv.2} parent=5 // pred_check
      _
    $region26: #{basic_conv.2} parent=5 // pred_check_branch
      %130 = sbr.rel (%p127) target = $region28
    $region27: #{basic_conv.2} parent=5 // pred_region
      %s131 = ssub.s32 %s8, 1
      %p132 = scmp.lt.s32.totalorder %s17, 1
      %s133 = scalar_select %p132, %s17, 1
      %s134 = smul.addr %s133, 54
      %s135 = smul.addr %s134, 8
      %s136 = scalar_lea.vmem %s0, %s135
      %p137 = pneg %p46
      %p138 = pneg %p43
      %p139 = pneg %p67
      %p140 = pneg %p64
      %p141 = pneg %p95
      %p142 = pneg %p92
      %p143 = scmp.lt.s32.totalorder %s17, 1
      %s144 = scalar_select %p143, %s17, 1
      %p145 = scmp.lt.s32.totalorder %s18, 1
      %s146 = scalar_select %p145, %s18, 1
      %s147 = smul.addr %s144, 2
      %s148 = sadd.s32 %s146, %s147
      %s149 = smul.addr %s148, 2
      %s150 = scalar_lea.vmem %s2, %s149
      %p151 = scmp.lt.s32.totalorder %s17, 1
      %s152 = scalar_select %p151, %s17, 1
      %s153 = smul.addr %s152, 54
      %s154 = smul.addr %s153, 8
      %s155 = scalar_lea.vmem %s0, %s154
      %p156 = scmp.lt.s32.totalorder %s17, 1
      %s157 = scalar_select %p156, %s17, 1
      %p158 = scmp.lt.s32.totalorder %s18, 1
      %s159 = scalar_select %p158, %s18, 1
      %s160 = smul.addr %s157, 2
      %s161 = sadd.s32 %s159, %s160
      %s162 = smul.addr %s161, 2
      %s163 = scalar_lea.vmem %s2, %s162
      %s164 = smul.u32 %s18, 8
      %s165 = smul.u32 %s164, 24
      %s166 = scalar_lea.vmem %s155, %s165
      %v167 = vld [vmem:[%s166] sm:$0xff]
      %v168 = vld [vmem:[%s166 + $0x8] sm:$0xff]
      %v169 = vld [vmem:[%s166 + $0x18] sm:$0xff]
      %v170 = vld [vmem:[%s166 + $0x20] sm:$0xff]
      %v171 = vld [vmem:[%s166 + $0x30] sm:$0xff]
      %v172 = vld [vmem:[%s166 + $0x38] sm:$0xff]
      %v173 = vld [vmem:[%s166 + $0x48] sm:$0xff]
      %v174 = vld [vmem:[%s166 + $0x50] sm:$0xff]
      %v175 = vld [vmem:[%s166 + $0x60] sm:$0xff]
      %v176 = vld [vmem:[%s166 + $0x68] sm:$0xff]
      %v177 = vld [vmem:[%s166 + $0x78] sm:$0xff]
      %v178 = vld [vmem:[%s166 + $0x80] sm:$0xff]
      %v179 = vld [vmem:[%s166 + $0x90] sm:$0xff]
      %v180 = vld [vmem:[%s166 + $0x98] sm:$0xff]
      %v181 = vld [vmem:[%s166 + $0xa8] sm:$0xff]
      %v182 = vld [vmem:[%s166 + $0xb0] sm:$0xff]
      %v183 = vld [vmem:[%s1] sm:$0xff]
      %v184 = vld [vmem:[%s166 + $0x1] sm:$0xff]
      %v185 = vld [vmem:[%s166 + $0x9] sm:$0xff]
      %v186 = vld [vmem:[%s166 + $0x19] sm:$0xff]
      %v187 = vld [vmem:[%s166 + $0x21] sm:$0xff]
      %v188 = vld [vmem:[%s166 + $0x31] sm:$0xff]
      %v189 = vld [vmem:[%s166 + $0x39] sm:$0xff]
      %v190 = vld [vmem:[%s166 + $0x49] sm:$0xff]
      %v191 = vld [vmem:[%s166 + $0x51] sm:$0xff]
      %v192 = vld [vmem:[%s166 + $0x61] sm:$0xff]
      %v193 = vld [vmem:[%s166 + $0x69] sm:$0xff]
      %v194 = vld [vmem:[%s166 + $0x79] sm:$0xff]
      %v195 = vld [vmem:[%s166 + $0x81] sm:$0xff]
      %v196 = vld [vmem:[%s166 + $0x91] sm:$0xff]
      %v197 = vld [vmem:[%s166 + $0x99] sm:$0xff]
      %v198 = vld [vmem:[%s166 + $0xa9] sm:$0xff]
      %v199 = vld [vmem:[%s166 + $0xb1] sm:$0xff]
      %s200 = scalar_lea.vmem %s1, 8
      %v201 = vld [vmem:[%s200] sm:$0xff]
      %vm202 = vcmask 64512
      %v204 = vsel %vm202, %v184, 0
      %v207 = vsel %vm202, %v185, 0
      %v210 = vsel %vm202, %v186, 0
      %v213 = vsel %vm202, %v187, 0
      %v216 = vsel %vm202, %v188, 0
      %v219 = vsel %vm202, %v189, 0
      %v222 = vsel %vm202, %v190, 0
      %v225 = vsel %vm202, %v191, 0
      %v228 = vsel %vm202, %v192, 0
      %v231 = vsel %vm202, %v193, 0
      %v234 = vsel %vm202, %v194, 0
      %v237 = vsel %vm202, %v195, 0
      %v240 = vsel %vm202, %v196, 0
      %v243 = vsel %vm202, %v197, 0
      %v246 = vsel %vm202, %v198, 0
      %v249 = vsel %vm202, %v199, 0
      %251 = vmatpush.msra.mxu0 0.0
      %252 = vmatpush.msra.mxu0 0.0
      %253 = vmatpush.msra.mxu0 0.0
      %254 = vmatpush.msra.mxu0 0.0
      %255 = vmatpush.msra.mxu0 0.0
      %256 = vmatpush.msra.mxu0 0.0
      %257 = vmatpush.msra.mxu0 0.0
      %258 = vmatpush.msra.mxu0 0.0
      %259 = vmatpush.msra.mxu0 0.0
      %260 = vmatpush.msra.mxu0 0.0
      %261 = vmatpush.msra.mxu0 0.0
      %262 = vmatpush.msra.mxu0 0.0
      %263 = vmatpush.msra.mxu0 0.0
      %264 = vmatpush.msra.mxu0 0.0
      %265 = vmatpush.msra.mxu0 0.0
      %266 = vmatpush.msra.mxu0 %v201
      %267 = vmatmul.f32.gmra.mxu0 %v204
      %v268 = vpop.f32.mrf.mxu0
      %v269 = vadd.f32 0.0, %v268
      %270 = vmatmul.f32.gmra.mxu0 %v207
      %v271 = vpop.f32.mrf.mxu0
      %v272 = vadd.f32 0.0, %v271
      %273 = vmatmul.f32.gmra.mxu0 %v210
      %v274 = vpop.f32.mrf.mxu0
      %v275 = vadd.f32 0.0, %v274
      %276 = vmatmul.f32.gmra.mxu0 %v213
      %v277 = vpop.f32.mrf.mxu0
      %v278 = vadd.f32 0.0, %v277
      %279 = vmatmul.f32.gmra.mxu0 %v216
      %v280 = vpop.f32.mrf.mxu0
      %v281 = vadd.f32 0.0, %v280
      %282 = vmatmul.f32.gmra.mxu0 %v219
      %v283 = vpop.f32.mrf.mxu0
      %v284 = vadd.f32 0.0, %v283
      %285 = vmatmul.f32.gmra.mxu0 %v222
      %v286 = vpop.f32.mrf.mxu0
      %v287 = vadd.f32 0.0, %v286
      %288 = vmatmul.f32.gmra.mxu0 %v225
      %v289 = vpop.f32.mrf.mxu0
      %v290 = vadd.f32 0.0, %v289
      %291 = vmatmul.f32.gmra.mxu0 %v228
      %v292 = vpop.f32.mrf.mxu0
      %v293 = vadd.f32 0.0, %v292
      %294 = vmatmul.f32.gmra.mxu0 %v231
      %v295 = vpop.f32.mrf.mxu0
      %v296 = vadd.f32 0.0, %v295
      %297 = vmatmul.f32.gmra.mxu0 %v234
      %v298 = vpop.f32.mrf.mxu0
      %v299 = vadd.f32 0.0, %v298
      %300 = vmatmul.f32.gmra.mxu0 %v237
      %v301 = vpop.f32.mrf.mxu0
      %v302 = vadd.f32 0.0, %v301
      %303 = vmatmul.f32.gmra.mxu0 %v240
      %v304 = vpop.f32.mrf.mxu0
      %v305 = vadd.f32 0.0, %v304
      %306 = vmatmul.f32.gmra.mxu0 %v243
      %v307 = vpop.f32.mrf.mxu0
      %v308 = vadd.f32 0.0, %v307
      %309 = vmatmul.f32.gmra.mxu0 %v246
      %v310 = vpop.f32.mrf.mxu0
      %v311 = vadd.f32 0.0, %v310
      %312 = vmatmul.f32.gmra.mxu0 %v249
      %v313 = vpop.f32.mrf.mxu0
      %v314 = vadd.f32 0.0, %v313
      %315 = vdwg.mxu0
      %v317 = vsel %vm202, %v167, 0
      %v320 = vsel %vm202, %v168, 0
      %v323 = vsel %vm202, %v169, 0
      %v326 = vsel %vm202, %v170, 0
      %v329 = vsel %vm202, %v171, 0
      %v332 = vsel %vm202, %v172, 0
      %v335 = vsel %vm202, %v173, 0
      %v338 = vsel %vm202, %v174, 0
      %v341 = vsel %vm202, %v175, 0
      %v344 = vsel %vm202, %v176, 0
      %v347 = vsel %vm202, %v177, 0
      %v350 = vsel %vm202, %v178, 0
      %v353 = vsel %vm202, %v179, 0
      %v356 = vsel %vm202, %v180, 0
      %v359 = vsel %vm202, %v181, 0
      %v362 = vsel %vm202, %v182, 0
      %364 = vmatpush.msra.mxu0 0.0
      %365 = vmatpush.msra.mxu0 0.0
      %366 = vmatpush.msra.mxu0 0.0
      %367 = vmatpush.msra.mxu0 0.0
      %368 = vmatpush.msra.mxu0 0.0
      %369 = vmatpush.msra.mxu0 0.0
      %370 = vmatpush.msra.mxu0 0.0
      %371 = vmatpush.msra.mxu0 0.0
      %372 = vmatpush.msra.mxu0 0.0
      %373 = vmatpush.msra.mxu0 0.0
      %374 = vmatpush.msra.mxu0 0.0
      %375 = vmatpush.msra.mxu0 0.0
      %376 = vmatpush.msra.mxu0 0.0
      %377 = vmatpush.msra.mxu0 0.0
      %378 = vmatpush.msra.mxu0 0.0
      %379 = vmatpush.msra.mxu0 %v183
      %380 = vmatmul.f32.gmra.mxu0 %v317
      %v381 = vpop.f32.mrf.mxu0
      %v382 = vadd.f32 %v269, %v381
      %383 = vmatmul.f32.gmra.mxu0 %v320
      %v384 = vpop.f32.mrf.mxu0
      %v385 = vadd.f32 %v272, %v384
      %386 = vmatmul.f32.gmra.mxu0 %v323
      %v387 = vpop.f32.mrf.mxu0
      %v388 = vadd.f32 %v275, %v387
      %389 = vmatmul.f32.gmra.mxu0 %v326
      %v390 = vpop.f32.mrf.mxu0
      %v391 = vadd.f32 %v278, %v390
      %392 = vmatmul.f32.gmra.mxu0 %v329
      %v393 = vpop.f32.mrf.mxu0
      %v394 = vadd.f32 %v281, %v393
      %395 = vmatmul.f32.gmra.mxu0 %v332
      %v396 = vpop.f32.mrf.mxu0
      %v397 = vadd.f32 %v284, %v396
      %398 = vmatmul.f32.gmra.mxu0 %v335
      %v399 = vpop.f32.mrf.mxu0
      %v400 = vadd.f32 %v287, %v399
      %401 = vmatmul.f32.gmra.mxu0 %v338
      %v402 = vpop.f32.mrf.mxu0
      %v403 = vadd.f32 %v290, %v402
      %404 = vmatmul.f32.gmra.mxu0 %v341
      %v405 = vpop.f32.mrf.mxu0
      %v406 = vadd.f32 %v293, %v405
      %407 = vmatmul.f32.gmra.mxu0 %v344
      %v408 = vpop.f32.mrf.mxu0
      %v409 = vadd.f32 %v296, %v408
      %410 = vmatmul.f32.gmra.mxu0 %v347
      %v411 = vpop.f32.mrf.mxu0
      %v412 = vadd.f32 %v299, %v411
      %413 = vmatmul.f32.gmra.mxu0 %v350
      %v414 = vpop.f32.mrf.mxu0
      %v415 = vadd.f32 %v302, %v414
      %416 = vmatmul.f32.gmra.mxu0 %v353
      %v417 = vpop.f32.mrf.mxu0
      %v418 = vadd.f32 %v305, %v417
      %419 = vmatmul.f32.gmra.mxu0 %v356
      %v420 = vpop.f32.mrf.mxu0
      %v421 = vadd.f32 %v308, %v420
      %422 = vmatmul.f32.gmra.mxu0 %v359
      %v423 = vpop.f32.mrf.mxu0
      %v424 = vadd.f32 %v311, %v423
      %425 = vmatmul.f32.gmra.mxu0 %v362
      %v426 = vpop.f32.mrf.mxu0
      %v427 = vadd.f32 %v314, %v426
      %428 = vdwg.mxu0
      %v429 = vld [vmem:[%s166 + $0x2] sm:$0xff]
      %v430 = vld [vmem:[%s166 + $0xa] sm:$0xff]
      %v431 = vld [vmem:[%s166 + $0x1a] sm:$0xff]
      %v432 = vld [vmem:[%s166 + $0x22] sm:$0xff]
      %v433 = vld [vmem:[%s166 + $0x32] sm:$0xff]
      %v434 = vld [vmem:[%s166 + $0x3a] sm:$0xff]
      %v435 = vld [vmem:[%s166 + $0x4a] sm:$0xff]
      %v436 = vld [vmem:[%s166 + $0x52] sm:$0xff]
      %v437 = vld [vmem:[%s166 + $0x62] sm:$0xff]
      %v438 = vld [vmem:[%s166 + $0x6a] sm:$0xff]
      %v439 = vld [vmem:[%s166 + $0x7a] sm:$0xff]
      %v440 = vld [vmem:[%s166 + $0x82] sm:$0xff]
      %v441 = vld [vmem:[%s166 + $0x92] sm:$0xff]
      %v442 = vld [vmem:[%s166 + $0x9a] sm:$0xff]
      %v443 = vld [vmem:[%s166 + $0xaa] sm:$0xff]
      %v444 = vld [vmem:[%s166 + $0xb2] sm:$0xff]
      %s445 = scalar_lea.vmem %s1, 16
      %v446 = vld [vmem:[%s445] sm:$0xff]
      %v448 = vsel %vm202, %v429, 0
      %v451 = vsel %vm202, %v430, 0
      %v454 = vsel %vm202, %v431, 0
      %v457 = vsel %vm202, %v432, 0
      %v460 = vsel %vm202, %v433, 0
      %v463 = vsel %vm202, %v434, 0
      %v466 = vsel %vm202, %v435, 0
      %v469 = vsel %vm202, %v436, 0
      %v472 = vsel %vm202, %v437, 0
      %v475 = vsel %vm202, %v438, 0
      %v478 = vsel %vm202, %v439, 0
      %v481 = vsel %vm202, %v440, 0
      %v484 = vsel %vm202, %v441, 0
      %v487 = vsel %vm202, %v442, 0
      %v490 = vsel %vm202, %v443, 0
      %v493 = vsel %vm202, %v444, 0
      %495 = vmatpush.msra.mxu0 0.0
      %496 = vmatpush.msra.mxu0 0.0
      %497 = vmatpush.msra.mxu0 0.0
      %498 = vmatpush.msra.mxu0 0.0
      %499 = vmatpush.msra.mxu0 0.0
      %500 = vmatpush.msra.mxu0 0.0
      %501 = vmatpush.msra.mxu0 0.0
      %502 = vmatpush.msra.mxu0 0.0
      %503 = vmatpush.msra.mxu0 0.0
      %504 = vmatpush.msra.mxu0 0.0
      %505 = vmatpush.msra.mxu0 0.0
      %506 = vmatpush.msra.mxu0 0.0
      %507 = vmatpush.msra.mxu0 0.0
      %508 = vmatpush.msra.mxu0 0.0
      %509 = vmatpush.msra.mxu0 0.0
      %510 = vmatpush.msra.mxu0 %v446
      %511 = vmatmul.f32.gmra.mxu0 %v448
      %v512 = vpop.f32.mrf.mxu0
      %v513 = vadd.f32 0.0, %v512
      %514 = vmatmul.f32.gmra.mxu0 %v451
      %v515 = vpop.f32.mrf.mxu0
      %v516 = vadd.f32 0.0, %v515
      %517 = vmatmul.f32.gmra.mxu0 %v454
      %v518 = vpop.f32.mrf.mxu0
      %v519 = vadd.f32 0.0, %v518
      %520 = vmatmul.f32.gmra.mxu0 %v457
      %v521 = vpop.f32.mrf.mxu0
      %v522 = vadd.f32 0.0, %v521
      %523 = vmatmul.f32.gmra.mxu0 %v460
      %v524 = vpop.f32.mrf.mxu0
      %v525 = vadd.f32 0.0, %v524
      %526 = vmatmul.f32.gmra.mxu0 %v463
      %v527 = vpop.f32.mrf.mxu0
      %v528 = vadd.f32 0.0, %v527
      %529 = vmatmul.f32.gmra.mxu0 %v466
      %v530 = vpop.f32.mrf.mxu0
      %v531 = vadd.f32 0.0, %v530
      %532 = vmatmul.f32.gmra.mxu0 %v469
      %v533 = vpop.f32.mrf.mxu0
      %v534 = vadd.f32 0.0, %v533
      %535 = vmatmul.f32.gmra.mxu0 %v472
      %v536 = vpop.f32.mrf.mxu0
      %v537 = vadd.f32 0.0, %v536
      %538 = vmatmul.f32.gmra.mxu0 %v475
      %v539 = vpop.f32.mrf.mxu0
      %v540 = vadd.f32 0.0, %v539
      %541 = vmatmul.f32.gmra.mxu0 %v478
      %v542 = vpop.f32.mrf.mxu0
      %v543 = vadd.f32 0.0, %v542
      %544 = vmatmul.f32.gmra.mxu0 %v481
      %v545 = vpop.f32.mrf.mxu0
      %v546 = vadd.f32 0.0, %v545
      %547 = vmatmul.f32.gmra.mxu0 %v484
      %v548 = vpop.f32.mrf.mxu0
      %v549 = vadd.f32 0.0, %v548
      %550 = vmatmul.f32.gmra.mxu0 %v487
      %v551 = vpop.f32.mrf.mxu0
      %v552 = vadd.f32 0.0, %v551
      %553 = vmatmul.f32.gmra.mxu0 %v490
      %v554 = vpop.f32.mrf.mxu0
      %v555 = vadd.f32 0.0, %v554
      %556 = vmatmul.f32.gmra.mxu0 %v493
      %v557 = vpop.f32.mrf.mxu0
      %v558 = vadd.f32 0.0, %v557
      %559 = vdwg.mxu0
      %v560 = vadd.f32 %v382, %v513
      %v561 = vadd.f32 %v385, %v516
      %v562 = vadd.f32 %v388, %v519
      %v563 = vadd.f32 %v391, %v522
      %v564 = vadd.f32 %v394, %v525
      %v565 = vadd.f32 %v397, %v528
      %v566 = vadd.f32 %v400, %v531
      %v567 = vadd.f32 %v403, %v534
      %v568 = vadd.f32 %v406, %v537
      %v569 = vadd.f32 %v409, %v540
      %v570 = vadd.f32 %v412, %v543
      %v571 = vadd.f32 %v415, %v546
      %v572 = vadd.f32 %v418, %v549
      %v573 = vadd.f32 %v421, %v552
      %v574 = vadd.f32 %v424, %v555
      %v575 = vadd.f32 %v427, %v558
      %s576 = sadd.s32 %s164, 1
      %s577 = smul.u32 %s576, 24
      %s578 = scalar_lea.vmem %s155, %s577
      %v579 = vld [vmem:[%s578] sm:$0xff]
      %v580 = vld [vmem:[%s578 + $0x8] sm:$0xff]
      %v581 = vld [vmem:[%s578 + $0x18] sm:$0xff]
      %v582 = vld [vmem:[%s578 + $0x20] sm:$0xff]
      %v583 = vld [vmem:[%s578 + $0x30] sm:$0xff]
      %v584 = vld [vmem:[%s578 + $0x38] sm:$0xff]
      %v585 = vld [vmem:[%s578 + $0x48] sm:$0xff]
      %v586 = vld [vmem:[%s578 + $0x50] sm:$0xff]
      %v587 = vld [vmem:[%s578 + $0x60] sm:$0xff]
      %v588 = vld [vmem:[%s578 + $0x68] sm:$0xff]
      %v589 = vld [vmem:[%s578 + $0x78] sm:$0xff]
      %v590 = vld [vmem:[%s578 + $0x80] sm:$0xff]
      %v591 = vld [vmem:[%s578 + $0x90] sm:$0xff]
      %v592 = vld [vmem:[%s578 + $0x98] sm:$0xff]
      %v593 = vld [vmem:[%s578 + $0xa8] sm:$0xff]
      %v594 = vld [vmem:[%s578 + $0xb0] sm:$0xff]
      %s595 = scalar_lea.vmem %s1, 24
      %v596 = vld [vmem:[%s595] sm:$0xff]
      %v598 = vsel %vm202, %v579, 0
      %v601 = vsel %vm202, %v580, 0
      %v604 = vsel %vm202, %v581, 0
      %v607 = vsel %vm202, %v582, 0
      %v610 = vsel %vm202, %v583, 0
      %v613 = vsel %vm202, %v584, 0
      %v616 = vsel %vm202, %v585, 0
      %v619 = vsel %vm202, %v586, 0
      %v622 = vsel %vm202, %v587, 0
      %v625 = vsel %vm202, %v588, 0
      %v628 = vsel %vm202, %v589, 0
      %v631 = vsel %vm202, %v590, 0
      %v634 = vsel %vm202, %v591, 0
      %v637 = vsel %vm202, %v592, 0
      %v640 = vsel %vm202, %v593, 0
      %v643 = vsel %vm202, %v594, 0
      %645 = vmatpush.msra.mxu0 0.0
      %646 = vmatpush.msra.mxu0 0.0
      %647 = vmatpush.msra.mxu0 0.0
      %648 = vmatpush.msra.mxu0 0.0
      %649 = vmatpush.msra.mxu0 0.0
      %650 = vmatpush.msra.mxu0 0.0
      %651 = vmatpush.msra.mxu0 0.0
      %652 = vmatpush.msra.mxu0 0.0
      %653 = vmatpush.msra.mxu0 0.0
      %654 = vmatpush.msra.mxu0 0.0
      %655 = vmatpush.msra.mxu0 0.0
      %656 = vmatpush.msra.mxu0 0.0
      %657 = vmatpush.msra.mxu0 0.0
      %658 = vmatpush.msra.mxu0 0.0
      %659 = vmatpush.msra.mxu0 0.0
      %660 = vmatpush.msra.mxu0 %v596
      %661 = vmatmul.f32.gmra.mxu0 %v598
      %v662 = vpop.f32.mrf.mxu0
      %v663 = vadd.f32 0.0, %v662
      %664 = vmatmul.f32.gmra.mxu0 %v601
      %v665 = vpop.f32.mrf.mxu0
      %v666 = vadd.f32 0.0, %v665
      %667 = vmatmul.f32.gmra.mxu0 %v604
      %v668 = vpop.f32.mrf.mxu0
      %v669 = vadd.f32 0.0, %v668
      %670 = vmatmul.f32.gmra.mxu0 %v607
      %v671 = vpop.f32.mrf.mxu0
      %v672 = vadd.f32 0.0, %v671
      %673 = vmatmul.f32.gmra.mxu0 %v610
      %v674 = vpop.f32.mrf.mxu0
      %v675 = vadd.f32 0.0, %v674
      %676 = vmatmul.f32.gmra.mxu0 %v613
      %v677 = vpop.f32.mrf.mxu0
      %v678 = vadd.f32 0.0, %v677
      %679 = vmatmul.f32.gmra.mxu0 %v616
      %v680 = vpop.f32.mrf.mxu0
      %v681 = vadd.f32 0.0, %v680
      %682 = vmatmul.f32.gmra.mxu0 %v619
      %v683 = vpop.f32.mrf.mxu0
      %v684 = vadd.f32 0.0, %v683
      %685 = vmatmul.f32.gmra.mxu0 %v622
      %v686 = vpop.f32.mrf.mxu0
      %v687 = vadd.f32 0.0, %v686
      %688 = vmatmul.f32.gmra.mxu0 %v625
      %v689 = vpop.f32.mrf.mxu0
      %v690 = vadd.f32 0.0, %v689
      %691 = vmatmul.f32.gmra.mxu0 %v628
      %v692 = vpop.f32.mrf.mxu0
      %v693 = vadd.f32 0.0, %v692
      %694 = vmatmul.f32.gmra.mxu0 %v631
      %v695 = vpop.f32.mrf.mxu0
      %v696 = vadd.f32 0.0, %v695
      %697 = vmatmul.f32.gmra.mxu0 %v634
      %v698 = vpop.f32.mrf.mxu0
      %v699 = vadd.f32 0.0, %v698
      %700 = vmatmul.f32.gmra.mxu0 %v637
      %v701 = vpop.f32.mrf.mxu0
      %v702 = vadd.f32 0.0, %v701
      %703 = vmatmul.f32.gmra.mxu0 %v640
      %v704 = vpop.f32.mrf.mxu0
      %v705 = vadd.f32 0.0, %v704
      %706 = vmatmul.f32.gmra.mxu0 %v643
      %v707 = vpop.f32.mrf.mxu0
      %v708 = vadd.f32 0.0, %v707
      %709 = vdwg.mxu0
      %v710 = vadd.f32 %v560, %v663
      %v711 = vadd.f32 %v561, %v666
      %v712 = vadd.f32 %v562, %v669
      %v713 = vadd.f32 %v563, %v672
      %v714 = vadd.f32 %v564, %v675
      %v715 = vadd.f32 %v565, %v678
      %v716 = vadd.f32 %v566, %v681
      %v717 = vadd.f32 %v567, %v684
      %v718 = vadd.f32 %v568, %v687
      %v719 = vadd.f32 %v569, %v690
      %v720 = vadd.f32 %v570, %v693
      %v721 = vadd.f32 %v571, %v696
      %v722 = vadd.f32 %v572, %v699
      %v723 = vadd.f32 %v573, %v702
      %v724 = vadd.f32 %v574, %v705
      %v725 = vadd.f32 %v575, %v708
      %v726 = vld [vmem:[%s578 + $0x1] sm:$0xff]
      %v727 = vld [vmem:[%s578 + $0x9] sm:$0xff]
      %v728 = vld [vmem:[%s578 + $0x19] sm:$0xff]
      %v729 = vld [vmem:[%s578 + $0x21] sm:$0xff]
      %v730 = vld [vmem:[%s578 + $0x31] sm:$0xff]
      %v731 = vld [vmem:[%s578 + $0x39] sm:$0xff]
      %v732 = vld [vmem:[%s578 + $0x49] sm:$0xff]
      %v733 = vld [vmem:[%s578 + $0x51] sm:$0xff]
      %v734 = vld [vmem:[%s578 + $0x61] sm:$0xff]
      %v735 = vld [vmem:[%s578 + $0x69] sm:$0xff]
      %v736 = vld [vmem:[%s578 + $0x79] sm:$0xff]
      %v737 = vld [vmem:[%s578 + $0x81] sm:$0xff]
      %v738 = vld [vmem:[%s578 + $0x91] sm:$0xff]
      %v739 = vld [vmem:[%s578 + $0x99] sm:$0xff]
      %v740 = vld [vmem:[%s578 + $0xa9] sm:$0xff]
      %v741 = vld [vmem:[%s578 + $0xb1] sm:$0xff]
      %s742 = scalar_lea.vmem %s1, 32
      %v743 = vld [vmem:[%s742] sm:$0xff]
      %v745 = vsel %vm202, %v726, 0
      %v748 = vsel %vm202, %v727, 0
      %v751 = vsel %vm202, %v728, 0
      %v754 = vsel %vm202, %v729, 0
      %v757 = vsel %vm202, %v730, 0
      %v760 = vsel %vm202, %v731, 0
      %v763 = vsel %vm202, %v732, 0
      %v766 = vsel %vm202, %v733, 0
      %v769 = vsel %vm202, %v734, 0
      %v772 = vsel %vm202, %v735, 0
      %v775 = vsel %vm202, %v736, 0
      %v778 = vsel %vm202, %v737, 0
      %v781 = vsel %vm202, %v738, 0
      %v784 = vsel %vm202, %v739, 0
      %v787 = vsel %vm202, %v740, 0
      %v790 = vsel %vm202, %v741, 0
      %792 = vmatpush.msra.mxu0 0.0
      %793 = vmatpush.msra.mxu0 0.0
      %794 = vmatpush.msra.mxu0 0.0
      %795 = vmatpush.msra.mxu0 0.0
      %796 = vmatpush.msra.mxu0 0.0
      %797 = vmatpush.msra.mxu0 0.0
      %798 = vmatpush.msra.mxu0 0.0
      %799 = vmatpush.msra.mxu0 0.0
      %800 = vmatpush.msra.mxu0 0.0
      %801 = vmatpush.msra.mxu0 0.0
      %802 = vmatpush.msra.mxu0 0.0
      %803 = vmatpush.msra.mxu0 0.0
      %804 = vmatpush.msra.mxu0 0.0
      %805 = vmatpush.msra.mxu0 0.0
      %806 = vmatpush.msra.mxu0 0.0
      %807 = vmatpush.msra.mxu0 %v743
      %808 = vmatmul.f32.gmra.mxu0 %v745
      %v809 = vpop.f32.mrf.mxu0
      %v810 = vadd.f32 0.0, %v809
      %811 = vmatmul.f32.gmra.mxu0 %v748
      %v812 = vpop.f32.mrf.mxu0
      %v813 = vadd.f32 0.0, %v812
      %814 = vmatmul.f32.gmra.mxu0 %v751
      %v815 = vpop.f32.mrf.mxu0
      %v816 = vadd.f32 0.0, %v815
      %817 = vmatmul.f32.gmra.mxu0 %v754
      %v818 = vpop.f32.mrf.mxu0
      %v819 = vadd.f32 0.0, %v818
      %820 = vmatmul.f32.gmra.mxu0 %v757
      %v821 = vpop.f32.mrf.mxu0
      %v822 = vadd.f32 0.0, %v821
      %823 = vmatmul.f32.gmra.mxu0 %v760
      %v824 = vpop.f32.mrf.mxu0
      %v825 = vadd.f32 0.0, %v824
      %826 = vmatmul.f32.gmra.mxu0 %v763
      %v827 = vpop.f32.mrf.mxu0
      %v828 = vadd.f32 0.0, %v827
      %829 = vmatmul.f32.gmra.mxu0 %v766
      %v830 = vpop.f32.mrf.mxu0
      %v831 = vadd.f32 0.0, %v830
      %832 = vmatmul.f32.gmra.mxu0 %v769
      %v833 = vpop.f32.mrf.mxu0
      %v834 = vadd.f32 0.0, %v833
      %835 = vmatmul.f32.gmra.mxu0 %v772
      %v836 = vpop.f32.mrf.mxu0
      %v837 = vadd.f32 0.0, %v836
      %838 = vmatmul.f32.gmra.mxu0 %v775
      %v839 = vpop.f32.mrf.mxu0
      %v840 = vadd.f32 0.0, %v839
      %841 = vmatmul.f32.gmra.mxu0 %v778
      %v842 = vpop.f32.mrf.mxu0
      %v843 = vadd.f32 0.0, %v842
      %844 = vmatmul.f32.gmra.mxu0 %v781
      %v845 = vpop.f32.mrf.mxu0
      %v846 = vadd.f32 0.0, %v845
      %847 = vmatmul.f32.gmra.mxu0 %v784
      %v848 = vpop.f32.mrf.mxu0
      %v849 = vadd.f32 0.0, %v848
      %850 = vmatmul.f32.gmra.mxu0 %v787
      %v851 = vpop.f32.mrf.mxu0
      %v852 = vadd.f32 0.0, %v851
      %853 = vmatmul.f32.gmra.mxu0 %v790
      %v854 = vpop.f32.mrf.mxu0
      %v855 = vadd.f32 0.0, %v854
      %856 = vdwg.mxu0
      %v857 = vadd.f32 %v710, %v810
      %v858 = vadd.f32 %v711, %v813
      %v859 = vadd.f32 %v712, %v816
      %v860 = vadd.f32 %v713, %v819
      %v861 = vadd.f32 %v714, %v822
      %v862 = vadd.f32 %v715, %v825
      %v863 = vadd.f32 %v716, %v828
      %v864 = vadd.f32 %v717, %v831
      %v865 = vadd.f32 %v718, %v834
      %v866 = vadd.f32 %v719, %v837
      %v867 = vadd.f32 %v720, %v840
      %v868 = vadd.f32 %v721, %v843
      %v869 = vadd.f32 %v722, %v846
      %v870 = vadd.f32 %v723, %v849
      %v871 = vadd.f32 %v724, %v852
      %v872 = vadd.f32 %v725, %v855
      %v873 = vld [vmem:[%s578 + $0x2] sm:$0xff]
      %v874 = vld [vmem:[%s578 + $0xa] sm:$0xff]
      %v875 = vld [vmem:[%s578 + $0x1a] sm:$0xff]
      %v876 = vld [vmem:[%s578 + $0x22] sm:$0xff]
      %v877 = vld [vmem:[%s578 + $0x32] sm:$0xff]
      %v878 = vld [vmem:[%s578 + $0x3a] sm:$0xff]
      %v879 = vld [vmem:[%s578 + $0x4a] sm:$0xff]
      %v880 = vld [vmem:[%s578 + $0x52] sm:$0xff]
      %v881 = vld [vmem:[%s578 + $0x62] sm:$0xff]
      %v882 = vld [vmem:[%s578 + $0x6a] sm:$0xff]
      %v883 = vld [vmem:[%s578 + $0x7a] sm:$0xff]
      %v884 = vld [vmem:[%s578 + $0x82] sm:$0xff]
      %v885 = vld [vmem:[%s578 + $0x92] sm:$0xff]
      %v886 = vld [vmem:[%s578 + $0x9a] sm:$0xff]
      %v887 = vld [vmem:[%s578 + $0xaa] sm:$0xff]
      %v888 = vld [vmem:[%s578 + $0xb2] sm:$0xff]
      %s889 = scalar_lea.vmem %s1, 40
      %v890 = vld [vmem:[%s889] sm:$0xff]
      %v892 = vsel %vm202, %v873, 0
      %v895 = vsel %vm202, %v874, 0
      %v898 = vsel %vm202, %v875, 0
      %v901 = vsel %vm202, %v876, 0
      %v904 = vsel %vm202, %v877, 0
      %v907 = vsel %vm202, %v878, 0
      %v910 = vsel %vm202, %v879, 0
      %v913 = vsel %vm202, %v880, 0
      %v916 = vsel %vm202, %v881, 0
      %v919 = vsel %vm202, %v882, 0
      %v922 = vsel %vm202, %v883, 0
      %v925 = vsel %vm202, %v884, 0
      %v928 = vsel %vm202, %v885, 0
      %v931 = vsel %vm202, %v886, 0
      %v934 = vsel %vm202, %v887, 0
      %v937 = vsel %vm202, %v888, 0
      %939 = vmatpush.msra.mxu0 0.0
      %940 = vmatpush.msra.mxu0 0.0
      %941 = vmatpush.msra.mxu0 0.0
      %942 = vmatpush.msra.mxu0 0.0
      %943 = vmatpush.msra.mxu0 0.0
      %944 = vmatpush.msra.mxu0 0.0
      %945 = vmatpush.msra.mxu0 0.0
      %946 = vmatpush.msra.mxu0 0.0
      %947 = vmatpush.msra.mxu0 0.0
      %948 = vmatpush.msra.mxu0 0.0
      %949 = vmatpush.msra.mxu0 0.0
      %950 = vmatpush.msra.mxu0 0.0
      %951 = vmatpush.msra.mxu0 0.0
      %952 = vmatpush.msra.mxu0 0.0
      %953 = vmatpush.msra.mxu0 0.0
      %954 = vmatpush.msra.mxu0 %v890
      %955 = vmatmul.f32.gmra.mxu0 %v892
      %v956 = vpop.f32.mrf.mxu0
      %v957 = vadd.f32 0.0, %v956
      %958 = vmatmul.f32.gmra.mxu0 %v895
      %v959 = vpop.f32.mrf.mxu0
      %v960 = vadd.f32 0.0, %v959
      %961 = vmatmul.f32.gmra.mxu0 %v898
      %v962 = vpop.f32.mrf.mxu0
      %v963 = vadd.f32 0.0, %v962
      %964 = vmatmul.f32.gmra.mxu0 %v901
      %v965 = vpop.f32.mrf.mxu0
      %v966 = vadd.f32 0.0, %v965
      %967 = vmatmul.f32.gmra.mxu0 %v904
      %v968 = vpop.f32.mrf.mxu0
      %v969 = vadd.f32 0.0, %v968
      %970 = vmatmul.f32.gmra.mxu0 %v907
      %v971 = vpop.f32.mrf.mxu0
      %v972 = vadd.f32 0.0, %v971
      %973 = vmatmul.f32.gmra.mxu0 %v910
      %v974 = vpop.f32.mrf.mxu0
      %v975 = vadd.f32 0.0, %v974
      %976 = vmatmul.f32.gmra.mxu0 %v913
      %v977 = vpop.f32.mrf.mxu0
      %v978 = vadd.f32 0.0, %v977
      %979 = vmatmul.f32.gmra.mxu0 %v916
      %v980 = vpop.f32.mrf.mxu0
      %v981 = vadd.f32 0.0, %v980
      %982 = vmatmul.f32.gmra.mxu0 %v919
      %v983 = vpop.f32.mrf.mxu0
      %v984 = vadd.f32 0.0, %v983
      %985 = vmatmul.f32.gmra.mxu0 %v922
      %v986 = vpop.f32.mrf.mxu0
      %v987 = vadd.f32 0.0, %v986
      %988 = vmatmul.f32.gmra.mxu0 %v925
      %v989 = vpop.f32.mrf.mxu0
      %v990 = vadd.f32 0.0, %v989
      %991 = vmatmul.f32.gmra.mxu0 %v928
      %v992 = vpop.f32.mrf.mxu0
      %v993 = vadd.f32 0.0, %v992
      %994 = vmatmul.f32.gmra.mxu0 %v931
      %v995 = vpop.f32.mrf.mxu0
      %v996 = vadd.f32 0.0, %v995
      %997 = vmatmul.f32.gmra.mxu0 %v934
      %v998 = vpop.f32.mrf.mxu0
      %v999 = vadd.f32 0.0, %v998
      %1000 = vmatmul.f32.gmra.mxu0 %v937
      %v1001 = vpop.f32.mrf.mxu0
      %v1002 = vadd.f32 0.0, %v1001
      %1003 = vdwg.mxu0
      %v1004 = vadd.f32 %v857, %v957
      %v1005 = vadd.f32 %v858, %v960
      %v1006 = vadd.f32 %v859, %v963
      %v1007 = vadd.f32 %v860, %v966
      %v1008 = vadd.f32 %v861, %v969
      %v1009 = vadd.f32 %v862, %v972
      %v1010 = vadd.f32 %v863, %v975
      %v1011 = vadd.f32 %v864, %v978
      %v1012 = vadd.f32 %v865, %v981
      %v1013 = vadd.f32 %v866, %v984
      %v1014 = vadd.f32 %v867, %v987
      %v1015 = vadd.f32 %v868, %v990
      %v1016 = vadd.f32 %v869, %v993
      %v1017 = vadd.f32 %v870, %v996
      %v1018 = vadd.f32 %v871, %v999
      %v1019 = vadd.f32 %v872, %v1002
      %s1020 = sadd.s32 %s164, 2
      %s1021 = smul.u32 %s1020, 24
      %s1022 = scalar_lea.vmem %s155, %s1021
      %v1023 = vld [vmem:[%s1022] sm:$0xff]
      %v1024 = vld [vmem:[%s1022 + $0x8] sm:$0xff]
      %v1025 = vld [vmem:[%s1022 + $0x18] sm:$0xff]
      %v1026 = vld [vmem:[%s1022 + $0x20] sm:$0xff]
      %v1027 = vld [vmem:[%s1022 + $0x30] sm:$0xff]
      %v1028 = vld [vmem:[%s1022 + $0x38] sm:$0xff]
      %v1029 = vld [vmem:[%s1022 + $0x48] sm:$0xff]
      %v1030 = vld [vmem:[%s1022 + $0x50] sm:$0xff]
      %v1031 = vld [vmem:[%s1022 + $0x60] sm:$0xff]
      %v1032 = vld [vmem:[%s1022 + $0x68] sm:$0xff]
      %v1033 = vld [vmem:[%s1022 + $0x78] sm:$0xff]
      %v1034 = vld [vmem:[%s1022 + $0x80] sm:$0xff]
      %v1035 = vld [vmem:[%s1022 + $0x90] sm:$0xff]
      %v1036 = vld [vmem:[%s1022 + $0x98] sm:$0xff]
      %v1037 = vld [vmem:[%s1022 + $0xa8] sm:$0xff]
      %v1038 = vld [vmem:[%s1022 + $0xb0] sm:$0xff]
      %s1039 = scalar_lea.vmem %s1, 48
      %v1040 = vld [vmem:[%s1039] sm:$0xff]
      %v1042 = vsel %vm202, %v1023, 0
      %v1045 = vsel %vm202, %v1024, 0
      %v1048 = vsel %vm202, %v1025, 0
      %v1051 = vsel %vm202, %v1026, 0
      %v1054 = vsel %vm202, %v1027, 0
      %v1057 = vsel %vm202, %v1028, 0
      %v1060 = vsel %vm202, %v1029, 0
      %v1063 = vsel %vm202, %v1030, 0
      %v1066 = vsel %vm202, %v1031, 0
      %v1069 = vsel %vm202, %v1032, 0
      %v1072 = vsel %vm202, %v1033, 0
      %v1075 = vsel %vm202, %v1034, 0
      %v1078 = vsel %vm202, %v1035, 0
      %v1081 = vsel %vm202, %v1036, 0
      %v1084 = vsel %vm202, %v1037, 0
      %v1087 = vsel %vm202, %v1038, 0
      %1089 = vmatpush.msra.mxu0 0.0
      %1090 = vmatpush.msra.mxu0 0.0
      %1091 = vmatpush.msra.mxu0 0.0
      %1092 = vmatpush.msra.mxu0 0.0
      %1093 = vmatpush.msra.mxu0 0.0
      %1094 = vmatpush.msra.mxu0 0.0
      %1095 = vmatpush.msra.mxu0 0.0
      %1096 = vmatpush.msra.mxu0 0.0
      %1097 = vmatpush.msra.mxu0 0.0
      %1098 = vmatpush.msra.mxu0 0.0
      %1099 = vmatpush.msra.mxu0 0.0
      %1100 = vmatpush.msra.mxu0 0.0
      %1101 = vmatpush.msra.mxu0 0.0
      %1102 = vmatpush.msra.mxu0 0.0
      %1103 = vmatpush.msra.mxu0 0.0
      %1104 = vmatpush.msra.mxu0 %v1040
      %1105 = vmatmul.f32.gmra.mxu0 %v1042
      %v1106 = vpop.f32.mrf.mxu0
      %v1107 = vadd.f32 0.0, %v1106
      %1108 = vmatmul.f32.gmra.mxu0 %v1045
      %v1109 = vpop.f32.mrf.mxu0
      %v1110 = vadd.f32 0.0, %v1109
      %1111 = vmatmul.f32.gmra.mxu0 %v1048
      %v1112 = vpop.f32.mrf.mxu0
      %v1113 = vadd.f32 0.0, %v1112
      %1114 = vmatmul.f32.gmra.mxu0 %v1051
      %v1115 = vpop.f32.mrf.mxu0
      %v1116 = vadd.f32 0.0, %v1115
      %1117 = vmatmul.f32.gmra.mxu0 %v1054
      %v1118 = vpop.f32.mrf.mxu0
      %v1119 = vadd.f32 0.0, %v1118
      %1120 = vmatmul.f32.gmra.mxu0 %v1057
      %v1121 = vpop.f32.mrf.mxu0
      %v1122 = vadd.f32 0.0, %v1121
      %1123 = vmatmul.f32.gmra.mxu0 %v1060
      %v1124 = vpop.f32.mrf.mxu0
      %v1125 = vadd.f32 0.0, %v1124
      %1126 = vmatmul.f32.gmra.mxu0 %v1063
      %v1127 = vpop.f32.mrf.mxu0
      %v1128 = vadd.f32 0.0, %v1127
      %1129 = vmatmul.f32.gmra.mxu0 %v1066
      %v1130 = vpop.f32.mrf.mxu0
      %v1131 = vadd.f32 0.0, %v1130
      %1132 = vmatmul.f32.gmra.mxu0 %v1069
      %v1133 = vpop.f32.mrf.mxu0
      %v1134 = vadd.f32 0.0, %v1133
      %1135 = vmatmul.f32.gmra.mxu0 %v1072
      %v1136 = vpop.f32.mrf.mxu0
      %v1137 = vadd.f32 0.0, %v1136
      %1138 = vmatmul.f32.gmra.mxu0 %v1075
      %v1139 = vpop.f32.mrf.mxu0
      %v1140 = vadd.f32 0.0, %v1139
      %1141 = vmatmul.f32.gmra.mxu0 %v1078
      %v1142 = vpop.f32.mrf.mxu0
      %v1143 = vadd.f32 0.0, %v1142
      %1144 = vmatmul.f32.gmra.mxu0 %v1081
      %v1145 = vpop.f32.mrf.mxu0
      %v1146 = vadd.f32 0.0, %v1145
      %1147 = vmatmul.f32.gmra.mxu0 %v1084
      %v1148 = vpop.f32.mrf.mxu0
      %v1149 = vadd.f32 0.0, %v1148
      %1150 = vmatmul.f32.gmra.mxu0 %v1087
      %v1151 = vpop.f32.mrf.mxu0
      %v1152 = vadd.f32 0.0, %v1151
      %1153 = vdwg.mxu0
      %v1154 = vadd.f32 %v1004, %v1107
      %v1155 = vadd.f32 %v1005, %v1110
      %v1156 = vadd.f32 %v1006, %v1113
      %v1157 = vadd.f32 %v1007, %v1116
      %v1158 = vadd.f32 %v1008, %v1119
      %v1159 = vadd.f32 %v1009, %v1122
      %v1160 = vadd.f32 %v1010, %v1125
      %v1161 = vadd.f32 %v1011, %v1128
      %v1162 = vadd.f32 %v1012, %v1131
      %v1163 = vadd.f32 %v1013, %v1134
      %v1164 = vadd.f32 %v1014, %v1137
      %v1165 = vadd.f32 %v1015, %v1140
      %v1166 = vadd.f32 %v1016, %v1143
      %v1167 = vadd.f32 %v1017, %v1146
      %v1168 = vadd.f32 %v1018, %v1149
      %v1169 = vadd.f32 %v1019, %v1152
      %v1170 = vld [vmem:[%s1022 + $0x1] sm:$0xff]
      %v1171 = vld [vmem:[%s1022 + $0x9] sm:$0xff]
      %v1172 = vld [vmem:[%s1022 + $0x19] sm:$0xff]
      %v1173 = vld [vmem:[%s1022 + $0x21] sm:$0xff]
      %v1174 = vld [vmem:[%s1022 + $0x31] sm:$0xff]
      %v1175 = vld [vmem:[%s1022 + $0x39] sm:$0xff]
      %v1176 = vld [vmem:[%s1022 + $0x49] sm:$0xff]
      %v1177 = vld [vmem:[%s1022 + $0x51] sm:$0xff]
      %v1178 = vld [vmem:[%s1022 + $0x61] sm:$0xff]
      %v1179 = vld [vmem:[%s1022 + $0x69] sm:$0xff]
      %v1180 = vld [vmem:[%s1022 + $0x79] sm:$0xff]
      %v1181 = vld [vmem:[%s1022 + $0x81] sm:$0xff]
      %v1182 = vld [vmem:[%s1022 + $0x91] sm:$0xff]
      %v1183 = vld [vmem:[%s1022 + $0x99] sm:$0xff]
      %v1184 = vld [vmem:[%s1022 + $0xa9] sm:$0xff]
      %v1185 = vld [vmem:[%s1022 + $0xb1] sm:$0xff]
      %s1186 = scalar_lea.vmem %s1, 56
      %v1187 = vld [vmem:[%s1186] sm:$0xff]
      %v1189 = vsel %vm202, %v1170, 0
      %v1192 = vsel %vm202, %v1171, 0
      %v1195 = vsel %vm202, %v1172, 0
      %v1198 = vsel %vm202, %v1173, 0
      %v1201 = vsel %vm202, %v1174, 0
      %v1204 = vsel %vm202, %v1175, 0
      %v1207 = vsel %vm202, %v1176, 0
      %v1210 = vsel %vm202, %v1177, 0
      %v1213 = vsel %vm202, %v1178, 0
      %v1216 = vsel %vm202, %v1179, 0
      %v1219 = vsel %vm202, %v1180, 0
      %v1222 = vsel %vm202, %v1181, 0
      %v1225 = vsel %vm202, %v1182, 0
      %v1228 = vsel %vm202, %v1183, 0
      %v1231 = vsel %vm202, %v1184, 0
      %v1234 = vsel %vm202, %v1185, 0
      %1236 = vmatpush.msra.mxu0 0.0
      %1237 = vmatpush.msra.mxu0 0.0
      %1238 = vmatpush.msra.mxu0 0.0
      %1239 = vmatpush.msra.mxu0 0.0
      %1240 = vmatpush.msra.mxu0 0.0
      %1241 = vmatpush.msra.mxu0 0.0
      %1242 = vmatpush.msra.mxu0 0.0
      %1243 = vmatpush.msra.mxu0 0.0
      %1244 = vmatpush.msra.mxu0 0.0
      %1245 = vmatpush.msra.mxu0 0.0
      %1246 = vmatpush.msra.mxu0 0.0
      %1247 = vmatpush.msra.mxu0 0.0
      %1248 = vmatpush.msra.mxu0 0.0
      %1249 = vmatpush.msra.mxu0 0.0
      %1250 = vmatpush.msra.mxu0 0.0
      %1251 = vmatpush.msra.mxu0 %v1187
      %1252 = vmatmul.f32.gmra.mxu0 %v1189
      %v1253 = vpop.f32.mrf.mxu0
      %v1254 = vadd.f32 0.0, %v1253
      %1255 = vmatmul.f32.gmra.mxu0 %v1192
      %v1256 = vpop.f32.mrf.mxu0
      %v1257 = vadd.f32 0.0, %v1256
      %1258 = vmatmul.f32.gmra.mxu0 %v1195
      %v1259 = vpop.f32.mrf.mxu0
      %v1260 = vadd.f32 0.0, %v1259
      %1261 = vmatmul.f32.gmra.mxu0 %v1198
      %v1262 = vpop.f32.mrf.mxu0
      %v1263 = vadd.f32 0.0, %v1262
      %1264 = vmatmul.f32.gmra.mxu0 %v1201
      %v1265 = vpop.f32.mrf.mxu0
      %v1266 = vadd.f32 0.0, %v1265
      %1267 = vmatmul.f32.gmra.mxu0 %v1204
      %v1268 = vpop.f32.mrf.mxu0
      %v1269 = vadd.f32 0.0, %v1268
      %1270 = vmatmul.f32.gmra.mxu0 %v1207
      %v1271 = vpop.f32.mrf.mxu0
      %v1272 = vadd.f32 0.0, %v1271
      %1273 = vmatmul.f32.gmra.mxu0 %v1210
      %v1274 = vpop.f32.mrf.mxu0
      %v1275 = vadd.f32 0.0, %v1274
      %1276 = vmatmul.f32.gmra.mxu0 %v1213
      %v1277 = vpop.f32.mrf.mxu0
      %v1278 = vadd.f32 0.0, %v1277
      %1279 = vmatmul.f32.gmra.mxu0 %v1216
      %v1280 = vpop.f32.mrf.mxu0
      %v1281 = vadd.f32 0.0, %v1280
      %1282 = vmatmul.f32.gmra.mxu0 %v1219
      %v1283 = vpop.f32.mrf.mxu0
      %v1284 = vadd.f32 0.0, %v1283
      %1285 = vmatmul.f32.gmra.mxu0 %v1222
      %v1286 = vpop.f32.mrf.mxu0
      %v1287 = vadd.f32 0.0, %v1286
      %1288 = vmatmul.f32.gmra.mxu0 %v1225
      %v1289 = vpop.f32.mrf.mxu0
      %v1290 = vadd.f32 0.0, %v1289
      %1291 = vmatmul.f32.gmra.mxu0 %v1228
      %v1292 = vpop.f32.mrf.mxu0
      %v1293 = vadd.f32 0.0, %v1292
      %1294 = vmatmul.f32.gmra.mxu0 %v1231
      %v1295 = vpop.f32.mrf.mxu0
      %v1296 = vadd.f32 0.0, %v1295
      %1297 = vmatmul.f32.gmra.mxu0 %v1234
      %v1298 = vpop.f32.mrf.mxu0
      %v1299 = vadd.f32 0.0, %v1298
      %1300 = vdwg.mxu0
      %v1301 = vadd.f32 %v1154, %v1254
      %v1302 = vadd.f32 %v1155, %v1257
      %v1303 = vadd.f32 %v1156, %v1260
      %v1304 = vadd.f32 %v1157, %v1263
      %v1305 = vadd.f32 %v1158, %v1266
      %v1306 = vadd.f32 %v1159, %v1269
      %v1307 = vadd.f32 %v1160, %v1272
      %v1308 = vadd.f32 %v1161, %v1275
      %v1309 = vadd.f32 %v1162, %v1278
      %v1310 = vadd.f32 %v1163, %v1281
      %v1311 = vadd.f32 %v1164, %v1284
      %v1312 = vadd.f32 %v1165, %v1287
      %v1313 = vadd.f32 %v1166, %v1290
      %v1314 = vadd.f32 %v1167, %v1293
      %v1315 = vadd.f32 %v1168, %v1296
      %v1316 = vadd.f32 %v1169, %v1299
      %v1317 = vld [vmem:[%s1022 + $0x2] sm:$0xff]
      %v1318 = vld [vmem:[%s1022 + $0xa] sm:$0xff]
      %v1319 = vld [vmem:[%s1022 + $0x1a] sm:$0xff]
      %v1320 = vld [vmem:[%s1022 + $0x22] sm:$0xff]
      %v1321 = vld [vmem:[%s1022 + $0x32] sm:$0xff]
      %v1322 = vld [vmem:[%s1022 + $0x3a] sm:$0xff]
      %v1323 = vld [vmem:[%s1022 + $0x4a] sm:$0xff]
      %v1324 = vld [vmem:[%s1022 + $0x52] sm:$0xff]
      %v1325 = vld [vmem:[%s1022 + $0x62] sm:$0xff]
      %v1326 = vld [vmem:[%s1022 + $0x6a] sm:$0xff]
      %v1327 = vld [vmem:[%s1022 + $0x7a] sm:$0xff]
      %v1328 = vld [vmem:[%s1022 + $0x82] sm:$0xff]
      %v1329 = vld [vmem:[%s1022 + $0x92] sm:$0xff]
      %v1330 = vld [vmem:[%s1022 + $0x9a] sm:$0xff]
      %v1331 = vld [vmem:[%s1022 + $0xaa] sm:$0xff]
      %v1332 = vld [vmem:[%s1022 + $0xb2] sm:$0xff]
      %s1333 = scalar_lea.vmem %s1, 64
      %v1334 = vld [vmem:[%s1333] sm:$0xff]
      %v1336 = vsel %vm202, %v1317, 0
      %v1339 = vsel %vm202, %v1318, 0
      %v1342 = vsel %vm202, %v1319, 0
      %v1345 = vsel %vm202, %v1320, 0
      %v1348 = vsel %vm202, %v1321, 0
      %v1351 = vsel %vm202, %v1322, 0
      %v1354 = vsel %vm202, %v1323, 0
      %v1357 = vsel %vm202, %v1324, 0
      %v1360 = vsel %vm202, %v1325, 0
      %v1363 = vsel %vm202, %v1326, 0
      %v1366 = vsel %vm202, %v1327, 0
      %v1369 = vsel %vm202, %v1328, 0
      %v1372 = vsel %vm202, %v1329, 0
      %v1375 = vsel %vm202, %v1330, 0
      %v1378 = vsel %vm202, %v1331, 0
      %v1381 = vsel %vm202, %v1332, 0
      %1383 = vmatpush.msra.mxu0 0.0
      %1384 = vmatpush.msra.mxu0 0.0
      %1385 = vmatpush.msra.mxu0 0.0
      %1386 = vmatpush.msra.mxu0 0.0
      %1387 = vmatpush.msra.mxu0 0.0
      %1388 = vmatpush.msra.mxu0 0.0
      %1389 = vmatpush.msra.mxu0 0.0
      %1390 = vmatpush.msra.mxu0 0.0
      %1391 = vmatpush.msra.mxu0 0.0
      %1392 = vmatpush.msra.mxu0 0.0
      %1393 = vmatpush.msra.mxu0 0.0
      %1394 = vmatpush.msra.mxu0 0.0
      %1395 = vmatpush.msra.mxu0 0.0
      %1396 = vmatpush.msra.mxu0 0.0
      %1397 = vmatpush.msra.mxu0 0.0
      %1398 = vmatpush.msra.mxu0 %v1334
      %1399 = vmatmul.f32.gmra.mxu0 %v1336
      %v1400 = vpop.f32.mrf.mxu0
      %v1401 = vadd.f32 0.0, %v1400
      %1402 = vmatmul.f32.gmra.mxu0 %v1339
      %v1403 = vpop.f32.mrf.mxu0
      %v1404 = vadd.f32 0.0, %v1403
      %1405 = vmatmul.f32.gmra.mxu0 %v1342
      %v1406 = vpop.f32.mrf.mxu0
      %v1407 = vadd.f32 0.0, %v1406
      %1408 = vmatmul.f32.gmra.mxu0 %v1345
      %v1409 = vpop.f32.mrf.mxu0
      %v1410 = vadd.f32 0.0, %v1409
      %1411 = vmatmul.f32.gmra.mxu0 %v1348
      %v1412 = vpop.f32.mrf.mxu0
      %v1413 = vadd.f32 0.0, %v1412
      %1414 = vmatmul.f32.gmra.mxu0 %v1351
      %v1415 = vpop.f32.mrf.mxu0
      %v1416 = vadd.f32 0.0, %v1415
      %1417 = vmatmul.f32.gmra.mxu0 %v1354
      %v1418 = vpop.f32.mrf.mxu0
      %v1419 = vadd.f32 0.0, %v1418
      %1420 = vmatmul.f32.gmra.mxu0 %v1357
      %v1421 = vpop.f32.mrf.mxu0
      %v1422 = vadd.f32 0.0, %v1421
      %1423 = vmatmul.f32.gmra.mxu0 %v1360
      %v1424 = vpop.f32.mrf.mxu0
      %v1425 = vadd.f32 0.0, %v1424
      %1426 = vmatmul.f32.gmra.mxu0 %v1363
      %v1427 = vpop.f32.mrf.mxu0
      %v1428 = vadd.f32 0.0, %v1427
      %1429 = vmatmul.f32.gmra.mxu0 %v1366
      %v1430 = vpop.f32.mrf.mxu0
      %v1431 = vadd.f32 0.0, %v1430
      %1432 = vmatmul.f32.gmra.mxu0 %v1369
      %v1433 = vpop.f32.mrf.mxu0
      %v1434 = vadd.f32 0.0, %v1433
      %1435 = vmatmul.f32.gmra.mxu0 %v1372
      %v1436 = vpop.f32.mrf.mxu0
      %v1437 = vadd.f32 0.0, %v1436
      %1438 = vmatmul.f32.gmra.mxu0 %v1375
      %v1439 = vpop.f32.mrf.mxu0
      %v1440 = vadd.f32 0.0, %v1439
      %1441 = vmatmul.f32.gmra.mxu0 %v1378
      %v1442 = vpop.f32.mrf.mxu0
      %v1443 = vadd.f32 0.0, %v1442
      %1444 = vmatmul.f32.gmra.mxu0 %v1381
      %v1445 = vpop.f32.mrf.mxu0
      %v1446 = vadd.f32 0.0, %v1445
      %1447 = vdwg.mxu0
      %v1448 = vadd.f32 %v1301, %v1401
      %v1449 = vadd.f32 %v1302, %v1404
      %v1450 = vadd.f32 %v1303, %v1407
      %v1451 = vadd.f32 %v1304, %v1410
      %v1452 = vadd.f32 %v1305, %v1413
      %v1453 = vadd.f32 %v1306, %v1416
      %v1454 = vadd.f32 %v1307, %v1419
      %v1455 = vadd.f32 %v1308, %v1422
      %v1456 = vadd.f32 %v1309, %v1425
      %v1457 = vadd.f32 %v1310, %v1428
      %v1458 = vadd.f32 %v1311, %v1431
      %v1459 = vadd.f32 %v1312, %v1434
      %v1460 = vadd.f32 %v1313, %v1437
      %v1461 = vadd.f32 %v1314, %v1440
      %v1462 = vadd.f32 %v1315, %v1443
      %v1463 = vadd.f32 %v1316, %v1446
      %1464 = vmatpush.msra.mxu0 %v1463
      %1465 = vmatpush.msra.mxu0 %v1462
      %1466 = vmatpush.msra.mxu0 %v1461
      %1467 = vmatpush.msra.mxu0 %v1460
      %1468 = vmatpush.msra.mxu0 %v1459
      %1469 = vmatpush.msra.mxu0 %v1458
      %1470 = vmatpush.msra.mxu0 %v1457
      %1471 = vmatpush.msra.mxu0 %v1456
      %1472 = vmatpush.msra.mxu0 %v1455
      %1473 = vmatpush.msra.mxu0 %v1454
      %1474 = vmatpush.msra.mxu0 %v1453
      %1475 = vmatpush.msra.mxu0 %v1452
      %1476 = vmatpush.msra.mxu0 %v1451
      %1477 = vmatpush.msra.mxu0 %v1450
      %1478 = vmatpush.msra.mxu0 %v1449
      %1479 = vmatpush.msra.mxu0 %v1448
      %1480 = vmatmul.f32.gmra.mxu0 1.0
      %v1481 = vpop.f32.mrf.mxu0
      %v1482 = vadd.f32 0.0, %v1481
      %1483 = vdwg.mxu0
      %v1484 = vmul.f32 %v1448, %v1448
      %v1485 = vmul.f32 %v1449, %v1449
      %v1486 = vmul.f32 %v1450, %v1450
      %v1487 = vmul.f32 %v1451, %v1451
      %v1488 = vmul.f32 %v1452, %v1452
      %v1489 = vmul.f32 %v1453, %v1453
      %v1490 = vmul.f32 %v1454, %v1454
      %v1491 = vmul.f32 %v1455, %v1455
      %v1492 = vmul.f32 %v1456, %v1456
      %v1493 = vmul.f32 %v1457, %v1457
      %v1494 = vmul.f32 %v1458, %v1458
      %v1495 = vmul.f32 %v1459, %v1459
      %v1496 = vmul.f32 %v1460, %v1460
      %v1497 = vmul.f32 %v1461, %v1461
      %v1498 = vmul.f32 %v1462, %v1462
      %v1499 = vmul.f32 %v1463, %v1463
      %1500 = vmatpush.msra.mxu0 %v1499
      %1501 = vmatpush.msra.mxu0 %v1498
      %1502 = vmatpush.msra.mxu0 %v1497
      %1503 = vmatpush.msra.mxu0 %v1496
      %1504 = vmatpush.msra.mxu0 %v1495
      %1505 = vmatpush.msra.mxu0 %v1494
      %1506 = vmatpush.msra.mxu0 %v1493
      %1507 = vmatpush.msra.mxu0 %v1492
      %1508 = vmatpush.msra.mxu0 %v1491
      %1509 = vmatpush.msra.mxu0 %v1490
      %1510 = vmatpush.msra.mxu0 %v1489
      %1511 = vmatpush.msra.mxu0 %v1488
      %1512 = vmatpush.msra.mxu0 %v1487
      %1513 = vmatpush.msra.mxu0 %v1486
      %1514 = vmatpush.msra.mxu0 %v1485
      %1515 = vmatpush.msra.mxu0 %v1484
      %1516 = vmatmul.f32.gmra.mxu0 1.0
      %v1517 = vpop.f32.mrf.mxu0
      %v1518 = vadd.f32 0.0, %v1517
      %1519 = vdwg.mxu0
      %v1521 = vrot.slane %v1518, 7
      %vm1523 = vcmask 1040384
      %v1524 = vsel %vm1523, %v1482, %v1521
      %1525 = vst [vmem:[%s163] sm:$0x3] %v1524
      %p1526 = scmp.lt.s32.totalorder %s17, 1
      %s1527 = scalar_select %p1526, %s17, 1
      %p1528 = scmp.lt.s32.totalorder %s18, 1
      %s1529 = scalar_select %p1528, %s18, 1
      %s1530 = smul.addr %s1527, 2
      %s1531 = sadd.s32 %s1529, %s1530
      %s1532 = smul.addr %s1531, 2
      %s1533 = scalar_lea.vmem %s2, %s1532
      // Predicated region
      $region29: #{basic_conv.2} parent=27 // pred_check
        %p1534 = pneg %p92
      $region30: #{basic_conv.2} parent=27 // pred_check_branch
        %1536 = sbr.rel (%p1534) target = $region32
      $region31: #{basic_conv.2} parent=27 // pred_region
        _
      $region32: #{basic_conv.2} parent=27 // pred_fallthru
        _
    $region28: #{basic_conv.2} parent=5 // pred_fallthru
      _
    %p1537 = scmp.le.s32.totalorder 2, %s8
    // Predicated region
    $region33: #{basic_conv.2} parent=5 // pred_check
      %p1538 = pneg %p1537
    $region34: #{basic_conv.2} parent=5 // pred_check_branch
      %1540 = sbr.rel (%p1538) target = $region36
    $region35: #{basic_conv.2} parent=5 // pred_region
      %s1541 = ssub.s32 %s8, 2
      // Predicated region
      $region37: #{basic_conv.2} parent=35 // pred_check
        %p1542 = pneg %p98
      $region38: #{basic_conv.2} parent=35 // pred_check_branch
        %1544 = sbr.rel (%p1542) target = $region40
      $region39: #{basic_conv.2} parent=35 // pred_region
        %p1545 = scmp.lt.s32.totalorder %s19, 1
        %s1546 = scalar_select %p1545, %s19, 1
        %p1547 = scmp.lt.s32.totalorder %s20, 1
        %s1548 = scalar_select %p1547, %s20, 1
        %s1549 = smul.addr %s1546, 2
        %s1550 = sadd.s32 %s1548, %s1549
        %s1551 = smul.addr %s1550, 2
        %s1552 = scalar_lea.vmem %s2, %s1551
      $region40: #{basic_conv.2} parent=35 // pred_fallthru
        _
    $region36: #{basic_conv.2} parent=5 // pred_fallthru
      _
  $region6: #{basic_conv.2} parent=0 // loop_footer
    %s12 = sadd.s32 1, %s8
  $region7: #{basic_conv.2} parent=0 // loop_footer_branch
    %7 = sbr.rel target = $region3
  $region8: #{basic_conv.2} parent=0 // loop_exit
    _

// kernel: basic_conv.3
$region0: #{basic_conv.3}
  #allocation0 [shape = 'u32[]', space=smem, size = 0x4, offset = 0x4, fixed_abs, tag = 'smem constant byte address 0x4 - core index']
  #allocation1 [shape = 'u32[72,128]{1,0:T(1,128)}', space=vmem, size = 0x9000, scoped, tag = 'internal scratch']
  %s0 = inlined_call_operand.vmem [shape: f32[2,18,18,8], index: 0, kind: input, shape index: {}]
  %s1 = inlined_call_operand.vmem [shape: f32[9,8,128], index: 1, kind: input, shape index: {}]
  %s2 = inlined_call_operand.vmem [shape: f32[1,128], index: 2, kind: input, shape index: {}]
  %s3 = inlined_call_operand.vmem [shape: f32[1,128], index: 3, kind: input, shape index: {}]
  %s4 = inlined_call_operand.vmem [shape: f32[2,256,128], index: 4, kind: output, shape index: {}]
  %s5 = sld [smem:[#allocation0]]
  $region49: #{basic_conv.3} parent=0
    _
  %s7 = ssub.s32 1, %s5
  %s8 = scalar_select 0, %s7, %s5
  loop: start=0, step=1, limit=6
  $region2: #{basic_conv.3} parent=0 // loop_pre_header
    _
  $region3: #{basic_conv.3} parent=0 // loop_header
    %s10 = sphi 0, %s14
    %p11 = scmp.ge.s32.totalorder %s10, 6
    %s17 = sphi 0, %s29
    %s18 = sphi 0, %s25
    %s19 = sphi 0, %s17
    %s20 = sphi 0, %s18
    %s21 = sphi 0, %s19
    %s22 = sphi 0, %s20
    %s32 = sphi 0, %s34
    %s35 = sphi 0, %s32
    %s36 = sphi 0, %s35
    %s52 = sphi 0, %s36
    %s56 = sphi 0, %s56
    %s58 = sphi 0, %s56
    %s59 = sphi 0, %s58
    %s73 = sphi 0, %s59
    %s77 = sphi 0, %s77
    %s79 = sphi 0, %s77
    %s80 = sphi 0, %s79
    %s94 = sphi 0, %s80
    %s98 = sphi 0, %s98
    %s100 = sphi 0, %s98
    %s101 = sphi 0, %s100
    %s115 = sphi 0, %s101
    %s123 = sphi 0, %s125
    %s126 = sphi 0, %s123
    %s127 = sphi 0, %s126
    %s143 = sphi 0, %s127
  $region4: #{basic_conv.3} parent=0 // loop_header_branch
    %13 = sbr.rel (%p11) target = $region8
  $region5: #{basic_conv.3} parent=0 // loop_body
    %s15 = ssub.s32 %s10, 1
    %s16 = ssub.s32 %s10, 2
    %s23 = sadd.s32 1, %s18
    %p24 = scmp.ge.s32.totalorder %s23, 2
    %s25 = scalar_select %p24, 0, %s23
    %s26 = sadd.s32 1, %s17
    %s27 = scalar_select %p24, %s26, %s17
    %p28 = scmp.ge.s32.totalorder %s27, 2
    %s29 = scalar_select %p28, 0, %s27
    %s30 = ssub.s32 %s17, %s29
    %p31 = scmp.eq.s32.totalorder %s30, 0
    %s33 = sadd.s32 %s32, 1
    %s34 = scalar_select %p31, %s32, %s33
    %p37 = pneg %p31
    %p38 = scmp.eq.s32.totalorder %s10, 3
    %p39 = por %p37, %p38
    %p40 = scmp.ne.s32.totalorder %s32, %s35
    %p41 = scmp.eq.s32.totalorder %s10, 0
    %p42 = por %p40, %p41
    %p43 = scmp.ne.s32.totalorder %s32, %s35
    %p44 = scmp.eq.s32.totalorder %s15, 3
    %p45 = por %p43, %p44
    %p46 = scmp.ne.s32.totalorder %s35, %s36
    %p47 = scmp.eq.s32.totalorder %s15, 0
    %p48 = por %p46, %p47
    %p49 = scmp.ne.s32.totalorder %s35, %s36
    %p50 = scmp.eq.s32.totalorder %s16, 3
    %p51 = por %p49, %p50
    %p53 = scmp.ne.s32.totalorder %s36, %s52
    %p54 = scmp.eq.s32.totalorder %s16, 0
    %p55 = por %p53, %p54
    %s57 = sadd.s32 %s56, 1
    %p60 = scmp.eq.s32.totalorder %s10, 3
    %p61 = scmp.ne.s32.totalorder %s56, %s58
    %p62 = scmp.eq.s32.totalorder %s10, 0
    %p63 = por %p61, %p62
    %p64 = scmp.ne.s32.totalorder %s56, %s58
    %p65 = scmp.eq.s32.totalorder %s15, 3
    %p66 = por %p64, %p65
    %p67 = scmp.ne.s32.totalorder %s58, %s59
    %p68 = scmp.eq.s32.totalorder %s15, 0
    %p69 = por %p67, %p68
    %p70 = scmp.ne.s32.totalorder %s58, %s59
    %p71 = scmp.eq.s32.totalorder %s16, 3
    %p72 = por %p70, %p71
    %p74 = scmp.ne.s32.totalorder %s59, %s73
    %p75 = scmp.eq.s32.totalorder %s16, 0
    %p76 = por %p74, %p75
    %s78 = sadd.s32 %s77, 1
    %p81 = scmp.eq.s32.totalorder %s10, 3
    %p82 = scmp.ne.s32.totalorder %s77, %s79
    %p83 = scmp.eq.s32.totalorder %s10, 0
    %p84 = por %p82, %p83
    %p85 = scmp.ne.s32.totalorder %s77, %s79
    %p86 = scmp.eq.s32.totalorder %s15, 3
    %p87 = por %p85, %p86
    %p88 = scmp.ne.s32.totalorder %s79, %s80
    %p89 = scmp.eq.s32.totalorder %s15, 0
    %p90 = por %p88, %p89
    %p91 = scmp.ne.s32.totalorder %s79, %s80
    %p92 = scmp.eq.s32.totalorder %s16, 3
    %p93 = por %p91, %p92
    %p95 = scmp.ne.s32.totalorder %s80, %s94
    %p96 = scmp.eq.s32.totalorder %s16, 0
    %p97 = por %p95, %p96
    %s99 = sadd.s32 %s98, 1
    %p102 = scmp.eq.s32.totalorder %s10, 3
    %p103 = scmp.ne.s32.totalorder %s98, %s100
    %p104 = scmp.eq.s32.totalorder %s10, 0
    %p105 = por %p103, %p104
    %p106 = scmp.ne.s32.totalorder %s98, %s100
    %p107 = scmp.eq.s32.totalorder %s15, 3
    %p108 = por %p106, %p107
    %p109 = scmp.ne.s32.totalorder %s100, %s101
    %p110 = scmp.eq.s32.totalorder %s15, 0
    %p111 = por %p109, %p110
    %p112 = scmp.ne.s32.totalorder %s100, %s101
    %p113 = scmp.eq.s32.totalorder %s16, 3
    %p114 = por %p112, %p113
    %p116 = scmp.ne.s32.totalorder %s101, %s115
    %p117 = scmp.eq.s32.totalorder %s16, 0
    %p118 = por %p116, %p117
    %s119 = ssub.s32 %s17, %s29
    %s120 = ssub.s32 %s18, %s25
    %s121 = sor.u32 %s119, %s120
    %p122 = scmp.eq.s32.totalorder %s121, 0
    %s124 = sadd.s32 %s123, 1
    %s125 = scalar_select %p122, %s123, %s124
    %p128 = pneg %p122
    %p129 = scmp.eq.s32.totalorder %s10, 3
    %p130 = por %p128, %p129
    %p131 = scmp.ne.s32.totalorder %s123, %s126
    %p132 = scmp.eq.s32.totalorder %s10, 0
    %p133 = por %p131, %p132
    %p134 = scmp.ne.s32.totalorder %s123, %s126
    %p135 = scmp.eq.s32.totalorder %s15, 3
    %p136 = por %p134, %p135
    %p137 = scmp.ne.s32.totalorder %s126, %s127
    %p138 = scmp.eq.s32.totalorder %s15, 0
    %p139 = por %p137, %p138
    %p140 = scmp.ne.s32.totalorder %s126, %s127
    %p141 = scmp.eq.s32.totalorder %s16, 3
    %p142 = por %p140, %p141
    %p144 = scmp.ne.s32.totalorder %s127, %s143
    %p145 = scmp.eq.s32.totalorder %s16, 0
    %p146 = por %p144, %p145
    %p147 = scmp.le.s32.totalorder 1, %s10
    %p148 = scmp.lt.s32.totalorder %s10, 5
    %p149 = pnand %p147, %p148
    %p150 = pneg %p149
    // Predicated region
    $region9: #{basic_conv.3} parent=5 // pred_check
      _
    $region10: #{basic_conv.3} parent=5 // pred_check_branch
      %152 = sbr.rel (%p149) target = $region12
    $region11: #{basic_conv.3} parent=5 // pred_region
      %s153 = ssub.s32 %s10, 1
      // Predicated region
      $region13: #{basic_conv.3} parent=11 // pred_check
        %p154 = pneg %p69
      $region14: #{basic_conv.3} parent=11 // pred_check_branch
        %156 = sbr.rel (%p154) target = $region16
      $region15: #{basic_conv.3} parent=11 // pred_region
        _
      $region16: #{basic_conv.3} parent=11 // pred_fallthru
        _
      // Predicated region
      $region17: #{basic_conv.3} parent=11 // pred_check
        %p157 = pneg %p90
      $region18: #{basic_conv.3} parent=11 // pred_check_branch
        %159 = sbr.rel (%p157) target = $region20
      $region19: #{basic_conv.3} parent=11 // pred_region
        _
      $region20: #{basic_conv.3} parent=11 // pred_fallthru
        _
      // Predicated region
      $region21: #{basic_conv.3} parent=11 // pred_check
        %p160 = pneg %p111
      $region22: #{basic_conv.3} parent=11 // pred_check_branch
        %162 = sbr.rel (%p160) target = $region24
      $region23: #{basic_conv.3} parent=11 // pred_region
        _
      $region24: #{basic_conv.3} parent=11 // pred_fallthru
        _
    $region12: #{basic_conv.3} parent=5 // pred_fallthru
      _
    %p163 = scmp.lt.s32.totalorder %s10, 4
    // Predicated region
    $region25: #{basic_conv.3} parent=5 // pred_check
      %p164 = pneg %p163
    $region26: #{basic_conv.3} parent=5 // pred_check_branch
      %166 = sbr.rel (%p164) target = $region28
    $region27: #{basic_conv.3} parent=5 // pred_region
      // Predicated region
      $region29: #{basic_conv.3} parent=27 // pred_check
        %p167 = pneg %p42
      $region30: #{basic_conv.3} parent=27 // pred_check_branch
        %169 = sbr.rel (%p167) target = $region32
      $region31: #{basic_conv.3} parent=27 // pred_region
        %p170 = scmp.lt.s32.totalorder %s17, 1
        %s171 = scalar_select %p170, %s17, 1
        %s172 = smul.addr %s171, 54
        %s173 = smul.addr %s172, 8
        %s174 = scalar_lea.vmem %s0, %s173
      $region32: #{basic_conv.3} parent=27 // pred_fallthru
        _
    $region28: #{basic_conv.3} parent=5 // pred_fallthru
      _
    %p175 = scmp.le.s32.totalorder 1, %s10
    %p176 = scmp.lt.s32.totalorder %s10, 5
    %p177 = pnand %p175, %p176
    %p178 = pneg %p177
    // Predicated region
    $region33: #{basic_conv.3} parent=5 // pred_check
      _
    $region34: #{basic_conv.3} parent=5 // pred_check_branch
      %180 = sbr.rel (%p177) target = $region36
    $region35: #{basic_conv.3} parent=5 // pred_region
      %s181 = ssub.s32 %s10, 1
      %p182 = scmp.lt.s32.totalorder %s19, 1
      %s183 = scalar_select %p182, %s19, 1
      %s184 = smul.addr %s183, 54
      %s185 = smul.addr %s184, 8
      %s186 = scalar_lea.vmem %s0, %s185
      %p187 = pneg %p48
      %p188 = pneg %p45
      %p189 = pneg %p69
      %p190 = pneg %p66
      %p191 = pneg %p90
      %p192 = pneg %p87
      %p193 = pneg %p111
      %p194 = pneg %p108
      %p195 = pneg %p139
      %p196 = pneg %p136
      %s197 = smul.u32 16, %s20
      %p198 = scmp.lt.s32.totalorder %s19, 1
      %s199 = scalar_select %p198, %s19, 1
      %p200 = scmp.lt.s32.totalorder %s197, 31
      %s201 = scalar_select %p200, %s197, 31
      %s202 = smul.addr %s199, 32
      %s203 = sadd.s32 %s201, %s202
      %s204 = smul.addr %s203, 8
      %s205 = scalar_lea.vmem %s4, %s204
      %p206 = scmp.lt.s32.totalorder %s19, 1
      %s207 = scalar_select %p206, %s19, 1
      %s208 = smul.addr %s207, 54
      %s209 = smul.addr %s208, 8
      %s210 = scalar_lea.vmem %s0, %s209
      %s211 = smul.u32 16, %s20
      %p212 = scmp.lt.s32.totalorder %s19, 1
      %s213 = scalar_select %p212, %s19, 1
      %p214 = scmp.lt.s32.totalorder %s211, 31
      %s215 = scalar_select %p214, %s211, 31
      %s216 = smul.addr %s213, 32
      %s217 = sadd.s32 %s215, %s216
      %s218 = smul.addr %s217, 8
      %s219 = scalar_lea.vmem %s4, %s218
      %s220 = smul.u32 16, %s20
      %s221 = smul.u32 %s20, 8
      %s222 = smul.u32 %s221, 24
      %s223 = scalar_lea.vmem %s210, %s222
      %v224 = vld [vmem:[%s223] sm:$0xff]
      %v225 = vld [vmem:[%s223 + $0x8] sm:$0xff]
      %v226 = vld [vmem:[%s223 + $0x18] sm:$0xff]
      %v227 = vld [vmem:[%s223 + $0x20] sm:$0xff]
      %v228 = vld [vmem:[%s223 + $0x30] sm:$0xff]
      %v229 = vld [vmem:[%s223 + $0x38] sm:$0xff]
      %v230 = vld [vmem:[%s223 + $0x48] sm:$0xff]
      %v231 = vld [vmem:[%s223 + $0x50] sm:$0xff]
      %v232 = vld [vmem:[%s223 + $0x60] sm:$0xff]
      %v233 = vld [vmem:[%s223 + $0x68] sm:$0xff]
      %v234 = vld [vmem:[%s223 + $0x78] sm:$0xff]
      %v235 = vld [vmem:[%s223 + $0x80] sm:$0xff]
      %v236 = vld [vmem:[%s223 + $0x90] sm:$0xff]
      %v237 = vld [vmem:[%s223 + $0x98] sm:$0xff]
      %v238 = vld [vmem:[%s223 + $0xa8] sm:$0xff]
      %v239 = vld [vmem:[%s223 + $0xb0] sm:$0xff]
      %v240 = vld [vmem:[%s1] sm:$0xff]
      %v241 = vld [vmem:[%s223 + $0x1] sm:$0xff]
      %v242 = vld [vmem:[%s223 + $0x9] sm:$0xff]
      %v243 = vld [vmem:[%s223 + $0x19] sm:$0xff]
      %v244 = vld [vmem:[%s223 + $0x21] sm:$0xff]
      %v245 = vld [vmem:[%s223 + $0x31] sm:$0xff]
      %v246 = vld [vmem:[%s223 + $0x39] sm:$0xff]
      %v247 = vld [vmem:[%s223 + $0x49] sm:$0xff]
      %v248 = vld [vmem:[%s223 + $0x51] sm:$0xff]
      %v249 = vld [vmem:[%s223 + $0x61] sm:$0xff]
      %v250 = vld [vmem:[%s223 + $0x69] sm:$0xff]
      %v251 = vld [vmem:[%s223 + $0x79] sm:$0xff]
      %v252 = vld [vmem:[%s223 + $0x81] sm:$0xff]
      %v253 = vld [vmem:[%s223 + $0x91] sm:$0xff]
      %v254 = vld [vmem:[%s223 + $0x99] sm:$0xff]
      %v255 = vld [vmem:[%s223 + $0xa9] sm:$0xff]
      %v256 = vld [vmem:[%s223 + $0xb1] sm:$0xff]
      %s257 = scalar_lea.vmem %s1, 8
      %v258 = vld [vmem:[%s257] sm:$0xff]
      %vm259 = vcmask 64512
      %v261 = vsel %vm259, %v241, 0
      %v264 = vsel %vm259, %v242, 0
      %v267 = vsel %vm259, %v243, 0
      %v270 = vsel %vm259, %v244, 0
      %v273 = vsel %vm259, %v245, 0
      %v276 = vsel %vm259, %v246, 0
      %v279 = vsel %vm259, %v247, 0
      %v282 = vsel %vm259, %v248, 0
      %v285 = vsel %vm259, %v249, 0
      %v288 = vsel %vm259, %v250, 0
      %v291 = vsel %vm259, %v251, 0
      %v294 = vsel %vm259, %v252, 0
      %v297 = vsel %vm259, %v253, 0
      %v300 = vsel %vm259, %v254, 0
      %v303 = vsel %vm259, %v255, 0
      %v306 = vsel %vm259, %v256, 0
      %308 = vmatpush.msra.mxu0 0.0
      %309 = vmatpush.msra.mxu0 0.0
      %310 = vmatpush.msra.mxu0 0.0
      %311 = vmatpush.msra.mxu0 0.0
      %312 = vmatpush.msra.mxu0 0.0
      %313 = vmatpush.msra.mxu0 0.0
      %314 = vmatpush.msra.mxu0 0.0
      %315 = vmatpush.msra.mxu0 0.0
      %316 = vmatpush.msra.mxu0 0.0
      %317 = vmatpush.msra.mxu0 0.0
      %318 = vmatpush.msra.mxu0 0.0
      %319 = vmatpush.msra.mxu0 0.0
      %320 = vmatpush.msra.mxu0 0.0
      %321 = vmatpush.msra.mxu0 0.0
      %322 = vmatpush.msra.mxu0 0.0
      %323 = vmatpush.msra.mxu0 %v258
      %324 = vmatmul.f32.gmra.mxu0 %v261
      %v325 = vpop.f32.mrf.mxu0
      %v326 = vadd.f32 0.0, %v325
      %327 = vmatmul.f32.gmra.mxu0 %v264
      %v328 = vpop.f32.mrf.mxu0
      %v329 = vadd.f32 0.0, %v328
      %330 = vmatmul.f32.gmra.mxu0 %v267
      %v331 = vpop.f32.mrf.mxu0
      %v332 = vadd.f32 0.0, %v331
      %333 = vmatmul.f32.gmra.mxu0 %v270
      %v334 = vpop.f32.mrf.mxu0
      %v335 = vadd.f32 0.0, %v334
      %336 = vmatmul.f32.gmra.mxu0 %v273
      %v337 = vpop.f32.mrf.mxu0
      %v338 = vadd.f32 0.0, %v337
      %339 = vmatmul.f32.gmra.mxu0 %v276
      %v340 = vpop.f32.mrf.mxu0
      %v341 = vadd.f32 0.0, %v340
      %342 = vmatmul.f32.gmra.mxu0 %v279
      %v343 = vpop.f32.mrf.mxu0
      %v344 = vadd.f32 0.0, %v343
      %345 = vmatmul.f32.gmra.mxu0 %v282
      %v346 = vpop.f32.mrf.mxu0
      %v347 = vadd.f32 0.0, %v346
      %348 = vmatmul.f32.gmra.mxu0 %v285
      %v349 = vpop.f32.mrf.mxu0
      %v350 = vadd.f32 0.0, %v349
      %351 = vmatmul.f32.gmra.mxu0 %v288
      %v352 = vpop.f32.mrf.mxu0
      %v353 = vadd.f32 0.0, %v352
      %354 = vmatmul.f32.gmra.mxu0 %v291
      %v355 = vpop.f32.mrf.mxu0
      %v356 = vadd.f32 0.0, %v355
      %357 = vmatmul.f32.gmra.mxu0 %v294
      %v358 = vpop.f32.mrf.mxu0
      %v359 = vadd.f32 0.0, %v358
      %360 = vmatmul.f32.gmra.mxu0 %v297
      %v361 = vpop.f32.mrf.mxu0
      %v362 = vadd.f32 0.0, %v361
      %363 = vmatmul.f32.gmra.mxu0 %v300
      %v364 = vpop.f32.mrf.mxu0
      %v365 = vadd.f32 0.0, %v364
      %366 = vmatmul.f32.gmra.mxu0 %v303
      %v367 = vpop.f32.mrf.mxu0
      %v368 = vadd.f32 0.0, %v367
      %369 = vmatmul.f32.gmra.mxu0 %v306
      %v370 = vpop.f32.mrf.mxu0
      %v371 = vadd.f32 0.0, %v370
      %372 = vdwg.mxu0
      %v374 = vsel %vm259, %v224, 0
      %v377 = vsel %vm259, %v225, 0
      %v380 = vsel %vm259, %v226, 0
      %v383 = vsel %vm259, %v227, 0
      %v386 = vsel %vm259, %v228, 0
      %v389 = vsel %vm259, %v229, 0
      %v392 = vsel %vm259, %v230, 0
      %v395 = vsel %vm259, %v231, 0
      %v398 = vsel %vm259, %v232, 0
      %v401 = vsel %vm259, %v233, 0
      %v404 = vsel %vm259, %v234, 0
      %v407 = vsel %vm259, %v235, 0
      %v410 = vsel %vm259, %v236, 0
      %v413 = vsel %vm259, %v237, 0
      %v416 = vsel %vm259, %v238, 0
      %v419 = vsel %vm259, %v239, 0
      %421 = vmatpush.msra.mxu0 0.0
      %422 = vmatpush.msra.mxu0 0.0
      %423 = vmatpush.msra.mxu0 0.0
      %424 = vmatpush.msra.mxu0 0.0
      %425 = vmatpush.msra.mxu0 0.0
      %426 = vmatpush.msra.mxu0 0.0
      %427 = vmatpush.msra.mxu0 0.0
      %428 = vmatpush.msra.mxu0 0.0
      %429 = vmatpush.msra.mxu0 0.0
      %430 = vmatpush.msra.mxu0 0.0
      %431 = vmatpush.msra.mxu0 0.0
      %432 = vmatpush.msra.mxu0 0.0
      %433 = vmatpush.msra.mxu0 0.0
      %434 = vmatpush.msra.mxu0 0.0
      %435 = vmatpush.msra.mxu0 0.0
      %436 = vmatpush.msra.mxu0 %v240
      %437 = vmatmul.f32.gmra.mxu0 %v374
      %v438 = vpop.f32.mrf.mxu0
      %v439 = vadd.f32 %v326, %v438
      %440 = vmatmul.f32.gmra.mxu0 %v377
      %v441 = vpop.f32.mrf.mxu0
      %v442 = vadd.f32 %v329, %v441
      %443 = vmatmul.f32.gmra.mxu0 %v380
      %v444 = vpop.f32.mrf.mxu0
      %v445 = vadd.f32 %v332, %v444
      %446 = vmatmul.f32.gmra.mxu0 %v383
      %v447 = vpop.f32.mrf.mxu0
      %v448 = vadd.f32 %v335, %v447
      %449 = vmatmul.f32.gmra.mxu0 %v386
      %v450 = vpop.f32.mrf.mxu0
      %v451 = vadd.f32 %v338, %v450
      %452 = vmatmul.f32.gmra.mxu0 %v389
      %v453 = vpop.f32.mrf.mxu0
      %v454 = vadd.f32 %v341, %v453
      %455 = vmatmul.f32.gmra.mxu0 %v392
      %v456 = vpop.f32.mrf.mxu0
      %v457 = vadd.f32 %v344, %v456
      %458 = vmatmul.f32.gmra.mxu0 %v395
      %v459 = vpop.f32.mrf.mxu0
      %v460 = vadd.f32 %v347, %v459
      %461 = vmatmul.f32.gmra.mxu0 %v398
      %v462 = vpop.f32.mrf.mxu0
      %v463 = vadd.f32 %v350, %v462
      %464 = vmatmul.f32.gmra.mxu0 %v401
      %v465 = vpop.f32.mrf.mxu0
      %v466 = vadd.f32 %v353, %v465
      %467 = vmatmul.f32.gmra.mxu0 %v404
      %v468 = vpop.f32.mrf.mxu0
      %v469 = vadd.f32 %v356, %v468
      %470 = vmatmul.f32.gmra.mxu0 %v407
      %v471 = vpop.f32.mrf.mxu0
      %v472 = vadd.f32 %v359, %v471
      %473 = vmatmul.f32.gmra.mxu0 %v410
      %v474 = vpop.f32.mrf.mxu0
      %v475 = vadd.f32 %v362, %v474
      %476 = vmatmul.f32.gmra.mxu0 %v413
      %v477 = vpop.f32.mrf.mxu0
      %v478 = vadd.f32 %v365, %v477
      %479 = vmatmul.f32.gmra.mxu0 %v416
      %v480 = vpop.f32.mrf.mxu0
      %v481 = vadd.f32 %v368, %v480
      %482 = vmatmul.f32.gmra.mxu0 %v419
      %v483 = vpop.f32.mrf.mxu0
      %v484 = vadd.f32 %v371, %v483
      %485 = vdwg.mxu0
      %v486 = vld [vmem:[%s223 + $0x2] sm:$0xff]
      %v487 = vld [vmem:[%s223 + $0xa] sm:$0xff]
      %v488 = vld [vmem:[%s223 + $0x1a] sm:$0xff]
      %v489 = vld [vmem:[%s223 + $0x22] sm:$0xff]
      %v490 = vld [vmem:[%s223 + $0x32] sm:$0xff]
      %v491 = vld [vmem:[%s223 + $0x3a] sm:$0xff]
      %v492 = vld [vmem:[%s223 + $0x4a] sm:$0xff]
      %v493 = vld [vmem:[%s223 + $0x52] sm:$0xff]
      %v494 = vld [vmem:[%s223 + $0x62] sm:$0xff]
      %v495 = vld [vmem:[%s223 + $0x6a] sm:$0xff]
      %v496 = vld [vmem:[%s223 + $0x7a] sm:$0xff]
      %v497 = vld [vmem:[%s223 + $0x82] sm:$0xff]
      %v498 = vld [vmem:[%s223 + $0x92] sm:$0xff]
      %v499 = vld [vmem:[%s223 + $0x9a] sm:$0xff]
      %v500 = vld [vmem:[%s223 + $0xaa] sm:$0xff]
      %v501 = vld [vmem:[%s223 + $0xb2] sm:$0xff]
      %s502 = scalar_lea.vmem %s1, 16
      %v503 = vld [vmem:[%s502] sm:$0xff]
      %v505 = vsel %vm259, %v486, 0
      %v508 = vsel %vm259, %v487, 0
      %v511 = vsel %vm259, %v488, 0
      %v514 = vsel %vm259, %v489, 0
      %v517 = vsel %vm259, %v490, 0
      %v520 = vsel %vm259, %v491, 0
      %v523 = vsel %vm259, %v492, 0
      %v526 = vsel %vm259, %v493, 0
      %v529 = vsel %vm259, %v494, 0
      %v532 = vsel %vm259, %v495, 0
      %v535 = vsel %vm259, %v496, 0
      %v538 = vsel %vm259, %v497, 0
      %v541 = vsel %vm259, %v498, 0
      %v544 = vsel %vm259, %v499, 0
      %v547 = vsel %vm259, %v500, 0
      %v550 = vsel %vm259, %v501, 0
      %552 = vmatpush.msra.mxu0 0.0
      %553 = vmatpush.msra.mxu0 0.0
      %554 = vmatpush.msra.mxu0 0.0
      %555 = vmatpush.msra.mxu0 0.0
      %556 = vmatpush.msra.mxu0 0.0
      %557 = vmatpush.msra.mxu0 0.0
      %558 = vmatpush.msra.mxu0 0.0
      %559 = vmatpush.msra.mxu0 0.0
      %560 = vmatpush.msra.mxu0 0.0
      %561 = vmatpush.msra.mxu0 0.0
      %562 = vmatpush.msra.mxu0 0.0
      %563 = vmatpush.msra.mxu0 0.0
      %564 = vmatpush.msra.mxu0 0.0
      %565 = vmatpush.msra.mxu0 0.0
      %566 = vmatpush.msra.mxu0 0.0
      %567 = vmatpush.msra.mxu0 %v503
      %568 = vmatmul.f32.gmra.mxu0 %v505
      %v569 = vpop.f32.mrf.mxu0
      %v570 = vadd.f32 0.0, %v569
      %571 = vmatmul.f32.gmra.mxu0 %v508
      %v572 = vpop.f32.mrf.mxu0
      %v573 = vadd.f32 0.0, %v572
      %574 = vmatmul.f32.gmra.mxu0 %v511
      %v575 = vpop.f32.mrf.mxu0
      %v576 = vadd.f32 0.0, %v575
      %577 = vmatmul.f32.gmra.mxu0 %v514
      %v578 = vpop.f32.mrf.mxu0
      %v579 = vadd.f32 0.0, %v578
      %580 = vmatmul.f32.gmra.mxu0 %v517
      %v581 = vpop.f32.mrf.mxu0
      %v582 = vadd.f32 0.0, %v581
      %583 = vmatmul.f32.gmra.mxu0 %v520
      %v584 = vpop.f32.mrf.mxu0
      %v585 = vadd.f32 0.0, %v584
      %586 = vmatmul.f32.gmra.mxu0 %v523
      %v587 = vpop.f32.mrf.mxu0
      %v588 = vadd.f32 0.0, %v587
      %589 = vmatmul.f32.gmra.mxu0 %v526
      %v590 = vpop.f32.mrf.mxu0
      %v591 = vadd.f32 0.0, %v590
      %592 = vmatmul.f32.gmra.mxu0 %v529
      %v593 = vpop.f32.mrf.mxu0
      %v594 = vadd.f32 0.0, %v593
      %595 = vmatmul.f32.gmra.mxu0 %v532
      %v596 = vpop.f32.mrf.mxu0
      %v597 = vadd.f32 0.0, %v596
      %598 = vmatmul.f32.gmra.mxu0 %v535
      %v599 = vpop.f32.mrf.mxu0
      %v600 = vadd.f32 0.0, %v599
      %601 = vmatmul.f32.gmra.mxu0 %v538
      %v602 = vpop.f32.mrf.mxu0
      %v603 = vadd.f32 0.0, %v602
      %604 = vmatmul.f32.gmra.mxu0 %v541
      %v605 = vpop.f32.mrf.mxu0
      %v606 = vadd.f32 0.0, %v605
      %607 = vmatmul.f32.gmra.mxu0 %v544
      %v608 = vpop.f32.mrf.mxu0
      %v609 = vadd.f32 0.0, %v608
      %610 = vmatmul.f32.gmra.mxu0 %v547
      %v611 = vpop.f32.mrf.mxu0
      %v612 = vadd.f32 0.0, %v611
      %613 = vmatmul.f32.gmra.mxu0 %v550
      %v614 = vpop.f32.mrf.mxu0
      %v615 = vadd.f32 0.0, %v614
      %616 = vdwg.mxu0
      %v617 = vadd.f32 %v439, %v570
      %v618 = vadd.f32 %v442, %v573
      %v619 = vadd.f32 %v445, %v576
      %v620 = vadd.f32 %v448, %v579
      %v621 = vadd.f32 %v451, %v582
      %v622 = vadd.f32 %v454, %v585
      %v623 = vadd.f32 %v457, %v588
      %v624 = vadd.f32 %v460, %v591
      %v625 = vadd.f32 %v463, %v594
      %v626 = vadd.f32 %v466, %v597
      %v627 = vadd.f32 %v469, %v600
      %v628 = vadd.f32 %v472, %v603
      %v629 = vadd.f32 %v475, %v606
      %v630 = vadd.f32 %v478, %v609
      %v631 = vadd.f32 %v481, %v612
      %v632 = vadd.f32 %v484, %v615
      %s633 = sadd.s32 %s221, 1
      %s634 = smul.u32 %s633, 24
      %s635 = scalar_lea.vmem %s210, %s634
      %v636 = vld [vmem:[%s635] sm:$0xff]
      %v637 = vld [vmem:[%s635 + $0x8] sm:$0xff]
      %v638 = vld [vmem:[%s635 + $0x18] sm:$0xff]
      %v639 = vld [vmem:[%s635 + $0x20] sm:$0xff]
      %v640 = vld [vmem:[%s635 + $0x30] sm:$0xff]
      %v641 = vld [vmem:[%s635 + $0x38] sm:$0xff]
      %v642 = vld [vmem:[%s635 + $0x48] sm:$0xff]
      %v643 = vld [vmem:[%s635 + $0x50] sm:$0xff]
      %v644 = vld [vmem:[%s635 + $0x60] sm:$0xff]
      %v645 = vld [vmem:[%s635 + $0x68] sm:$0xff]
      %v646 = vld [vmem:[%s635 + $0x78] sm:$0xff]
      %v647 = vld [vmem:[%s635 + $0x80] sm:$0xff]
      %v648 = vld [vmem:[%s635 + $0x90] sm:$0xff]
      %v649 = vld [vmem:[%s635 + $0x98] sm:$0xff]
      %v650 = vld [vmem:[%s635 + $0xa8] sm:$0xff]
      %v651 = vld [vmem:[%s635 + $0xb0] sm:$0xff]
      %s652 = scalar_lea.vmem %s1, 24
      %v653 = vld [vmem:[%s652] sm:$0xff]
      %v655 = vsel %vm259, %v636, 0
      %v658 = vsel %vm259, %v637, 0
      %v661 = vsel %vm259, %v638, 0
      %v664 = vsel %vm259, %v639, 0
      %v667 = vsel %vm259, %v640, 0
      %v670 = vsel %vm259, %v641, 0
      %v673 = vsel %vm259, %v642, 0
      %v676 = vsel %vm259, %v643, 0
      %v679 = vsel %vm259, %v644, 0
      %v682 = vsel %vm259, %v645, 0
      %v685 = vsel %vm259, %v646, 0
      %v688 = vsel %vm259, %v647, 0
      %v691 = vsel %vm259, %v648, 0
      %v694 = vsel %vm259, %v649, 0
      %v697 = vsel %vm259, %v650, 0
      %v700 = vsel %vm259, %v651, 0
      %702 = vmatpush.msra.mxu0 0.0
      %703 = vmatpush.msra.mxu0 0.0
      %704 = vmatpush.msra.mxu0 0.0
      %705 = vmatpush.msra.mxu0 0.0
      %706 = vmatpush.msra.mxu0 0.0
      %707 = vmatpush.msra.mxu0 0.0
      %708 = vmatpush.msra.mxu0 0.0
      %709 = vmatpush.msra.mxu0 0.0
      %710 = vmatpush.msra.mxu0 0.0
      %711 = vmatpush.msra.mxu0 0.0
      %712 = vmatpush.msra.mxu0 0.0
      %713 = vmatpush.msra.mxu0 0.0
      %714 = vmatpush.msra.mxu0 0.0
      %715 = vmatpush.msra.mxu0 0.0
      %716 = vmatpush.msra.mxu0 0.0
      %717 = vmatpush.msra.mxu0 %v653
      %718 = vmatmul.f32.gmra.mxu0 %v655
      %v719 = vpop.f32.mrf.mxu0
      %v720 = vadd.f32 0.0, %v719
      %721 = vmatmul.f32.gmra.mxu0 %v658
      %v722 = vpop.f32.mrf.mxu0
      %v723 = vadd.f32 0.0, %v722
      %724 = vmatmul.f32.gmra.mxu0 %v661
      %v725 = vpop.f32.mrf.mxu0
      %v726 = vadd.f32 0.0, %v725
      %727 = vmatmul.f32.gmra.mxu0 %v664
      %v728 = vpop.f32.mrf.mxu0
      %v729 = vadd.f32 0.0, %v728
      %730 = vmatmul.f32.gmra.mxu0 %v667
      %v731 = vpop.f32.mrf.mxu0
      %v732 = vadd.f32 0.0, %v731
      %733 = vmatmul.f32.gmra.mxu0 %v670
      %v734 = vpop.f32.mrf.mxu0
      %v735 = vadd.f32 0.0, %v734
      %736 = vmatmul.f32.gmra.mxu0 %v673
      %v737 = vpop.f32.mrf.mxu0
      %v738 = vadd.f32 0.0, %v737
      %739 = vmatmul.f32.gmra.mxu0 %v676
      %v740 = vpop.f32.mrf.mxu0
      %v741 = vadd.f32 0.0, %v740
      %742 = vmatmul.f32.gmra.mxu0 %v679
      %v743 = vpop.f32.mrf.mxu0
      %v744 = vadd.f32 0.0, %v743
      %745 = vmatmul.f32.gmra.mxu0 %v682
      %v746 = vpop.f32.mrf.mxu0
      %v747 = vadd.f32 0.0, %v746
      %748 = vmatmul.f32.gmra.mxu0 %v685
      %v749 = vpop.f32.mrf.mxu0
      %v750 = vadd.f32 0.0, %v749
      %751 = vmatmul.f32.gmra.mxu0 %v688
      %v752 = vpop.f32.mrf.mxu0
      %v753 = vadd.f32 0.0, %v752
      %754 = vmatmul.f32.gmra.mxu0 %v691
      %v755 = vpop.f32.mrf.mxu0
      %v756 = vadd.f32 0.0, %v755
      %757 = vmatmul.f32.gmra.mxu0 %v694
      %v758 = vpop.f32.mrf.mxu0
      %v759 = vadd.f32 0.0, %v758
      %760 = vmatmul.f32.gmra.mxu0 %v697
      %v761 = vpop.f32.mrf.mxu0
      %v762 = vadd.f32 0.0, %v761
      %763 = vmatmul.f32.gmra.mxu0 %v700
      %v764 = vpop.f32.mrf.mxu0
      %v765 = vadd.f32 0.0, %v764
      %766 = vdwg.mxu0
      %v767 = vadd.f32 %v617, %v720
      %v768 = vadd.f32 %v618, %v723
      %v769 = vadd.f32 %v619, %v726
      %v770 = vadd.f32 %v620, %v729
      %v771 = vadd.f32 %v621, %v732
      %v772 = vadd.f32 %v622, %v735
      %v773 = vadd.f32 %v623, %v738
      %v774 = vadd.f32 %v624, %v741
      %v775 = vadd.f32 %v625, %v744
      %v776 = vadd.f32 %v626, %v747
      %v777 = vadd.f32 %v627, %v750
      %v778 = vadd.f32 %v628, %v753
      %v779 = vadd.f32 %v629, %v756
      %v780 = vadd.f32 %v630, %v759
      %v781 = vadd.f32 %v631, %v762
      %v782 = vadd.f32 %v632, %v765
      %v783 = vld [vmem:[%s635 + $0x1] sm:$0xff]
      %v784 = vld [vmem:[%s635 + $0x9] sm:$0xff]
      %v785 = vld [vmem:[%s635 + $0x19] sm:$0xff]
      %v786 = vld [vmem:[%s635 + $0x21] sm:$0xff]
      %v787 = vld [vmem:[%s635 + $0x31] sm:$0xff]
      %v788 = vld [vmem:[%s635 + $0x39] sm:$0xff]
      %v789 = vld [vmem:[%s635 + $0x49] sm:$0xff]
      %v790 = vld [vmem:[%s635 + $0x51] sm:$0xff]
      %v791 = vld [vmem:[%s635 + $0x61] sm:$0xff]
      %v792 = vld [vmem:[%s635 + $0x69] sm:$0xff]
      %v793 = vld [vmem:[%s635 + $0x79] sm:$0xff]
      %v794 = vld [vmem:[%s635 + $0x81] sm:$0xff]
      %v795 = vld [vmem:[%s635 + $0x91] sm:$0xff]
      %v796 = vld [vmem:[%s635 + $0x99] sm:$0xff]
      %v797 = vld [vmem:[%s635 + $0xa9] sm:$0xff]
      %v798 = vld [vmem:[%s635 + $0xb1] sm:$0xff]
      %s799 = scalar_lea.vmem %s1, 32
      %v800 = vld [vmem:[%s799] sm:$0xff]
      %v802 = vsel %vm259, %v783, 0
      %v805 = vsel %vm259, %v784, 0
      %v808 = vsel %vm259, %v785, 0
      %v811 = vsel %vm259, %v786, 0
      %v814 = vsel %vm259, %v787, 0
      %v817 = vsel %vm259, %v788, 0
      %v820 = vsel %vm259, %v789, 0
      %v823 = vsel %vm259, %v790, 0
      %v826 = vsel %vm259, %v791, 0
      %v829 = vsel %vm259, %v792, 0
      %v832 = vsel %vm259, %v793, 0
      %v835 = vsel %vm259, %v794, 0
      %v838 = vsel %vm259, %v795, 0
      %v841 = vsel %vm259, %v796, 0
      %v844 = vsel %vm259, %v797, 0
      %v847 = vsel %vm259, %v798, 0
      %849 = vmatpush.msra.mxu0 0.0
      %850 = vmatpush.msra.mxu0 0.0
      %851 = vmatpush.msra.mxu0 0.0
      %852 = vmatpush.msra.mxu0 0.0
      %853 = vmatpush.msra.mxu0 0.0
      %854 = vmatpush.msra.mxu0 0.0
      %855 = vmatpush.msra.mxu0 0.0
      %856 = vmatpush.msra.mxu0 0.0
      %857 = vmatpush.msra.mxu0 0.0
      %858 = vmatpush.msra.mxu0 0.0
      %859 = vmatpush.msra.mxu0 0.0
      %860 = vmatpush.msra.mxu0 0.0
      %861 = vmatpush.msra.mxu0 0.0
      %862 = vmatpush.msra.mxu0 0.0
      %863 = vmatpush.msra.mxu0 0.0
      %864 = vmatpush.msra.mxu0 %v800
      %865 = vmatmul.f32.gmra.mxu0 %v802
      %v866 = vpop.f32.mrf.mxu0
      %v867 = vadd.f32 0.0, %v866
      %868 = vmatmul.f32.gmra.mxu0 %v805
      %v869 = vpop.f32.mrf.mxu0
      %v870 = vadd.f32 0.0, %v869
      %871 = vmatmul.f32.gmra.mxu0 %v808
      %v872 = vpop.f32.mrf.mxu0
      %v873 = vadd.f32 0.0, %v872
      %874 = vmatmul.f32.gmra.mxu0 %v811
      %v875 = vpop.f32.mrf.mxu0
      %v876 = vadd.f32 0.0, %v875
      %877 = vmatmul.f32.gmra.mxu0 %v814
      %v878 = vpop.f32.mrf.mxu0
      %v879 = vadd.f32 0.0, %v878
      %880 = vmatmul.f32.gmra.mxu0 %v817
      %v881 = vpop.f32.mrf.mxu0
      %v882 = vadd.f32 0.0, %v881
      %883 = vmatmul.f32.gmra.mxu0 %v820
      %v884 = vpop.f32.mrf.mxu0
      %v885 = vadd.f32 0.0, %v884
      %886 = vmatmul.f32.gmra.mxu0 %v823
      %v887 = vpop.f32.mrf.mxu0
      %v888 = vadd.f32 0.0, %v887
      %889 = vmatmul.f32.gmra.mxu0 %v826
      %v890 = vpop.f32.mrf.mxu0
      %v891 = vadd.f32 0.0, %v890
      %892 = vmatmul.f32.gmra.mxu0 %v829
      %v893 = vpop.f32.mrf.mxu0
      %v894 = vadd.f32 0.0, %v893
      %895 = vmatmul.f32.gmra.mxu0 %v832
      %v896 = vpop.f32.mrf.mxu0
      %v897 = vadd.f32 0.0, %v896
      %898 = vmatmul.f32.gmra.mxu0 %v835
      %v899 = vpop.f32.mrf.mxu0
      %v900 = vadd.f32 0.0, %v899
      %901 = vmatmul.f32.gmra.mxu0 %v838
      %v902 = vpop.f32.mrf.mxu0
      %v903 = vadd.f32 0.0, %v902
      %904 = vmatmul.f32.gmra.mxu0 %v841
      %v905 = vpop.f32.mrf.mxu0
      %v906 = vadd.f32 0.0, %v905
      %907 = vmatmul.f32.gmra.mxu0 %v844
      %v908 = vpop.f32.mrf.mxu0
      %v909 = vadd.f32 0.0, %v908
      %910 = vmatmul.f32.gmra.mxu0 %v847
      %v911 = vpop.f32.mrf.mxu0
      %v912 = vadd.f32 0.0, %v911
      %913 = vdwg.mxu0
      %v914 = vadd.f32 %v767, %v867
      %v915 = vadd.f32 %v768, %v870
      %v916 = vadd.f32 %v769, %v873
      %v917 = vadd.f32 %v770, %v876
      %v918 = vadd.f32 %v771, %v879
      %v919 = vadd.f32 %v772, %v882
      %v920 = vadd.f32 %v773, %v885
      %v921 = vadd.f32 %v774, %v888
      %v922 = vadd.f32 %v775, %v891
      %v923 = vadd.f32 %v776, %v894
      %v924 = vadd.f32 %v777, %v897
      %v925 = vadd.f32 %v778, %v900
      %v926 = vadd.f32 %v779, %v903
      %v927 = vadd.f32 %v780, %v906
      %v928 = vadd.f32 %v781, %v909
      %v929 = vadd.f32 %v782, %v912
      %v930 = vld [vmem:[%s635 + $0x2] sm:$0xff]
      %v931 = vld [vmem:[%s635 + $0xa] sm:$0xff]
      %v932 = vld [vmem:[%s635 + $0x1a] sm:$0xff]
      %v933 = vld [vmem:[%s635 + $0x22] sm:$0xff]
      %v934 = vld [vmem:[%s635 + $0x32] sm:$0xff]
      %v935 = vld [vmem:[%s635 + $0x3a] sm:$0xff]
      %v936 = vld [vmem:[%s635 + $0x4a] sm:$0xff]
      %v937 = vld [vmem:[%s635 + $0x52] sm:$0xff]
      %v938 = vld [vmem:[%s635 + $0x62] sm:$0xff]
      %v939 = vld [vmem:[%s635 + $0x6a] sm:$0xff]
      %v940 = vld [vmem:[%s635 + $0x7a] sm:$0xff]
      %v941 = vld [vmem:[%s635 + $0x82] sm:$0xff]
      %v942 = vld [vmem:[%s635 + $0x92] sm:$0xff]
      %v943 = vld [vmem:[%s635 + $0x9a] sm:$0xff]
      %v944 = vld [vmem:[%s635 + $0xaa] sm:$0xff]
      %v945 = vld [vmem:[%s635 + $0xb2] sm:$0xff]
      %s946 = scalar_lea.vmem %s1, 40
      %v947 = vld [vmem:[%s946] sm:$0xff]
      %v949 = vsel %vm259, %v930, 0
      %v952 = vsel %vm259, %v931, 0
      %v955 = vsel %vm259, %v932, 0
      %v958 = vsel %vm259, %v933, 0
      %v961 = vsel %vm259, %v934, 0
      %v964 = vsel %vm259, %v935, 0
      %v967 = vsel %vm259, %v936, 0
      %v970 = vsel %vm259, %v937, 0
      %v973 = vsel %vm259, %v938, 0
      %v976 = vsel %vm259, %v939, 0
      %v979 = vsel %vm259, %v940, 0
      %v982 = vsel %vm259, %v941, 0
      %v985 = vsel %vm259, %v942, 0
      %v988 = vsel %vm259, %v943, 0
      %v991 = vsel %vm259, %v944, 0
      %v994 = vsel %vm259, %v945, 0
      %996 = vmatpush.msra.mxu0 0.0
      %997 = vmatpush.msra.mxu0 0.0
      %998 = vmatpush.msra.mxu0 0.0
      %999 = vmatpush.msra.mxu0 0.0
      %1000 = vmatpush.msra.mxu0 0.0
      %1001 = vmatpush.msra.mxu0 0.0
      %1002 = vmatpush.msra.mxu0 0.0
      %1003 = vmatpush.msra.mxu0 0.0
      %1004 = vmatpush.msra.mxu0 0.0
      %1005 = vmatpush.msra.mxu0 0.0
      %1006 = vmatpush.msra.mxu0 0.0
      %1007 = vmatpush.msra.mxu0 0.0
      %1008 = vmatpush.msra.mxu0 0.0
      %1009 = vmatpush.msra.mxu0 0.0
      %1010 = vmatpush.msra.mxu0 0.0
      %1011 = vmatpush.msra.mxu0 %v947
      %1012 = vmatmul.f32.gmra.mxu0 %v949
      %v1013 = vpop.f32.mrf.mxu0
      %v1014 = vadd.f32 0.0, %v1013
      %1015 = vmatmul.f32.gmra.mxu0 %v952
      %v1016 = vpop.f32.mrf.mxu0
      %v1017 = vadd.f32 0.0, %v1016
      %1018 = vmatmul.f32.gmra.mxu0 %v955
      %v1019 = vpop.f32.mrf.mxu0
      %v1020 = vadd.f32 0.0, %v1019
      %1021 = vmatmul.f32.gmra.mxu0 %v958
      %v1022 = vpop.f32.mrf.mxu0
      %v1023 = vadd.f32 0.0, %v1022
      %1024 = vmatmul.f32.gmra.mxu0 %v961
      %v1025 = vpop.f32.mrf.mxu0
      %v1026 = vadd.f32 0.0, %v1025
      %1027 = vmatmul.f32.gmra.mxu0 %v964
      %v1028 = vpop.f32.mrf.mxu0
      %v1029 = vadd.f32 0.0, %v1028
      %1030 = vmatmul.f32.gmra.mxu0 %v967
      %v1031 = vpop.f32.mrf.mxu0
      %v1032 = vadd.f32 0.0, %v1031
      %1033 = vmatmul.f32.gmra.mxu0 %v970
      %v1034 = vpop.f32.mrf.mxu0
      %v1035 = vadd.f32 0.0, %v1034
      %1036 = vmatmul.f32.gmra.mxu0 %v973
      %v1037 = vpop.f32.mrf.mxu0
      %v1038 = vadd.f32 0.0, %v1037
      %1039 = vmatmul.f32.gmra.mxu0 %v976
      %v1040 = vpop.f32.mrf.mxu0
      %v1041 = vadd.f32 0.0, %v1040
      %1042 = vmatmul.f32.gmra.mxu0 %v979
      %v1043 = vpop.f32.mrf.mxu0
      %v1044 = vadd.f32 0.0, %v1043
      %1045 = vmatmul.f32.gmra.mxu0 %v982
      %v1046 = vpop.f32.mrf.mxu0
      %v1047 = vadd.f32 0.0, %v1046
      %1048 = vmatmul.f32.gmra.mxu0 %v985
      %v1049 = vpop.f32.mrf.mxu0
      %v1050 = vadd.f32 0.0, %v1049
      %1051 = vmatmul.f32.gmra.mxu0 %v988
      %v1052 = vpop.f32.mrf.mxu0
      %v1053 = vadd.f32 0.0, %v1052
      %1054 = vmatmul.f32.gmra.mxu0 %v991
      %v1055 = vpop.f32.mrf.mxu0
      %v1056 = vadd.f32 0.0, %v1055
      %1057 = vmatmul.f32.gmra.mxu0 %v994
      %v1058 = vpop.f32.mrf.mxu0
      %v1059 = vadd.f32 0.0, %v1058
      %1060 = vdwg.mxu0
      %v1061 = vadd.f32 %v914, %v1014
      %v1062 = vadd.f32 %v915, %v1017
      %v1063 = vadd.f32 %v916, %v1020
      %v1064 = vadd.f32 %v917, %v1023
      %v1065 = vadd.f32 %v918, %v1026
      %v1066 = vadd.f32 %v919, %v1029
      %v1067 = vadd.f32 %v920, %v1032
      %v1068 = vadd.f32 %v921, %v1035
      %v1069 = vadd.f32 %v922, %v1038
      %v1070 = vadd.f32 %v923, %v1041
      %v1071 = vadd.f32 %v924, %v1044
      %v1072 = vadd.f32 %v925, %v1047
      %v1073 = vadd.f32 %v926, %v1050
      %v1074 = vadd.f32 %v927, %v1053
      %v1075 = vadd.f32 %v928, %v1056
      %v1076 = vadd.f32 %v929, %v1059
      %s1077 = sadd.s32 %s221, 2
      %s1078 = smul.u32 %s1077, 24
      %s1079 = scalar_lea.vmem %s210, %s1078
      %v1080 = vld [vmem:[%s1079] sm:$0xff]
      %v1081 = vld [vmem:[%s1079 + $0x8] sm:$0xff]
      %v1082 = vld [vmem:[%s1079 + $0x18] sm:$0xff]
      %v1083 = vld [vmem:[%s1079 + $0x20] sm:$0xff]
      %v1084 = vld [vmem:[%s1079 + $0x30] sm:$0xff]
      %v1085 = vld [vmem:[%s1079 + $0x38] sm:$0xff]
      %v1086 = vld [vmem:[%s1079 + $0x48] sm:$0xff]
      %v1087 = vld [vmem:[%s1079 + $0x50] sm:$0xff]
      %v1088 = vld [vmem:[%s1079 + $0x60] sm:$0xff]
      %v1089 = vld [vmem:[%s1079 + $0x68] sm:$0xff]
      %v1090 = vld [vmem:[%s1079 + $0x78] sm:$0xff]
      %v1091 = vld [vmem:[%s1079 + $0x80] sm:$0xff]
      %v1092 = vld [vmem:[%s1079 + $0x90] sm:$0xff]
      %v1093 = vld [vmem:[%s1079 + $0x98] sm:$0xff]
      %v1094 = vld [vmem:[%s1079 + $0xa8] sm:$0xff]
      %v1095 = vld [vmem:[%s1079 + $0xb0] sm:$0xff]
      %s1096 = scalar_lea.vmem %s1, 48
      %v1097 = vld [vmem:[%s1096] sm:$0xff]
      %v1099 = vsel %vm259, %v1080, 0
      %v1102 = vsel %vm259, %v1081, 0
      %v1105 = vsel %vm259, %v1082, 0
      %v1108 = vsel %vm259, %v1083, 0
      %v1111 = vsel %vm259, %v1084, 0
      %v1114 = vsel %vm259, %v1085, 0
      %v1117 = vsel %vm259, %v1086, 0
      %v1120 = vsel %vm259, %v1087, 0
      %v1123 = vsel %vm259, %v1088, 0
      %v1126 = vsel %vm259, %v1089, 0
      %v1129 = vsel %vm259, %v1090, 0
      %v1132 = vsel %vm259, %v1091, 0
      %v1135 = vsel %vm259, %v1092, 0
      %v1138 = vsel %vm259, %v1093, 0
      %v1141 = vsel %vm259, %v1094, 0
      %v1144 = vsel %vm259, %v1095, 0
      %1146 = vmatpush.msra.mxu0 0.0
      %1147 = vmatpush.msra.mxu0 0.0
      %1148 = vmatpush.msra.mxu0 0.0
      %1149 = vmatpush.msra.mxu0 0.0
      %1150 = vmatpush.msra.mxu0 0.0
      %1151 = vmatpush.msra.mxu0 0.0
      %1152 = vmatpush.msra.mxu0 0.0
      %1153 = vmatpush.msra.mxu0 0.0
      %1154 = vmatpush.msra.mxu0 0.0
      %1155 = vmatpush.msra.mxu0 0.0
      %1156 = vmatpush.msra.mxu0 0.0
      %1157 = vmatpush.msra.mxu0 0.0
      %1158 = vmatpush.msra.mxu0 0.0
      %1159 = vmatpush.msra.mxu0 0.0
      %1160 = vmatpush.msra.mxu0 0.0
      %1161 = vmatpush.msra.mxu0 %v1097
      %1162 = vmatmul.f32.gmra.mxu0 %v1099
      %v1163 = vpop.f32.mrf.mxu0
      %v1164 = vadd.f32 0.0, %v1163
      %1165 = vmatmul.f32.gmra.mxu0 %v1102
      %v1166 = vpop.f32.mrf.mxu0
      %v1167 = vadd.f32 0.0, %v1166
      %1168 = vmatmul.f32.gmra.mxu0 %v1105
      %v1169 = vpop.f32.mrf.mxu0
      %v1170 = vadd.f32 0.0, %v1169
      %1171 = vmatmul.f32.gmra.mxu0 %v1108
      %v1172 = vpop.f32.mrf.mxu0
      %v1173 = vadd.f32 0.0, %v1172
      %1174 = vmatmul.f32.gmra.mxu0 %v1111
      %v1175 = vpop.f32.mrf.mxu0
      %v1176 = vadd.f32 0.0, %v1175
      %1177 = vmatmul.f32.gmra.mxu0 %v1114
      %v1178 = vpop.f32.mrf.mxu0
      %v1179 = vadd.f32 0.0, %v1178
      %1180 = vmatmul.f32.gmra.mxu0 %v1117
      %v1181 = vpop.f32.mrf.mxu0
      %v1182 = vadd.f32 0.0, %v1181
      %1183 = vmatmul.f32.gmra.mxu0 %v1120
      %v1184 = vpop.f32.mrf.mxu0
      %v1185 = vadd.f32 0.0, %v1184
      %1186 = vmatmul.f32.gmra.mxu0 %v1123
      %v1187 = vpop.f32.mrf.mxu0
      %v1188 = vadd.f32 0.0, %v1187
      %1189 = vmatmul.f32.gmra.mxu0 %v1126
      %v1190 = vpop.f32.mrf.mxu0
      %v1191 = vadd.f32 0.0, %v1190
      %1192 = vmatmul.f32.gmra.mxu0 %v1129
      %v1193 = vpop.f32.mrf.mxu0
      %v1194 = vadd.f32 0.0, %v1193
      %1195 = vmatmul.f32.gmra.mxu0 %v1132
      %v1196 = vpop.f32.mrf.mxu0
      %v1197 = vadd.f32 0.0, %v1196
      %1198 = vmatmul.f32.gmra.mxu0 %v1135
      %v1199 = vpop.f32.mrf.mxu0
      %v1200 = vadd.f32 0.0, %v1199
      %1201 = vmatmul.f32.gmra.mxu0 %v1138
      %v1202 = vpop.f32.mrf.mxu0
      %v1203 = vadd.f32 0.0, %v1202
      %1204 = vmatmul.f32.gmra.mxu0 %v1141
      %v1205 = vpop.f32.mrf.mxu0
      %v1206 = vadd.f32 0.0, %v1205
      %1207 = vmatmul.f32.gmra.mxu0 %v1144
      %v1208 = vpop.f32.mrf.mxu0
      %v1209 = vadd.f32 0.0, %v1208
      %1210 = vdwg.mxu0
      %v1211 = vadd.f32 %v1061, %v1164
      %v1212 = vadd.f32 %v1062, %v1167
      %v1213 = vadd.f32 %v1063, %v1170
      %v1214 = vadd.f32 %v1064, %v1173
      %v1215 = vadd.f32 %v1065, %v1176
      %v1216 = vadd.f32 %v1066, %v1179
      %v1217 = vadd.f32 %v1067, %v1182
      %v1218 = vadd.f32 %v1068, %v1185
      %v1219 = vadd.f32 %v1069, %v1188
      %v1220 = vadd.f32 %v1070, %v1191
      %v1221 = vadd.f32 %v1071, %v1194
      %v1222 = vadd.f32 %v1072, %v1197
      %v1223 = vadd.f32 %v1073, %v1200
      %v1224 = vadd.f32 %v1074, %v1203
      %v1225 = vadd.f32 %v1075, %v1206
      %v1226 = vadd.f32 %v1076, %v1209
      %v1227 = vld [vmem:[%s1079 + $0x1] sm:$0xff]
      %v1228 = vld [vmem:[%s1079 + $0x9] sm:$0xff]
      %v1229 = vld [vmem:[%s1079 + $0x19] sm:$0xff]
      %v1230 = vld [vmem:[%s1079 + $0x21] sm:$0xff]
      %v1231 = vld [vmem:[%s1079 + $0x31] sm:$0xff]
      %v1232 = vld [vmem:[%s1079 + $0x39] sm:$0xff]
      %v1233 = vld [vmem:[%s1079 + $0x49] sm:$0xff]
      %v1234 = vld [vmem:[%s1079 + $0x51] sm:$0xff]
      %v1235 = vld [vmem:[%s1079 + $0x61] sm:$0xff]
      %v1236 = vld [vmem:[%s1079 + $0x69] sm:$0xff]
      %v1237 = vld [vmem:[%s1079 + $0x79] sm:$0xff]
      %v1238 = vld [vmem:[%s1079 + $0x81] sm:$0xff]
      %v1239 = vld [vmem:[%s1079 + $0x91] sm:$0xff]
      %v1240 = vld [vmem:[%s1079 + $0x99] sm:$0xff]
      %v1241 = vld [vmem:[%s1079 + $0xa9] sm:$0xff]
      %v1242 = vld [vmem:[%s1079 + $0xb1] sm:$0xff]
      %s1243 = scalar_lea.vmem %s1, 56
      %v1244 = vld [vmem:[%s1243] sm:$0xff]
      %v1246 = vsel %vm259, %v1227, 0
      %v1249 = vsel %vm259, %v1228, 0
      %v1252 = vsel %vm259, %v1229, 0
      %v1255 = vsel %vm259, %v1230, 0
      %v1258 = vsel %vm259, %v1231, 0
      %v1261 = vsel %vm259, %v1232, 0
      %v1264 = vsel %vm259, %v1233, 0
      %v1267 = vsel %vm259, %v1234, 0
      %v1270 = vsel %vm259, %v1235, 0
      %v1273 = vsel %vm259, %v1236, 0
      %v1276 = vsel %vm259, %v1237, 0
      %v1279 = vsel %vm259, %v1238, 0
      %v1282 = vsel %vm259, %v1239, 0
      %v1285 = vsel %vm259, %v1240, 0
      %v1288 = vsel %vm259, %v1241, 0
      %v1291 = vsel %vm259, %v1242, 0
      %1293 = vmatpush.msra.mxu0 0.0
      %1294 = vmatpush.msra.mxu0 0.0
      %1295 = vmatpush.msra.mxu0 0.0
      %1296 = vmatpush.msra.mxu0 0.0
      %1297 = vmatpush.msra.mxu0 0.0
      %1298 = vmatpush.msra.mxu0 0.0
      %1299 = vmatpush.msra.mxu0 0.0
      %1300 = vmatpush.msra.mxu0 0.0
      %1301 = vmatpush.msra.mxu0 0.0
      %1302 = vmatpush.msra.mxu0 0.0
      %1303 = vmatpush.msra.mxu0 0.0
      %1304 = vmatpush.msra.mxu0 0.0
      %1305 = vmatpush.msra.mxu0 0.0
      %1306 = vmatpush.msra.mxu0 0.0
      %1307 = vmatpush.msra.mxu0 0.0
      %1308 = vmatpush.msra.mxu0 %v1244
      %1309 = vmatmul.f32.gmra.mxu0 %v1246
      %v1310 = vpop.f32.mrf.mxu0
      %v1311 = vadd.f32 0.0, %v1310
      %1312 = vmatmul.f32.gmra.mxu0 %v1249
      %v1313 = vpop.f32.mrf.mxu0
      %v1314 = vadd.f32 0.0, %v1313
      %1315 = vmatmul.f32.gmra.mxu0 %v1252
      %v1316 = vpop.f32.mrf.mxu0
      %v1317 = vadd.f32 0.0, %v1316
      %1318 = vmatmul.f32.gmra.mxu0 %v1255
      %v1319 = vpop.f32.mrf.mxu0
      %v1320 = vadd.f32 0.0, %v1319
      %1321 = vmatmul.f32.gmra.mxu0 %v1258
      %v1322 = vpop.f32.mrf.mxu0
      %v1323 = vadd.f32 0.0, %v1322
      %1324 = vmatmul.f32.gmra.mxu0 %v1261
      %v1325 = vpop.f32.mrf.mxu0
      %v1326 = vadd.f32 0.0, %v1325
      %1327 = vmatmul.f32.gmra.mxu0 %v1264
      %v1328 = vpop.f32.mrf.mxu0
      %v1329 = vadd.f32 0.0, %v1328
      %1330 = vmatmul.f32.gmra.mxu0 %v1267
      %v1331 = vpop.f32.mrf.mxu0
      %v1332 = vadd.f32 0.0, %v1331
      %1333 = vmatmul.f32.gmra.mxu0 %v1270
      %v1334 = vpop.f32.mrf.mxu0
      %v1335 = vadd.f32 0.0, %v1334
      %1336 = vmatmul.f32.gmra.mxu0 %v1273
      %v1337 = vpop.f32.mrf.mxu0
      %v1338 = vadd.f32 0.0, %v1337
      %1339 = vmatmul.f32.gmra.mxu0 %v1276
      %v1340 = vpop.f32.mrf.mxu0
      %v1341 = vadd.f32 0.0, %v1340
      %1342 = vmatmul.f32.gmra.mxu0 %v1279
      %v1343 = vpop.f32.mrf.mxu0
      %v1344 = vadd.f32 0.0, %v1343
      %1345 = vmatmul.f32.gmra.mxu0 %v1282
      %v1346 = vpop.f32.mrf.mxu0
      %v1347 = vadd.f32 0.0, %v1346
      %1348 = vmatmul.f32.gmra.mxu0 %v1285
      %v1349 = vpop.f32.mrf.mxu0
      %v1350 = vadd.f32 0.0, %v1349
      %1351 = vmatmul.f32.gmra.mxu0 %v1288
      %v1352 = vpop.f32.mrf.mxu0
      %v1353 = vadd.f32 0.0, %v1352
      %1354 = vmatmul.f32.gmra.mxu0 %v1291
      %v1355 = vpop.f32.mrf.mxu0
      %v1356 = vadd.f32 0.0, %v1355
      %1357 = vdwg.mxu0
      %v1358 = vadd.f32 %v1211, %v1311
      %v1359 = vadd.f32 %v1212, %v1314
      %v1360 = vadd.f32 %v1213, %v1317
      %v1361 = vadd.f32 %v1214, %v1320
      %v1362 = vadd.f32 %v1215, %v1323
      %v1363 = vadd.f32 %v1216, %v1326
      %v1364 = vadd.f32 %v1217, %v1329
      %v1365 = vadd.f32 %v1218, %v1332
      %v1366 = vadd.f32 %v1219, %v1335
      %v1367 = vadd.f32 %v1220, %v1338
      %v1368 = vadd.f32 %v1221, %v1341
      %v1369 = vadd.f32 %v1222, %v1344
      %v1370 = vadd.f32 %v1223, %v1347
      %v1371 = vadd.f32 %v1224, %v1350
      %v1372 = vadd.f32 %v1225, %v1353
      %v1373 = vadd.f32 %v1226, %v1356
      %v1374 = vld [vmem:[%s1079 + $0x2] sm:$0xff]
      %v1375 = vld [vmem:[%s1079 + $0xa] sm:$0xff]
      %v1376 = vld [vmem:[%s1079 + $0x1a] sm:$0xff]
      %v1377 = vld [vmem:[%s1079 + $0x22] sm:$0xff]
      %v1378 = vld [vmem:[%s1079 + $0x32] sm:$0xff]
      %v1379 = vld [vmem:[%s1079 + $0x3a] sm:$0xff]
      %v1380 = vld [vmem:[%s1079 + $0x4a] sm:$0xff]
      %v1381 = vld [vmem:[%s1079 + $0x52] sm:$0xff]
      %v1382 = vld [vmem:[%s1079 + $0x62] sm:$0xff]
      %v1383 = vld [vmem:[%s1079 + $0x6a] sm:$0xff]
      %v1384 = vld [vmem:[%s1079 + $0x7a] sm:$0xff]
      %v1385 = vld [vmem:[%s1079 + $0x82] sm:$0xff]
      %v1386 = vld [vmem:[%s1079 + $0x92] sm:$0xff]
      %v1387 = vld [vmem:[%s1079 + $0x9a] sm:$0xff]
      %v1388 = vld [vmem:[%s1079 + $0xaa] sm:$0xff]
      %v1389 = vld [vmem:[%s1079 + $0xb2] sm:$0xff]
      %s1390 = scalar_lea.vmem %s1, 64
      %v1391 = vld [vmem:[%s1390] sm:$0xff]
      %v1393 = vsel %vm259, %v1374, 0
      %v1396 = vsel %vm259, %v1375, 0
      %v1399 = vsel %vm259, %v1376, 0
      %v1402 = vsel %vm259, %v1377, 0
      %v1405 = vsel %vm259, %v1378, 0
      %v1408 = vsel %vm259, %v1379, 0
      %v1411 = vsel %vm259, %v1380, 0
      %v1414 = vsel %vm259, %v1381, 0
      %v1417 = vsel %vm259, %v1382, 0
      %v1420 = vsel %vm259, %v1383, 0
      %v1423 = vsel %vm259, %v1384, 0
      %v1426 = vsel %vm259, %v1385, 0
      %v1429 = vsel %vm259, %v1386, 0
      %v1432 = vsel %vm259, %v1387, 0
      %v1435 = vsel %vm259, %v1388, 0
      %v1438 = vsel %vm259, %v1389, 0
      %1440 = vmatpush.msra.mxu0 0.0
      %1441 = vmatpush.msra.mxu0 0.0
      %1442 = vmatpush.msra.mxu0 0.0
      %1443 = vmatpush.msra.mxu0 0.0
      %1444 = vmatpush.msra.mxu0 0.0
      %1445 = vmatpush.msra.mxu0 0.0
      %1446 = vmatpush.msra.mxu0 0.0
      %1447 = vmatpush.msra.mxu0 0.0
      %1448 = vmatpush.msra.mxu0 0.0
      %1449 = vmatpush.msra.mxu0 0.0
      %1450 = vmatpush.msra.mxu0 0.0
      %1451 = vmatpush.msra.mxu0 0.0
      %1452 = vmatpush.msra.mxu0 0.0
      %1453 = vmatpush.msra.mxu0 0.0
      %1454 = vmatpush.msra.mxu0 0.0
      %1455 = vmatpush.msra.mxu0 %v1391
      %1456 = vmatmul.f32.gmra.mxu0 %v1393
      %v1457 = vpop.f32.mrf.mxu0
      %v1458 = vadd.f32 0.0, %v1457
      %1459 = vmatmul.f32.gmra.mxu0 %v1396
      %v1460 = vpop.f32.mrf.mxu0
      %v1461 = vadd.f32 0.0, %v1460
      %1462 = vmatmul.f32.gmra.mxu0 %v1399
      %v1463 = vpop.f32.mrf.mxu0
      %v1464 = vadd.f32 0.0, %v1463
      %1465 = vmatmul.f32.gmra.mxu0 %v1402
      %v1466 = vpop.f32.mrf.mxu0
      %v1467 = vadd.f32 0.0, %v1466
      %1468 = vmatmul.f32.gmra.mxu0 %v1405
      %v1469 = vpop.f32.mrf.mxu0
      %v1470 = vadd.f32 0.0, %v1469
      %1471 = vmatmul.f32.gmra.mxu0 %v1408
      %v1472 = vpop.f32.mrf.mxu0
      %v1473 = vadd.f32 0.0, %v1472
      %1474 = vmatmul.f32.gmra.mxu0 %v1411
      %v1475 = vpop.f32.mrf.mxu0
      %v1476 = vadd.f32 0.0, %v1475
      %1477 = vmatmul.f32.gmra.mxu0 %v1414
      %v1478 = vpop.f32.mrf.mxu0
      %v1479 = vadd.f32 0.0, %v1478
      %1480 = vmatmul.f32.gmra.mxu0 %v1417
      %v1481 = vpop.f32.mrf.mxu0
      %v1482 = vadd.f32 0.0, %v1481
      %1483 = vmatmul.f32.gmra.mxu0 %v1420
      %v1484 = vpop.f32.mrf.mxu0
      %v1485 = vadd.f32 0.0, %v1484
      %1486 = vmatmul.f32.gmra.mxu0 %v1423
      %v1487 = vpop.f32.mrf.mxu0
      %v1488 = vadd.f32 0.0, %v1487
      %1489 = vmatmul.f32.gmra.mxu0 %v1426
      %v1490 = vpop.f32.mrf.mxu0
      %v1491 = vadd.f32 0.0, %v1490
      %1492 = vmatmul.f32.gmra.mxu0 %v1429
      %v1493 = vpop.f32.mrf.mxu0
      %v1494 = vadd.f32 0.0, %v1493
      %1495 = vmatmul.f32.gmra.mxu0 %v1432
      %v1496 = vpop.f32.mrf.mxu0
      %v1497 = vadd.f32 0.0, %v1496
      %1498 = vmatmul.f32.gmra.mxu0 %v1435
      %v1499 = vpop.f32.mrf.mxu0
      %v1500 = vadd.f32 0.0, %v1499
      %1501 = vmatmul.f32.gmra.mxu0 %v1438
      %v1502 = vpop.f32.mrf.mxu0
      %v1503 = vadd.f32 0.0, %v1502
      %1504 = vdwg.mxu0
      %v1505 = vadd.f32 %v1358, %v1458
      %v1506 = vadd.f32 %v1359, %v1461
      %v1507 = vadd.f32 %v1360, %v1464
      %v1508 = vadd.f32 %v1361, %v1467
      %v1509 = vadd.f32 %v1362, %v1470
      %v1510 = vadd.f32 %v1363, %v1473
      %v1511 = vadd.f32 %v1364, %v1476
      %v1512 = vadd.f32 %v1365, %v1479
      %v1513 = vadd.f32 %v1366, %v1482
      %v1514 = vadd.f32 %v1367, %v1485
      %v1515 = vadd.f32 %v1368, %v1488
      %v1516 = vadd.f32 %v1369, %v1491
      %v1517 = vadd.f32 %v1370, %v1494
      %v1518 = vadd.f32 %v1371, %v1497
      %v1519 = vadd.f32 %v1372, %v1500
      %v1520 = vadd.f32 %v1373, %v1503
      %v1521 = vld [vmem:[%s2] sm:$0x1]
      %v1523 = vperm.slane %v1521, 0
      %v1525 = vmul.f32 %v1505, %v1523
      %v1526 = vmul.f32 %v1506, %v1523
      %v1527 = vmul.f32 %v1507, %v1523
      %v1528 = vmul.f32 %v1508, %v1523
      %v1529 = vmul.f32 %v1509, %v1523
      %v1530 = vmul.f32 %v1510, %v1523
      %v1531 = vmul.f32 %v1511, %v1523
      %v1532 = vmul.f32 %v1512, %v1523
      %v1533 = vmul.f32 %v1513, %v1523
      %v1534 = vmul.f32 %v1514, %v1523
      %v1535 = vmul.f32 %v1515, %v1523
      %v1536 = vmul.f32 %v1516, %v1523
      %v1537 = vmul.f32 %v1517, %v1523
      %v1538 = vmul.f32 %v1518, %v1523
      %v1539 = vmul.f32 %v1519, %v1523
      %v1540 = vmul.f32 %v1520, %v1523
      %v1541 = vld [vmem:[%s3] sm:$0x1]
      %v1543 = vperm.slane %v1541, 0
      %v1545 = vadd.f32 %v1525, %v1543
      %v1546 = vadd.f32 %v1526, %v1543
      %v1547 = vadd.f32 %v1527, %v1543
      %v1548 = vadd.f32 %v1528, %v1543
      %v1549 = vadd.f32 %v1529, %v1543
      %v1550 = vadd.f32 %v1530, %v1543
      %v1551 = vadd.f32 %v1531, %v1543
      %v1552 = vadd.f32 %v1532, %v1543
      %v1553 = vadd.f32 %v1533, %v1543
      %v1554 = vadd.f32 %v1534, %v1543
      %v1555 = vadd.f32 %v1535, %v1543
      %v1556 = vadd.f32 %v1536, %v1543
      %v1557 = vadd.f32 %v1537, %v1543
      %v1558 = vadd.f32 %v1538, %v1543
      %v1559 = vadd.f32 %v1539, %v1543
      %v1560 = vadd.f32 %v1540, %v1543
      %v1561 = vmax.f32 %v1545, 0.0
      %v1562 = vmax.f32 %v1546, 0.0
      %v1563 = vmax.f32 %v1547, 0.0
      %v1564 = vmax.f32 %v1548, 0.0
      %v1565 = vmax.f32 %v1549, 0.0
      %v1566 = vmax.f32 %v1550, 0.0
      %v1567 = vmax.f32 %v1551, 0.0
      %v1568 = vmax.f32 %v1552, 0.0
      %v1569 = vmax.f32 %v1553, 0.0
      %v1570 = vmax.f32 %v1554, 0.0
      %v1571 = vmax.f32 %v1555, 0.0
      %v1572 = vmax.f32 %v1556, 0.0
      %v1573 = vmax.f32 %v1557, 0.0
      %v1574 = vmax.f32 %v1558, 0.0
      %v1575 = vmax.f32 %v1559, 0.0
      %v1576 = vmax.f32 %v1560, 0.0
      %1577 = vst [vmem:[%s219] sm:$0xff] %v1561
      %1578 = vst [vmem:[%s219 + $0x8] sm:$0xff] %v1562
      %1579 = vst [vmem:[%s219 + $0x10] sm:$0xff] %v1563
      %1580 = vst [vmem:[%s219 + $0x18] sm:$0xff] %v1564
      %1581 = vst [vmem:[%s219 + $0x20] sm:$0xff] %v1565
      %1582 = vst [vmem:[%s219 + $0x28] sm:$0xff] %v1566
      %1583 = vst [vmem:[%s219 + $0x30] sm:$0xff] %v1567
      %1584 = vst [vmem:[%s219 + $0x38] sm:$0xff] %v1568
      %1585 = vst [vmem:[%s219 + $0x40] sm:$0xff] %v1569
      %1586 = vst [vmem:[%s219 + $0x48] sm:$0xff] %v1570
      %1587 = vst [vmem:[%s219 + $0x50] sm:$0xff] %v1571
      %1588 = vst [vmem:[%s219 + $0x58] sm:$0xff] %v1572
      %1589 = vst [vmem:[%s219 + $0x60] sm:$0xff] %v1573
      %1590 = vst [vmem:[%s219 + $0x68] sm:$0xff] %v1574
      %1591 = vst [vmem:[%s219 + $0x70] sm:$0xff] %v1575
      %1592 = vst [vmem:[%s219 + $0x78] sm:$0xff] %v1576
      %s1593 = smul.u32 16, %s20
      %p1594 = scmp.lt.s32.totalorder %s19, 1
      %s1595 = scalar_select %p1594, %s19, 1
      %p1596 = scmp.lt.s32.totalorder %s1593, 31
      %s1597 = scalar_select %p1596, %s1593, 31
      %s1598 = smul.addr %s1595, 32
      %s1599 = sadd.s32 %s1597, %s1598
      %s1600 = smul.addr %s1599, 8
      %s1601 = scalar_lea.vmem %s4, %s1600
      // Predicated region
      $region37: #{basic_conv.3} parent=35 // pred_check
        %p1602 = pneg %p136
      $region38: #{basic_conv.3} parent=35 // pred_check_branch
        %1604 = sbr.rel (%p1602) target = $region40
      $region39: #{basic_conv.3} parent=35 // pred_region
        %s1605 = smul.u32 16, %s20
      $region40: #{basic_conv.3} parent=35 // pred_fallthru
        _
    $region36: #{basic_conv.3} parent=5 // pred_fallthru
      _
    %p1606 = scmp.le.s32.totalorder 2, %s10
    // Predicated region
    $region41: #{basic_conv.3} parent=5 // pred_check
      %p1607 = pneg %p1606
    $region42: #{basic_conv.3} parent=5 // pred_check_branch
      %1609 = sbr.rel (%p1607) target = $region44
    $region43: #{basic_conv.3} parent=5 // pred_region
      %s1610 = ssub.s32 %s10, 2
      // Predicated region
      $region45: #{basic_conv.3} parent=43 // pred_check
        %p1611 = pneg %p142
      $region46: #{basic_conv.3} parent=43 // pred_check_branch
        %1613 = sbr.rel (%p1611) target = $region48
      $region47: #{basic_conv.3} parent=43 // pred_region
        %s1614 = smul.u32 16, %s22
        %p1615 = scmp.lt.s32.totalorder %s21, 1
        %s1616 = scalar_select %p1615, %s21, 1
        %p1617 = scmp.lt.s32.totalorder %s1614, 31
        %s1618 = scalar_select %p1617, %s1614, 31
        %s1619 = smul.addr %s1616, 32
        %s1620 = sadd.s32 %s1618, %s1619
        %s1621 = smul.addr %s1620, 8
        %s1622 = scalar_lea.vmem %s4, %s1621
      $region48: #{basic_conv.3} parent=43 // pred_fallthru
        _
    $region44: #{basic_conv.3} parent=5 // pred_fallthru
      _
  $region6: #{basic_conv.3} parent=0 // loop_footer
    %s14 = sadd.s32 1, %s10
  $region7: #{basic_conv.3} parent=0 // loop_footer_branch
    %9 = sbr.rel target = $region3
  $region8: #{basic_conv.3} parent=0 // loop_exit
    _

</llo_original>
